<compile_context>
chip_gen: v7x
topology: tpu7x:2x2x1
jax: 0.10.0
libtpu: 0.0.40
codegen_flags: <defaults>
</compile_context>

<pallas_src>
import jax
import jax.numpy as jnp
from jax.experimental import pallas as pl
from jax.experimental.pallas import tpu as pltpu

IN_CH = 3
OUT_CH = 128
KH = KW = 3
EPS = 1e-12
TM = 1024  # im2col rows per grid step; keep a multiple of 128 (lane-dense transpose)


def _conv_quant_kernel(scale_ref, p_ref, w_ref, b_ref, y_ref, amax_ref):
    """Input int8 fake-quant -> bf16 integer-code matmul (MXU, f32 acc) -> rescale + bias.

    scale_ref (SMEM f32[2]): [1/s_in, s_in*s_w]
    p_ref    (1, TM, K)      f32  raw im2col patches
    w_ref    (K, OUT_CH)     bf16 pre-quantized int4 weight codes (hoisted, static)
    b_ref    (1, OUT_CH)     f32  dequantized Int32Bias: s_comb * round(b / s_comb)
    y_ref    (1, TM, OUT_CH) f32  conv output before the output re-quant
    amax_ref (1, 1, 8, 128)  f32  per-lane |y| max of this tile (global s_out finalize
                                  happens in the wrapper)
    """
    inv_s_in = scale_ref[0]
    s_comb = scale_ref[1]  # s_in * s_w

    # input quant (QuantIdentity, int8 symmetric): integer codes
    p_codes = jnp.clip(jnp.round(p_ref[0] * inv_s_in), -128.0, 127.0)

    # matmul on quantized codes: exact in bf16 (|codes| <= 128 / <= 8), f32 accumulation
    acc = jnp.dot(p_codes.astype(jnp.bfloat16), w_ref[...],
                  preferred_element_type=jnp.float32)

    # combined dequant + quantized-bias add (bias pre-quantized/dequantized in wrapper)
    y = acc * s_comb + b_ref[...]
    y_ref[0] = y

    # per-lane abs-max: sublane-axis reduce only (no cross-lane XLU reduce)
    col_max = jnp.max(jnp.abs(y), axis=0, keepdims=True)          # (1, OUT_CH)
    amax_ref[...] = jnp.broadcast_to(col_max, amax_ref.shape)


def _requant_transpose_kernel(scale_ref, y_ref, o_ref):
    """Output fake-quant (Int8ActPerTensorFloat) with the global per-tensor scale,
    fused with the NHWC->NCHW transpose of the tile (XLU)."""
    inv_s_out = scale_ref[0]
    s_out = scale_ref[1]
    q = jnp.clip(jnp.round(y_ref[0] * inv_s_out), -128.0, 127.0) * s_out
    o_ref[0] = q.T  # (OUT_CH, TM): channel-major, lane dim = TM (multiple of 128)


def quant_conv_forward(x, weight, bias, tm=TM):
    # x: (N, IN_CH, H, W), weight: (OUT_CH, IN_CH, KH, KW), bias: (OUT_CH,)
    n, c, h, w = x.shape
    oh, ow = h - KH + 1, w - KW + 1
    hw = oh * ow
    k = c * KH * KW

    # --- per-tensor scales (recomputed per call, like the untrained module) ---
    s_in = jnp.maximum(jnp.max(jnp.abs(x)), EPS) / 127.0
    s_w = jnp.maximum(jnp.max(jnp.abs(weight)), EPS) / 7.0
    s_comb = s_in * s_w

    # --- weight fake-quant hoisted out of the kernel (weights are static) ---
    w_codes = jnp.clip(jnp.round(weight / s_w), -8.0, 7.0)
    # (OUT_CH, C, KH, KW) -> (KH, KW, C, OUT_CH) -> (K, OUT_CH); matches im2col order
    w_mat = w_codes.transpose(2, 3, 1, 0).reshape(k, OUT_CH).astype(jnp.bfloat16)

    # --- bias quant (Int32Bias, scale = s_in*s_w) hoisted + dequantized once ---
    b_deq = (s_comb * jnp.round(bias / s_comb)).reshape(1, OUT_CH).astype(jnp.float32)

    # --- im2col: shifted-slice concat in NHWC (no 5-D stack / transpose) ---
    x_nhwc = x.transpose(0, 2, 3, 1)
    cols = [x_nhwc[:, dh:dh + oh, dw:dw + ow, :]
            for dh in range(KH) for dw in range(KW)]
    patches = jnp.concatenate(cols, axis=-1).reshape(n, hw, k)

    num_tiles = pl.cdiv(hw, tm)
    hw_pad = num_tiles * tm
    if hw_pad != hw:
        # Edge-replicate: padded rows duplicate real outputs, so the global abs-max
        # (and hence s_out) is unaffected.  Padded y rows never reach the final output
        # (pass-2 boundary store is masked).
        patches = jnp.pad(patches, ((0, 0), (0, hw_pad - hw), (0, 0)), mode="edge")

    scales_a = jnp.stack([1.0 / s_in, s_comb]).astype(jnp.float32)

    # Pass 1: quantized conv + per-tile/per-lane abs-max.  2-D "parallel" grid (N, tiles).
    y_raw, amax = pl.pallas_call(
        _conv_quant_kernel,
        out_shape=[
            jax.ShapeDtypeStruct((n, hw_pad, OUT_CH), jnp.float32),
            jax.ShapeDtypeStruct((n, num_tiles, 8, 128), jnp.float32),
        ],
        grid=(n, num_tiles),
        in_specs=[
            pl.BlockSpec(memory_space=pltpu.MemorySpace.SMEM),       # scales
            pl.BlockSpec((1, tm, k), lambda b, i: (b, i, 0)),        # patches
            pl.BlockSpec((k, OUT_CH), lambda b, i: (0, 0)),          # weight codes
            pl.BlockSpec((1, OUT_CH), lambda b, i: (0, 0)),          # dequantized bias
        ],
        out_specs=[
            pl.BlockSpec((1, tm, OUT_CH), lambda b, i: (b, i, 0)),
            pl.BlockSpec((1, 1, 8, 128), lambda b, i: (b, i, 0, 0)),
        ],
        compiler_params=pltpu.CompilerParams(
            dimension_semantics=("parallel", "parallel")),
    )(scales_a, patches, w_mat, b_deq)

    # --- tiny finalize: global output activation scale ---
    # TODO(synk): a trained/calibrated brevitas Int8ActPerTensorFloat uses a fixed scale
    # in eval mode; with a fixed s_out the requant fuses into pass 1 and pass 2 vanishes.
    s_out = jnp.maximum(jnp.max(amax), EPS) / 127.0
    scales_b = jnp.stack([1.0 / s_out, s_out]).astype(jnp.float32)

    # Pass 2: output re-quant + fused transpose; writes directly in channel-major
    # (NCHW) layout with an unpadded last dim (boundary block store is masked).
    y_q = pl.pallas_call(
        _requant_transpose_kernel,
        out_shape=jax.ShapeDtypeStruct((n, OUT_CH, hw), jnp.float32),
        grid=(n, num_tiles),
        in_specs=[
            pl.BlockSpec(memory_space=pltpu.MemorySpace.SMEM),
            pl.BlockSpec((1, tm, OUT_CH), lambda b, i: (b, i, 0)),
        ],
        out_specs=pl.BlockSpec((1, OUT_CH, tm), lambda b, i: (b, 0, i)),
        compiler_params=pltpu.CompilerParams(
            dimension_semantics=("parallel", "parallel")),
    )(scales_b, y_raw)

    # free reshape: (N, OUT_CH, OH*OW) -> (N, OUT_CH, OH, OW); no transpose, no slice
    return y_q.reshape(n, OUT_CH, oh, ow)


def _reference(x, weight, bias):
    # Pure-JAX reference with identical quantization math (sanity check only).
    n, c, h, w = x.shape
    oh, ow = h - KH + 1, w - KW + 1
    k = c * KH * KW
    s_in = jnp.maximum(jnp.max(jnp.abs(x)), EPS) / 127.0
    s_w = jnp.maximum(jnp.max(jnp.abs(weight)), EPS) / 7.0
    s_comb = s_in * s_w
    x_nhwc = x.transpose(0, 2, 3, 1)
    cols = [x_nhwc[:, dh:dh + oh, dw:dw + ow, :]
            for dh in range(KH) for dw in range(KW)]
    p = jnp.concatenate(cols, axis=-1).reshape(n * oh * ow, k)
    p_codes = jnp.clip(jnp.round(p * (1.0 / s_in)), -128.0, 127.0)
    w_codes = jnp.clip(jnp.round(weight / s_w), -8.0, 7.0)
    w_mat = w_codes.transpose(2, 3, 1, 0).reshape(k, OUT_CH)
    acc = jnp.dot(p_codes, w_mat, preferred_element_type=jnp.float32)
    b_codes = jnp.round(bias.reshape(1, OUT_CH) * (1.0 / s_comb))
    y = s_comb * (acc + b_codes)
    s_out = jnp.maximum(jnp.max(jnp.abs(y)), EPS) / 127.0
    y = jnp.clip(jnp.round(y * (1.0 / s_out)), -128.0, 127.0) * s_out
    return y.reshape(n, oh, ow, OUT_CH).transpose(0, 3, 1, 2)


if __name__ == "__main__":
    # Small test shapes consistent with the module (module uses IMG_SIZE=128, BATCH=1;
    # the code path is identical, larger sizes just add more M tiles).
    BATCH_SIZE = 2
    IMG_SIZE = 32

    key = jax.random.PRNGKey(0)
    kx, kw_, kb = jax.random.split(key, 3)
    x = jax.random.normal(kx, (BATCH_SIZE, IN_CH, IMG_SIZE, IMG_SIZE), jnp.float32)
    # Deterministic parameter init (PyTorch-conv-like uniform fan-in bound)
    fan_in = IN_CH * KH * KW
    bound = 1.0 / (fan_in ** 0.5)
    weight = jax.random.uniform(kw_, (OUT_CH, IN_CH, KH, KW), jnp.float32,
                                minval=-bound, maxval=bound)
    bias = jax.random.uniform(kb, (OUT_CH,), jnp.float32, minval=-bound, maxval=bound)

    y = jax.jit(quant_conv_forward)(x, weight, bias)
    jax.block_until_ready(y)
    assert y.shape == (BATCH_SIZE, OUT_CH, IMG_SIZE - 2, IMG_SIZE - 2), y.shape

    y_ref = _reference(x, weight, bias)
    assert jnp.allclose(y, y_ref, rtol=5e-3, atol=5e-3), (
        "max abs diff = %f" % float(jnp.max(jnp.abs(y - y_ref))))

    print("KERNEL_OK")
</pallas_src>

<mosaic_0001>
module attributes {stable_mosaic.version = 11 : i64} {
  func.func @_conv_quant_kernel(%arg0: i32, %arg1: i32, %arg2: memref<2xf32, #tpu.memory_space<smem>>, %arg3: memref<1x1024x27xf32, #tpu.memory_space<vmem>>, %arg4: memref<27x128xbf16, #tpu.memory_space<vmem>>, %arg5: memref<1x128xf32, #tpu.memory_space<vmem>>, %arg6: memref<1x1024x128xf32, #tpu.memory_space<vmem>>, %arg7: memref<1x1x8x128xf32, #tpu.memory_space<vmem>>) attributes {dimension_semantics = [#tpu.dimension_semantics<parallel>, #tpu.dimension_semantics<parallel>], iteration_bounds = array<i64: 2, 1>, scalar_prefetch = 0 : i64, scratch_operands = 0 : i64, tpu.core_type = #tpu.core_type<tc>, window_params = [{transform_indices = @transform_0, window_bounds = array<i64: 2>}, {transform_indices = @transform_1, window_bounds = array<i64: 1, 1024, 27>}, {pipeline_mode = #tpu.pipeline_mode<synchronous>, transform_indices = @transform_2, window_bounds = array<i64: 27, 128>}, {pipeline_mode = #tpu.pipeline_mode<synchronous>, transform_indices = @transform_3, window_bounds = array<i64: 1, 128>}, {transform_indices = @transform_4, window_bounds = array<i64: 1, 1024, 128>}, {transform_indices = @transform_5, window_bounds = array<i64: 1, 1, 8, 128>}]} {
    %c0 = arith.constant 0 : index
    %0 = memref.load %arg2[%c0] : memref<2xf32, #tpu.memory_space<smem>>
    %c1 = arith.constant 1 : index
    %1 = memref.load %arg2[%c1] : memref<2xf32, #tpu.memory_space<smem>>
    %c0_0 = arith.constant 0 : index
    %c0_1 = arith.constant 0 : index
    %c0_2 = arith.constant 0 : index
    %2 = vector.load %arg3[%c0_0, %c0_1, %c0_2] : memref<1x1024x27xf32, #tpu.memory_space<vmem>>, vector<1x1024x27xf32>
    %3 = vector.shape_cast %2 : vector<1x1024x27xf32> to vector<1024x27xf32>
    %4 = vector.broadcast %0 : f32 to vector<1024x27xf32>
    %5 = arith.mulf %3, %4 : vector<1024x27xf32>
    %6 = math.roundeven %5 : vector<1024x27xf32>
    %cst = arith.constant -1.280000e+02 : f32
    %cst_3 = arith.constant 1.270000e+02 : f32
    %7 = vector.broadcast %cst : f32 to vector<1024x27xf32>
    %8 = arith.maximumf %7, %6 : vector<1024x27xf32>
    %9 = vector.broadcast %cst_3 : f32 to vector<1024x27xf32>
    %10 = arith.minimumf %9, %8 : vector<1024x27xf32>
    %11 = arith.truncf %10 : vector<1024x27xf32> to vector<1024x27xbf16>
    %c0_4 = arith.constant 0 : index
    %c0_5 = arith.constant 0 : index
    %12 = vector.load %arg4[%c0_4, %c0_5] : memref<27x128xbf16, #tpu.memory_space<vmem>>, vector<27x128xbf16>
    %cst_6 = arith.constant dense<0.000000e+00> : vector<1024x128xf32>
    %13 = tpu.matmul %11, %12, %cst_6 {dimension_numbers = #tpu.dot_dimension_numbers<[1], [0], [0], [1], [0, 0, 1, 1], [], []>} : vector<1024x27xbf16>, vector<27x128xbf16>, vector<1024x128xf32> -> vector<1024x128xf32>
    %14 = vector.broadcast %1 : f32 to vector<1024x128xf32>
    %15 = arith.mulf %13, %14 : vector<1024x128xf32>
    %c0_7 = arith.constant 0 : index
    %c0_8 = arith.constant 0 : index
    %16 = vector.load %arg5[%c0_7, %c0_8] : memref<1x128xf32, #tpu.memory_space<vmem>>, vector<1x128xf32>
    %17 = vector.broadcast %16 : vector<1x128xf32> to vector<1024x128xf32>
    %18 = arith.addf %15, %17 : vector<1024x128xf32>
    %c0_9 = arith.constant 0 : index
    %c0_10 = arith.constant 0 : index
    %c0_11 = arith.constant 0 : index
    %19 = vector.load %arg6[%c0_9, %c0_10, %c0_11] : memref<1x1024x128xf32, #tpu.memory_space<vmem>>, vector<1x1024x128xf32>
    %20 = vector.shape_cast %19 : vector<1x1024x128xf32> to vector<1024x128xf32>
    %21 = vector.shape_cast %18 : vector<1024x128xf32> to vector<1x1024x128xf32>
    tpu.vector_store %arg6[%c0_9, %c0_10, %c0_11], %21 {strides = array<i32>} : memref<1x1024x128xf32, #tpu.memory_space<vmem>>, vector<1x1024x128xf32>,
    %22 = math.absf %18 : vector<1024x128xf32>
    %cst_12 = arith.constant dense<0xFF800000> : vector<128xf32>
    %23 = vector.multi_reduction <maximumf>, %22, %cst_12 [0] : vector<1024x128xf32> to vector<128xf32>
    %24 = vector.shape_cast %23 : vector<128xf32> to vector<1x128xf32>
    %25 = vector.shape_cast %24 : vector<1x128xf32> to vector<1x1x1x128xf32>
    %26 = vector.broadcast %25 : vector<1x1x1x128xf32> to vector<1x1x8x128xf32>
    %c0_13 = arith.constant 0 : index
    %c0_14 = arith.constant 0 : index
    %c0_15 = arith.constant 0 : index
    %c0_16 = arith.constant 0 : index
    %27 = vector.load %arg7[%c0_13, %c0_14, %c0_15, %c0_16] : memref<1x1x8x128xf32, #tpu.memory_space<vmem>>, vector<1x1x8x128xf32>
    tpu.vector_store %arg7[%c0_13, %c0_14, %c0_15, %c0_16], %26 {strides = array<i32>} : memref<1x1x8x128xf32, #tpu.memory_space<vmem>>, vector<1x1x8x128xf32>,
    return
  }
  func.func @transform_0(%arg0: i32, %arg1: i32) -> i32 {
    %c0_i32 = arith.constant 0 : i32
    %c0_i32_0 = arith.constant 0 : i32
    return %c0_i32 : i32
  }
  func.func @transform_1(%arg0: i32, %arg1: i32) -> (i32, i32, i32) {
    %c0_i32 = arith.constant 0 : i32
    %c0_i32_0 = arith.constant 0 : i32
    return %arg0, %arg1, %c0_i32 : i32, i32, i32
  }
  func.func @transform_2(%arg0: i32, %arg1: i32) -> (i32, i32) {
    %c0_i32 = arith.constant 0 : i32
    %c0_i32_0 = arith.constant 0 : i32
    %c0_i32_1 = arith.constant 0 : i32
    return %c0_i32, %c0_i32_0 : i32, i32
  }
  func.func @transform_3(%arg0: i32, %arg1: i32) -> (i32, i32) {
    %c0_i32 = arith.constant 0 : i32
    %c0_i32_0 = arith.constant 0 : i32
    %c0_i32_1 = arith.constant 0 : i32
    return %c0_i32, %c0_i32_0 : i32, i32
  }
  func.func @transform_4(%arg0: i32, %arg1: i32) -> (i32, i32, i32) {
    %c0_i32 = arith.constant 0 : i32
    %c0_i32_0 = arith.constant 0 : i32
    return %arg0, %arg1, %c0_i32 : i32, i32, i32
  }
  func.func @transform_5(%arg0: i32, %arg1: i32) -> (i32, i32, i32, i32) {
    %c0_i32 = arith.constant 0 : i32
    %c0_i32_0 = arith.constant 0 : i32
    %c0_i32_1 = arith.constant 0 : i32
    return %arg0, %arg1, %c0_i32, %c0_i32_0 : i32, i32, i32, i32
  }
}

module attributes {stable_mosaic.version = 11 : i64} {
  func.func @_requant_transpose_kernel(%arg0: i32, %arg1: i32, %arg2: memref<2xf32, #tpu.memory_space<smem>>, %arg3: memref<1x1024x128xf32, #tpu.memory_space<vmem>>, %arg4: memref<1x128x1024xf32, #tpu.memory_space<vmem>>) attributes {dimension_semantics = [#tpu.dimension_semantics<parallel>, #tpu.dimension_semantics<parallel>], iteration_bounds = array<i64: 2, 1>, scalar_prefetch = 0 : i64, scratch_operands = 0 : i64, tpu.core_type = #tpu.core_type<tc>, window_params = [{transform_indices = @transform_0, window_bounds = array<i64: 2>}, {transform_indices = @transform_1, window_bounds = array<i64: 1, 1024, 128>}, {transform_indices = @transform_2, window_bounds = array<i64: 1, 128, 1024>}]} {
    %c0 = arith.constant 0 : index
    %0 = memref.load %arg2[%c0] : memref<2xf32, #tpu.memory_space<smem>>
    %c1 = arith.constant 1 : index
    %1 = memref.load %arg2[%c1] : memref<2xf32, #tpu.memory_space<smem>>
    %c0_0 = arith.constant 0 : index
    %c0_1 = arith.constant 0 : index
    %c0_2 = arith.constant 0 : index
    %2 = vector.load %arg3[%c0_0, %c0_1, %c0_2] : memref<1x1024x128xf32, #tpu.memory_space<vmem>>, vector<1x1024x128xf32>
    %3 = vector.shape_cast %2 : vector<1x1024x128xf32> to vector<1024x128xf32>
    %4 = vector.broadcast %0 : f32 to vector<1024x128xf32>
    %5 = arith.mulf %3, %4 : vector<1024x128xf32>
    %6 = math.roundeven %5 : vector<1024x128xf32>
    %cst = arith.constant -1.280000e+02 : f32
    %cst_3 = arith.constant 1.270000e+02 : f32
    %7 = vector.broadcast %cst : f32 to vector<1024x128xf32>
    %8 = arith.maximumf %7, %6 : vector<1024x128xf32>
    %9 = vector.broadcast %cst_3 : f32 to vector<1024x128xf32>
    %10 = arith.minimumf %9, %8 : vector<1024x128xf32>
    %11 = vector.broadcast %1 : f32 to vector<1024x128xf32>
    %12 = arith.mulf %10, %11 : vector<1024x128xf32>
    %13 = tpu.transpose %12, [1, 0] : vector<1024x128xf32> -> vector<128x1024xf32>
    %c0_4 = arith.constant 0 : index
    %c0_5 = arith.constant 0 : index
    %c0_6 = arith.constant 0 : index
    %14 = vector.load %arg4[%c0_4, %c0_5, %c0_6] : memref<1x128x1024xf32, #tpu.memory_space<vmem>>, vector<1x128x1024xf32>
    %15 = vector.shape_cast %14 : vector<1x128x1024xf32> to vector<128x1024xf32>
    %16 = vector.shape_cast %13 : vector<128x1024xf32> to vector<1x128x1024xf32>
    tpu.vector_store %arg4[%c0_4, %c0_5, %c0_6], %16 {strides = array<i32>} : memref<1x128x1024xf32, #tpu.memory_space<vmem>>, vector<1x128x1024xf32>,
    return
  }
  func.func @transform_0(%arg0: i32, %arg1: i32) -> i32 {
    %c0_i32 = arith.constant 0 : i32
    %c0_i32_0 = arith.constant 0 : i32
    return %c0_i32 : i32
  }
  func.func @transform_1(%arg0: i32, %arg1: i32) -> (i32, i32, i32) {
    %c0_i32 = arith.constant 0 : i32
    %c0_i32_0 = arith.constant 0 : i32
    return %arg0, %arg1, %c0_i32 : i32, i32, i32
  }
  func.func @transform_2(%arg0: i32, %arg1: i32) -> (i32, i32, i32) {
    %c0_i32 = arith.constant 0 : i32
    %c0_i32_0 = arith.constant 0 : i32
    return %arg0, %c0_i32, %arg1 : i32, i32, i32
  }
}

</mosaic_0001>

<llo_original>
// kernel: quant_conv_forward.3
$region0: #{quant_conv_forward.3}
  #allocation0 [shape = 'u32[]', space=smem, size = 0x4, offset = 0x4, fixed_abs, tag = 'smem constant byte address 0x4 - core index']
  #allocation1 [shape = 'u32[144,128]{1,0:T(1,128)}', space=vmem, size = 0x12000, scoped, tag = 'internal scratch']
  %s0 = inlined_call_operand.vmem [shape: f32[2], index: 0, kind: input, shape index: {}]
  %s1 = inlined_call_operand.vmem [shape: f32[2,1024,128], index: 1, kind: input, shape index: {}]
  %s2 = inlined_call_operand.vmem [shape: f32[2,128,900], index: 2, kind: output, shape index: {}]
  %s3 = sld [smem:[#allocation0]]
  $region45: #{quant_conv_forward.3} parent=0
    _
  %s5 = ssub.s32 1, %s3
  %s6 = scalar_select 0, %s5, %s3
  $region1: #{quant_conv_forward.3} parent=0
    #allocation2 [shape = 'u8[512]{0}', space=smem, size = 0x200, scoped, tag = 'input window, operand 0, single buffered']
    #allocation3 [shape = 's32[2]{0}', space=sflag, size = 0x8, scoped, tag = 'scoped memory for quant_conv_forward.3']
    %7 = vsyncpa [#allocation3], 0
    loop: start=0, step=1, limit=4
    $region2: #{quant_conv_forward.3} parent=1 // loop_pre_header
      _
    $region3: #{quant_conv_forward.3} parent=1 // loop_header
      %s9 = sphi 0, %s13
      %p10 = scmp.ge.s32.totalorder %s9, 4
      %s16 = sphi 0, %s28
      %s17 = sphi 0, %s24
      %s18 = sphi 0, %s16
      %s19 = sphi 0, %s17
      %s20 = sphi 0, %s18
      %s21 = sphi 0, %s19
      %s29 = sphi 0, %s29
      %s31 = sphi 0, %s29
      %s32 = sphi 0, %s31
      %s46 = sphi 0, %s32
      %s54 = sphi 0, %s56
      %s57 = sphi 0, %s54
      %s58 = sphi 0, %s57
      %s74 = sphi 0, %s58
      %s82 = sphi 0, %s84
      %s85 = sphi 0, %s82
      %s86 = sphi 0, %s85
      %s102 = sphi 0, %s86
    $region4: #{quant_conv_forward.3} parent=1 // loop_header_branch
      %12 = sbr.rel (%p10) target = $region8
    $region5: #{quant_conv_forward.3} parent=1 // loop_body
      %s14 = ssub.s32 %s9, 1
      %s15 = ssub.s32 %s9, 2
      %s22 = sadd.s32 1, %s17
      %p23 = scmp.ge.s32.totalorder %s22, 1
      %s24 = scalar_select %p23, 0, %s22
      %s25 = sadd.s32 1, %s16
      %s26 = scalar_select %p23, %s25, %s16
      %p27 = scmp.ge.s32.totalorder %s26, 2
      %s28 = scalar_select %p27, 0, %s26
      %s30 = sadd.s32 %s29, 1
      %p33 = scmp.eq.s32.totalorder %s9, 1
      %p34 = scmp.ne.s32.totalorder %s29, %s31
      %p35 = scmp.eq.s32.totalorder %s9, 0
      %p36 = por %p34, %p35
      %p37 = scmp.ne.s32.totalorder %s29, %s31
      %p38 = scmp.eq.s32.totalorder %s14, 1
      %p39 = por %p37, %p38
      %p40 = scmp.ne.s32.totalorder %s31, %s32
      %p41 = scmp.eq.s32.totalorder %s14, 0
      %p42 = por %p40, %p41
      %p43 = scmp.ne.s32.totalorder %s31, %s32
      %p44 = scmp.eq.s32.totalorder %s15, 1
      %p45 = por %p43, %p44
      %p47 = scmp.ne.s32.totalorder %s32, %s46
      %p48 = scmp.eq.s32.totalorder %s15, 0
      %p49 = por %p47, %p48
      %s50 = ssub.s32 %s16, %s28
      %s51 = ssub.s32 %s17, %s24
      %s52 = sor.u32 %s50, %s51
      %p53 = scmp.eq.s32.totalorder %s52, 0
      %s55 = sadd.s32 %s54, 1
      %s56 = scalar_select %p53, %s54, %s55
      %p59 = pneg %p53
      %p60 = scmp.eq.s32.totalorder %s9, 1
      %p61 = por %p59, %p60
      %p62 = scmp.ne.s32.totalorder %s54, %s57
      %p63 = scmp.eq.s32.totalorder %s9, 0
      %p64 = por %p62, %p63
      %p65 = scmp.ne.s32.totalorder %s54, %s57
      %p66 = scmp.eq.s32.totalorder %s14, 1
      %p67 = por %p65, %p66
      %p68 = scmp.ne.s32.totalorder %s57, %s58
      %p69 = scmp.eq.s32.totalorder %s14, 0
      %p70 = por %p68, %p69
      %p71 = scmp.ne.s32.totalorder %s57, %s58
      %p72 = scmp.eq.s32.totalorder %s15, 1
      %p73 = por %p71, %p72
      %p75 = scmp.ne.s32.totalorder %s58, %s74
      %p76 = scmp.eq.s32.totalorder %s15, 0
      %p77 = por %p75, %p76
      %s78 = ssub.s32 %s16, %s28
      %s79 = ssub.s32 %s17, %s24
      %s80 = sor.u32 %s78, %s79
      %p81 = scmp.eq.s32.totalorder %s80, 0
      %s83 = sadd.s32 %s82, 1
      %s84 = scalar_select %p81, %s82, %s83
      %p87 = pneg %p81
      %p88 = scmp.eq.s32.totalorder %s9, 1
      %p89 = por %p87, %p88
      %p90 = scmp.ne.s32.totalorder %s82, %s85
      %p91 = scmp.eq.s32.totalorder %s9, 0
      %p92 = por %p90, %p91
      %p93 = scmp.ne.s32.totalorder %s82, %s85
      %p94 = scmp.eq.s32.totalorder %s14, 1
      %p95 = por %p93, %p94
      %p96 = scmp.ne.s32.totalorder %s85, %s86
      %p97 = scmp.eq.s32.totalorder %s14, 0
      %p98 = por %p96, %p97
      %p99 = scmp.ne.s32.totalorder %s85, %s86
      %p100 = scmp.eq.s32.totalorder %s15, 1
      %p101 = por %p99, %p100
      %p103 = scmp.ne.s32.totalorder %s86, %s102
      %p104 = scmp.eq.s32.totalorder %s15, 0
      %p105 = por %p103, %p104
      %p106 = scmp.le.s32.totalorder 1, %s9
      %p107 = scmp.lt.s32.totalorder %s9, 3
      %p108 = pnand %p106, %p107
      %p109 = pneg %p108
      // Predicated region
      $region9: #{quant_conv_forward.3} parent=5 // pred_check
        _
      $region10: #{quant_conv_forward.3} parent=5 // pred_check_branch
        %111 = sbr.rel (%p108) target = $region12
      $region11: #{quant_conv_forward.3} parent=5 // pred_region
        %s112 = ssub.s32 %s9, 1
        // Predicated region
        $region13: #{quant_conv_forward.3} parent=11 // pred_check
          %p113 = pneg %p42
        $region14: #{quant_conv_forward.3} parent=11 // pred_check_branch
          %115 = sbr.rel (%p113) target = $region16
        $region15: #{quant_conv_forward.3} parent=11 // pred_region
          %s117 = ssub.s32 16, 16
          %118 = vsyncadd [#allocation3], %s117
          %s120 = sshll.u32 %s0, 4
          %s121 = int_to_ptr.vmem [resolvable:$true] %s120
          %123 = dma.vmem_to_smem %s121, 16, [#allocation2], [#allocation3]
        $region16: #{quant_conv_forward.3} parent=11 // pred_fallthru
          _
      $region12: #{quant_conv_forward.3} parent=5 // pred_fallthru
        _
      %p124 = scmp.lt.s32.totalorder %s9, 2
      // Predicated region
      $region17: #{quant_conv_forward.3} parent=5 // pred_check
        %p125 = pneg %p124
      $region18: #{quant_conv_forward.3} parent=5 // pred_check_branch
        %127 = sbr.rel (%p125) target = $region20
      $region19: #{quant_conv_forward.3} parent=5 // pred_region
        // Predicated region
        $region21: #{quant_conv_forward.3} parent=19 // pred_check
          %p128 = pneg %p64
        $region22: #{quant_conv_forward.3} parent=19 // pred_check_branch
          %130 = sbr.rel (%p128) target = $region24
        $region23: #{quant_conv_forward.3} parent=19 // pred_region
          %s131 = smul.u32 128, %s17
          %p132 = scmp.lt.s32.totalorder %s16, 1
          %s133 = scalar_select %p132, %s16, 1
          %p134 = scmp.lt.s32.totalorder %s131, 127
          %s135 = scalar_select %p134, %s131, 127
          %s136 = smul.addr %s133, 128
          %s137 = sadd.s32 %s135, %s136
          %s138 = smul.addr %s137, 8
          %s139 = scalar_lea.vmem %s1, %s138
          %s140 = smul.u32 128, %s17
        $region24: #{quant_conv_forward.3} parent=19 // pred_fallthru
          _
      $region20: #{quant_conv_forward.3} parent=5 // pred_fallthru
        _
      %p141 = scmp.le.s32.totalorder 1, %s9
      %p142 = scmp.lt.s32.totalorder %s9, 3
      %p143 = pnand %p141, %p142
      %p144 = pneg %p143
      // Predicated region
      $region25: #{quant_conv_forward.3} parent=5 // pred_check
        _
      $region26: #{quant_conv_forward.3} parent=5 // pred_check_branch
        %146 = sbr.rel (%p143) target = $region28
      $region27: #{quant_conv_forward.3} parent=5 // pred_region
        %s147 = ssub.s32 %s9, 1
        // Predicated region
        $region29: #{quant_conv_forward.3} parent=27 // pred_check
          %p148 = pneg %p42
        $region30: #{quant_conv_forward.3} parent=27 // pred_check_branch
          %150 = sbr.rel (%p148) target = $region32
        $region31: #{quant_conv_forward.3} parent=27 // pred_region
          %151 = dma.done [#allocation3], 16
        $region32: #{quant_conv_forward.3} parent=27 // pred_fallthru
          _
        %152 = sfence
        %p153 = pneg %p42
        %p154 = pneg %p39
        %s155 = smul.u32 128, %s19
        %p156 = scmp.lt.s32.totalorder %s18, 1
        %s157 = scalar_select %p156, %s18, 1
        %p158 = scmp.lt.s32.totalorder %s155, 127
        %s159 = scalar_select %p158, %s155, 127
        %s160 = smul.addr %s157, 128
        %s161 = sadd.s32 %s159, %s160
        %s162 = smul.addr %s161, 8
        %s163 = scalar_lea.vmem %s1, %s162
        %p164 = pneg %p70
        %p165 = pneg %p67
        %p166 = pneg %p98
        %p167 = pneg %p95
        %s168 = smul.u32 8, %s19
        %p169 = scmp.lt.s32.totalorder %s18, 1
        %s170 = scalar_select %p169, %s18, 1
        %p171 = scmp.lt.s32.totalorder %s168, 7
        %s172 = scalar_select %p171, %s168, 7
        %s173 = smul.addr %s170, 128
        %s174 = sadd.s32 %s172, %s173
        %s175 = smul.addr %s174, 8
        %s176 = scalar_lea.vmem %s2, %s175
        %s177 = smul.u32 128, %s19
        %p178 = scmp.lt.s32.totalorder %s18, 1
        %s179 = scalar_select %p178, %s18, 1
        %p180 = scmp.lt.s32.totalorder %s177, 127
        %s181 = scalar_select %p180, %s177, 127
        %s182 = smul.addr %s179, 128
        %s183 = sadd.s32 %s181, %s182
        %s184 = smul.addr %s183, 8
        %s185 = scalar_lea.vmem %s1, %s184
        %s186 = smul.u32 128, %s19
        %s187 = smul.u32 8, %s19
        %p188 = scmp.lt.s32.totalorder %s18, 1
        %s189 = scalar_select %p188, %s18, 1
        %p190 = scmp.lt.s32.totalorder %s187, 7
        %s191 = scalar_select %p190, %s187, 7
        %s192 = smul.addr %s189, 128
        %s193 = sadd.s32 %s191, %s192
        %s194 = smul.addr %s193, 8
        %s195 = scalar_lea.vmem %s2, %s194
        %s196 = smul.u32 8, %s19
        %s197 = sld [smem:[#allocation2]]
        %s198 = sld [smem:[#allocation2 + $0x1]]
        %v199 = vld [vmem:[%s185] sm:$0xff]
        %v200 = vld [vmem:[%s185 + $0x8] sm:$0xff]
        %v201 = vld [vmem:[%s185 + $0x10] sm:$0xff]
        %v202 = vld [vmem:[%s185 + $0x18] sm:$0xff]
        %v203 = vld [vmem:[%s185 + $0x20] sm:$0xff]
        %v204 = vld [vmem:[%s185 + $0x28] sm:$0xff]
        %v205 = vld [vmem:[%s185 + $0x30] sm:$0xff]
        %v206 = vld [vmem:[%s185 + $0x38] sm:$0xff]
        %v207 = vld [vmem:[%s185 + $0x40] sm:$0xff]
        %v208 = vld [vmem:[%s185 + $0x48] sm:$0xff]
        %v209 = vld [vmem:[%s185 + $0x50] sm:$0xff]
        %v210 = vld [vmem:[%s185 + $0x58] sm:$0xff]
        %v211 = vld [vmem:[%s185 + $0x60] sm:$0xff]
        %v212 = vld [vmem:[%s185 + $0x68] sm:$0xff]
        %v213 = vld [vmem:[%s185 + $0x70] sm:$0xff]
        %v214 = vld [vmem:[%s185 + $0x78] sm:$0xff]
        %v215 = vld [vmem:[%s185 + $0x80] sm:$0xff]
        %v216 = vld [vmem:[%s185 + $0x88] sm:$0xff]
        %v217 = vld [vmem:[%s185 + $0x90] sm:$0xff]
        %v218 = vld [vmem:[%s185 + $0x98] sm:$0xff]
        %v219 = vld [vmem:[%s185 + $0xa0] sm:$0xff]
        %v220 = vld [vmem:[%s185 + $0xa8] sm:$0xff]
        %v221 = vld [vmem:[%s185 + $0xb0] sm:$0xff]
        %v222 = vld [vmem:[%s185 + $0xb8] sm:$0xff]
        %v223 = vld [vmem:[%s185 + $0xc0] sm:$0xff]
        %v224 = vld [vmem:[%s185 + $0xc8] sm:$0xff]
        %v225 = vld [vmem:[%s185 + $0xd0] sm:$0xff]
        %v226 = vld [vmem:[%s185 + $0xd8] sm:$0xff]
        %v227 = vld [vmem:[%s185 + $0xe0] sm:$0xff]
        %v228 = vld [vmem:[%s185 + $0xe8] sm:$0xff]
        %v229 = vld [vmem:[%s185 + $0xf0] sm:$0xff]
        %v230 = vld [vmem:[%s185 + $0xf8] sm:$0xff]
        %v231 = vld [vmem:[%s185 + $0x100] sm:$0xff]
        %v232 = vld [vmem:[%s185 + $0x108] sm:$0xff]
        %v233 = vld [vmem:[%s185 + $0x110] sm:$0xff]
        %v234 = vld [vmem:[%s185 + $0x118] sm:$0xff]
        %v235 = vld [vmem:[%s185 + $0x120] sm:$0xff]
        %v236 = vld [vmem:[%s185 + $0x128] sm:$0xff]
        %v237 = vld [vmem:[%s185 + $0x130] sm:$0xff]
        %v238 = vld [vmem:[%s185 + $0x138] sm:$0xff]
        %v239 = vld [vmem:[%s185 + $0x140] sm:$0xff]
        %v240 = vld [vmem:[%s185 + $0x148] sm:$0xff]
        %v241 = vld [vmem:[%s185 + $0x150] sm:$0xff]
        %v242 = vld [vmem:[%s185 + $0x158] sm:$0xff]
        %v243 = vld [vmem:[%s185 + $0x160] sm:$0xff]
        %v244 = vld [vmem:[%s185 + $0x168] sm:$0xff]
        %v245 = vld [vmem:[%s185 + $0x170] sm:$0xff]
        %v246 = vld [vmem:[%s185 + $0x178] sm:$0xff]
        %v247 = vld [vmem:[%s185 + $0x180] sm:$0xff]
        %v248 = vld [vmem:[%s185 + $0x188] sm:$0xff]
        %v249 = vld [vmem:[%s185 + $0x190] sm:$0xff]
        %v250 = vld [vmem:[%s185 + $0x198] sm:$0xff]
        %v251 = vld [vmem:[%s185 + $0x1a0] sm:$0xff]
        %v252 = vld [vmem:[%s185 + $0x1a8] sm:$0xff]
        %v253 = vld [vmem:[%s185 + $0x1b0] sm:$0xff]
        %v254 = vld [vmem:[%s185 + $0x1b8] sm:$0xff]
        %v255 = vld [vmem:[%s185 + $0x1c0] sm:$0xff]
        %v256 = vld [vmem:[%s185 + $0x1c8] sm:$0xff]
        %v257 = vld [vmem:[%s185 + $0x1d0] sm:$0xff]
        %v258 = vld [vmem:[%s185 + $0x1d8] sm:$0xff]
        %v259 = vld [vmem:[%s185 + $0x1e0] sm:$0xff]
        %v260 = vld [vmem:[%s185 + $0x1e8] sm:$0xff]
        %v261 = vld [vmem:[%s185 + $0x1f0] sm:$0xff]
        %v262 = vld [vmem:[%s185 + $0x1f8] sm:$0xff]
        %v263 = vld [vmem:[%s185 + $0x200] sm:$0xff]
        %v264 = vld [vmem:[%s185 + $0x208] sm:$0xff]
        %v265 = vld [vmem:[%s185 + $0x210] sm:$0xff]
        %v266 = vld [vmem:[%s185 + $0x218] sm:$0xff]
        %v267 = vld [vmem:[%s185 + $0x220] sm:$0xff]
        %v268 = vld [vmem:[%s185 + $0x228] sm:$0xff]
        %v269 = vld [vmem:[%s185 + $0x230] sm:$0xff]
        %v270 = vld [vmem:[%s185 + $0x238] sm:$0xff]
        %v271 = vld [vmem:[%s185 + $0x240] sm:$0xff]
        %v272 = vld [vmem:[%s185 + $0x248] sm:$0xff]
        %v273 = vld [vmem:[%s185 + $0x250] sm:$0xff]
        %v274 = vld [vmem:[%s185 + $0x258] sm:$0xff]
        %v275 = vld [vmem:[%s185 + $0x260] sm:$0xff]
        %v276 = vld [vmem:[%s185 + $0x268] sm:$0xff]
        %v277 = vld [vmem:[%s185 + $0x270] sm:$0xff]
        %v278 = vld [vmem:[%s185 + $0x278] sm:$0xff]
        %v279 = vld [vmem:[%s185 + $0x280] sm:$0xff]
        %v280 = vld [vmem:[%s185 + $0x288] sm:$0xff]
        %v281 = vld [vmem:[%s185 + $0x290] sm:$0xff]
        %v282 = vld [vmem:[%s185 + $0x298] sm:$0xff]
        %v283 = vld [vmem:[%s185 + $0x2a0] sm:$0xff]
        %v284 = vld [vmem:[%s185 + $0x2a8] sm:$0xff]
        %v285 = vld [vmem:[%s185 + $0x2b0] sm:$0xff]
        %v286 = vld [vmem:[%s185 + $0x2b8] sm:$0xff]
        %v287 = vld [vmem:[%s185 + $0x2c0] sm:$0xff]
        %v288 = vld [vmem:[%s185 + $0x2c8] sm:$0xff]
        %v289 = vld [vmem:[%s185 + $0x2d0] sm:$0xff]
        %v290 = vld [vmem:[%s185 + $0x2d8] sm:$0xff]
        %v291 = vld [vmem:[%s185 + $0x2e0] sm:$0xff]
        %v292 = vld [vmem:[%s185 + $0x2e8] sm:$0xff]
        %v293 = vld [vmem:[%s185 + $0x2f0] sm:$0xff]
        %v294 = vld [vmem:[%s185 + $0x2f8] sm:$0xff]
        %v295 = vld [vmem:[%s185 + $0x300] sm:$0xff]
        %v296 = vld [vmem:[%s185 + $0x308] sm:$0xff]
        %v297 = vld [vmem:[%s185 + $0x310] sm:$0xff]
        %v298 = vld [vmem:[%s185 + $0x318] sm:$0xff]
        %v299 = vld [vmem:[%s185 + $0x320] sm:$0xff]
        %v300 = vld [vmem:[%s185 + $0x328] sm:$0xff]
        %v301 = vld [vmem:[%s185 + $0x330] sm:$0xff]
        %v302 = vld [vmem:[%s185 + $0x338] sm:$0xff]
        %v303 = vld [vmem:[%s185 + $0x340] sm:$0xff]
        %v304 = vld [vmem:[%s185 + $0x348] sm:$0xff]
        %v305 = vld [vmem:[%s185 + $0x350] sm:$0xff]
        %v306 = vld [vmem:[%s185 + $0x358] sm:$0xff]
        %v307 = vld [vmem:[%s185 + $0x360] sm:$0xff]
        %v308 = vld [vmem:[%s185 + $0x368] sm:$0xff]
        %v309 = vld [vmem:[%s185 + $0x370] sm:$0xff]
        %v310 = vld [vmem:[%s185 + $0x378] sm:$0xff]
        %v311 = vld [vmem:[%s185 + $0x380] sm:$0xff]
        %v312 = vld [vmem:[%s185 + $0x388] sm:$0xff]
        %v313 = vld [vmem:[%s185 + $0x390] sm:$0xff]
        %v314 = vld [vmem:[%s185 + $0x398] sm:$0xff]
        %v315 = vld [vmem:[%s185 + $0x3a0] sm:$0xff]
        %v316 = vld [vmem:[%s185 + $0x3a8] sm:$0xff]
        %v317 = vld [vmem:[%s185 + $0x3b0] sm:$0xff]
        %v318 = vld [vmem:[%s185 + $0x3b8] sm:$0xff]
        %v319 = vld [vmem:[%s185 + $0x3c0] sm:$0xff]
        %v320 = vld [vmem:[%s185 + $0x3c8] sm:$0xff]
        %v321 = vld [vmem:[%s185 + $0x3d0] sm:$0xff]
        %v322 = vld [vmem:[%s185 + $0x3d8] sm:$0xff]
        %v323 = vld [vmem:[%s185 + $0x3e0] sm:$0xff]
        %v324 = vld [vmem:[%s185 + $0x3e8] sm:$0xff]
        %v325 = vld [vmem:[%s185 + $0x3f0] sm:$0xff]
        %v326 = vld [vmem:[%s185 + $0x3f8] sm:$0xff]
        %v327 = vstv %s197
        %v328 = vmul.f32 %v199, %v327
        %v329 = vmul.f32 %v200, %v327
        %v330 = vmul.f32 %v201, %v327
        %v331 = vmul.f32 %v202, %v327
        %v332 = vmul.f32 %v203, %v327
        %v333 = vmul.f32 %v204, %v327
        %v334 = vmul.f32 %v205, %v327
        %v335 = vmul.f32 %v206, %v327
        %v336 = vmul.f32 %v207, %v327
        %v337 = vmul.f32 %v208, %v327
        %v338 = vmul.f32 %v209, %v327
        %v339 = vmul.f32 %v210, %v327
        %v340 = vmul.f32 %v211, %v327
        %v341 = vmul.f32 %v212, %v327
        %v342 = vmul.f32 %v213, %v327
        %v343 = vmul.f32 %v214, %v327
        %v344 = vmul.f32 %v215, %v327
        %v345 = vmul.f32 %v216, %v327
        %v346 = vmul.f32 %v217, %v327
        %v347 = vmul.f32 %v218, %v327
        %v348 = vmul.f32 %v219, %v327
        %v349 = vmul.f32 %v220, %v327
        %v350 = vmul.f32 %v221, %v327
        %v351 = vmul.f32 %v222, %v327
        %v352 = vmul.f32 %v223, %v327
        %v353 = vmul.f32 %v224, %v327
        %v354 = vmul.f32 %v225, %v327
        %v355 = vmul.f32 %v226, %v327
        %v356 = vmul.f32 %v227, %v327
        %v357 = vmul.f32 %v228, %v327
        %v358 = vmul.f32 %v229, %v327
        %v359 = vmul.f32 %v230, %v327
        %v360 = vmul.f32 %v231, %v327
        %v361 = vmul.f32 %v232, %v327
        %v362 = vmul.f32 %v233, %v327
        %v363 = vmul.f32 %v234, %v327
        %v364 = vmul.f32 %v235, %v327
        %v365 = vmul.f32 %v236, %v327
        %v366 = vmul.f32 %v237, %v327
        %v367 = vmul.f32 %v238, %v327
        %v368 = vmul.f32 %v239, %v327
        %v369 = vmul.f32 %v240, %v327
        %v370 = vmul.f32 %v241, %v327
        %v371 = vmul.f32 %v242, %v327
        %v372 = vmul.f32 %v243, %v327
        %v373 = vmul.f32 %v244, %v327
        %v374 = vmul.f32 %v245, %v327
        %v375 = vmul.f32 %v246, %v327
        %v376 = vmul.f32 %v247, %v327
        %v377 = vmul.f32 %v248, %v327
        %v378 = vmul.f32 %v249, %v327
        %v379 = vmul.f32 %v250, %v327
        %v380 = vmul.f32 %v251, %v327
        %v381 = vmul.f32 %v252, %v327
        %v382 = vmul.f32 %v253, %v327
        %v383 = vmul.f32 %v254, %v327
        %v384 = vmul.f32 %v255, %v327
        %v385 = vmul.f32 %v256, %v327
        %v386 = vmul.f32 %v257, %v327
        %v387 = vmul.f32 %v258, %v327
        %v388 = vmul.f32 %v259, %v327
        %v389 = vmul.f32 %v260, %v327
        %v390 = vmul.f32 %v261, %v327
        %v391 = vmul.f32 %v262, %v327
        %v392 = vmul.f32 %v263, %v327
        %v393 = vmul.f32 %v264, %v327
        %v394 = vmul.f32 %v265, %v327
        %v395 = vmul.f32 %v266, %v327
        %v396 = vmul.f32 %v267, %v327
        %v397 = vmul.f32 %v268, %v327
        %v398 = vmul.f32 %v269, %v327
        %v399 = vmul.f32 %v270, %v327
        %v400 = vmul.f32 %v271, %v327
        %v401 = vmul.f32 %v272, %v327
        %v402 = vmul.f32 %v273, %v327
        %v403 = vmul.f32 %v274, %v327
        %v404 = vmul.f32 %v275, %v327
        %v405 = vmul.f32 %v276, %v327
        %v406 = vmul.f32 %v277, %v327
        %v407 = vmul.f32 %v278, %v327
        %v408 = vmul.f32 %v279, %v327
        %v409 = vmul.f32 %v280, %v327
        %v410 = vmul.f32 %v281, %v327
        %v411 = vmul.f32 %v282, %v327
        %v412 = vmul.f32 %v283, %v327
        %v413 = vmul.f32 %v284, %v327
        %v414 = vmul.f32 %v285, %v327
        %v415 = vmul.f32 %v286, %v327
        %v416 = vmul.f32 %v287, %v327
        %v417 = vmul.f32 %v288, %v327
        %v418 = vmul.f32 %v289, %v327
        %v419 = vmul.f32 %v290, %v327
        %v420 = vmul.f32 %v291, %v327
        %v421 = vmul.f32 %v292, %v327
        %v422 = vmul.f32 %v293, %v327
        %v423 = vmul.f32 %v294, %v327
        %v424 = vmul.f32 %v295, %v327
        %v425 = vmul.f32 %v296, %v327
        %v426 = vmul.f32 %v297, %v327
        %v427 = vmul.f32 %v298, %v327
        %v428 = vmul.f32 %v299, %v327
        %v429 = vmul.f32 %v300, %v327
        %v430 = vmul.f32 %v301, %v327
        %v431 = vmul.f32 %v302, %v327
        %v432 = vmul.f32 %v303, %v327
        %v433 = vmul.f32 %v304, %v327
        %v434 = vmul.f32 %v305, %v327
        %v435 = vmul.f32 %v306, %v327
        %v436 = vmul.f32 %v307, %v327
        %v437 = vmul.f32 %v308, %v327
        %v438 = vmul.f32 %v309, %v327
        %v439 = vmul.f32 %v310, %v327
        %v440 = vmul.f32 %v311, %v327
        %v441 = vmul.f32 %v312, %v327
        %v442 = vmul.f32 %v313, %v327
        %v443 = vmul.f32 %v314, %v327
        %v444 = vmul.f32 %v315, %v327
        %v445 = vmul.f32 %v316, %v327
        %v446 = vmul.f32 %v317, %v327
        %v447 = vmul.f32 %v318, %v327
        %v448 = vmul.f32 %v319, %v327
        %v449 = vmul.f32 %v320, %v327
        %v450 = vmul.f32 %v321, %v327
        %v451 = vmul.f32 %v322, %v327
        %v452 = vmul.f32 %v323, %v327
        %v453 = vmul.f32 %v324, %v327
        %v454 = vmul.f32 %v325, %v327
        %v455 = vmul.f32 %v326, %v327
        %v456 = vround.ne.pseudo %v328
        %v457 = vround.ne.pseudo %v329
        %v458 = vround.ne.pseudo %v330
        %v459 = vround.ne.pseudo %v331
        %v460 = vround.ne.pseudo %v332
        %v461 = vround.ne.pseudo %v333
        %v462 = vround.ne.pseudo %v334
        %v463 = vround.ne.pseudo %v335
        %v464 = vround.ne.pseudo %v336
        %v465 = vround.ne.pseudo %v337
        %v466 = vround.ne.pseudo %v338
        %v467 = vround.ne.pseudo %v339
        %v468 = vround.ne.pseudo %v340
        %v469 = vround.ne.pseudo %v341
        %v470 = vround.ne.pseudo %v342
        %v471 = vround.ne.pseudo %v343
        %v472 = vround.ne.pseudo %v344
        %v473 = vround.ne.pseudo %v345
        %v474 = vround.ne.pseudo %v346
        %v475 = vround.ne.pseudo %v347
        %v476 = vround.ne.pseudo %v348
        %v477 = vround.ne.pseudo %v349
        %v478 = vround.ne.pseudo %v350
        %v479 = vround.ne.pseudo %v351
        %v480 = vround.ne.pseudo %v352
        %v481 = vround.ne.pseudo %v353
        %v482 = vround.ne.pseudo %v354
        %v483 = vround.ne.pseudo %v355
        %v484 = vround.ne.pseudo %v356
        %v485 = vround.ne.pseudo %v357
        %v486 = vround.ne.pseudo %v358
        %v487 = vround.ne.pseudo %v359
        %v488 = vround.ne.pseudo %v360
        %v489 = vround.ne.pseudo %v361
        %v490 = vround.ne.pseudo %v362
        %v491 = vround.ne.pseudo %v363
        %v492 = vround.ne.pseudo %v364
        %v493 = vround.ne.pseudo %v365
        %v494 = vround.ne.pseudo %v366
        %v495 = vround.ne.pseudo %v367
        %v496 = vround.ne.pseudo %v368
        %v497 = vround.ne.pseudo %v369
        %v498 = vround.ne.pseudo %v370
        %v499 = vround.ne.pseudo %v371
        %v500 = vround.ne.pseudo %v372
        %v501 = vround.ne.pseudo %v373
        %v502 = vround.ne.pseudo %v374
        %v503 = vround.ne.pseudo %v375
        %v504 = vround.ne.pseudo %v376
        %v505 = vround.ne.pseudo %v377
        %v506 = vround.ne.pseudo %v378
        %v507 = vround.ne.pseudo %v379
        %v508 = vround.ne.pseudo %v380
        %v509 = vround.ne.pseudo %v381
        %v510 = vround.ne.pseudo %v382
        %v511 = vround.ne.pseudo %v383
        %v512 = vround.ne.pseudo %v384
        %v513 = vround.ne.pseudo %v385
        %v514 = vround.ne.pseudo %v386
        %v515 = vround.ne.pseudo %v387
        %v516 = vround.ne.pseudo %v388
        %v517 = vround.ne.pseudo %v389
        %v518 = vround.ne.pseudo %v390
        %v519 = vround.ne.pseudo %v391
        %v520 = vround.ne.pseudo %v392
        %v521 = vround.ne.pseudo %v393
        %v522 = vround.ne.pseudo %v394
        %v523 = vround.ne.pseudo %v395
        %v524 = vround.ne.pseudo %v396
        %v525 = vround.ne.pseudo %v397
        %v526 = vround.ne.pseudo %v398
        %v527 = vround.ne.pseudo %v399
        %v528 = vround.ne.pseudo %v400
        %v529 = vround.ne.pseudo %v401
        %v530 = vround.ne.pseudo %v402
        %v531 = vround.ne.pseudo %v403
        %v532 = vround.ne.pseudo %v404
        %v533 = vround.ne.pseudo %v405
        %v534 = vround.ne.pseudo %v406
        %v535 = vround.ne.pseudo %v407
        %v536 = vround.ne.pseudo %v408
        %v537 = vround.ne.pseudo %v409
        %v538 = vround.ne.pseudo %v410
        %v539 = vround.ne.pseudo %v411
        %v540 = vround.ne.pseudo %v412
        %v541 = vround.ne.pseudo %v413
        %v542 = vround.ne.pseudo %v414
        %v543 = vround.ne.pseudo %v415
        %v544 = vround.ne.pseudo %v416
        %v545 = vround.ne.pseudo %v417
        %v546 = vround.ne.pseudo %v418
        %v547 = vround.ne.pseudo %v419
        %v548 = vround.ne.pseudo %v420
        %v549 = vround.ne.pseudo %v421
        %v550 = vround.ne.pseudo %v422
        %v551 = vround.ne.pseudo %v423
        %v552 = vround.ne.pseudo %v424
        %v553 = vround.ne.pseudo %v425
        %v554 = vround.ne.pseudo %v426
        %v555 = vround.ne.pseudo %v427
        %v556 = vround.ne.pseudo %v428
        %v557 = vround.ne.pseudo %v429
        %v558 = vround.ne.pseudo %v430
        %v559 = vround.ne.pseudo %v431
        %v560 = vround.ne.pseudo %v432
        %v561 = vround.ne.pseudo %v433
        %v562 = vround.ne.pseudo %v434
        %v563 = vround.ne.pseudo %v435
        %v564 = vround.ne.pseudo %v436
        %v565 = vround.ne.pseudo %v437
        %v566 = vround.ne.pseudo %v438
        %v567 = vround.ne.pseudo %v439
        %v568 = vround.ne.pseudo %v440
        %v569 = vround.ne.pseudo %v441
        %v570 = vround.ne.pseudo %v442
        %v571 = vround.ne.pseudo %v443
        %v572 = vround.ne.pseudo %v444
        %v573 = vround.ne.pseudo %v445
        %v574 = vround.ne.pseudo %v446
        %v575 = vround.ne.pseudo %v447
        %v576 = vround.ne.pseudo %v448
        %v577 = vround.ne.pseudo %v449
        %v578 = vround.ne.pseudo %v450
        %v579 = vround.ne.pseudo %v451
        %v580 = vround.ne.pseudo %v452
        %v581 = vround.ne.pseudo %v453
        %v582 = vround.ne.pseudo %v454
        %v583 = vround.ne.pseudo %v455
        %v584 = vmax.f32 %v456, -128.0
        %v585 = vmax.f32 %v457, -128.0
        %v586 = vmax.f32 %v458, -128.0
        %v587 = vmax.f32 %v459, -128.0
        %v588 = vmax.f32 %v460, -128.0
        %v589 = vmax.f32 %v461, -128.0
        %v590 = vmax.f32 %v462, -128.0
        %v591 = vmax.f32 %v463, -128.0
        %v592 = vmax.f32 %v464, -128.0
        %v593 = vmax.f32 %v465, -128.0
        %v594 = vmax.f32 %v466, -128.0
        %v595 = vmax.f32 %v467, -128.0
        %v596 = vmax.f32 %v468, -128.0
        %v597 = vmax.f32 %v469, -128.0
        %v598 = vmax.f32 %v470, -128.0
        %v599 = vmax.f32 %v471, -128.0
        %v600 = vmax.f32 %v472, -128.0
        %v601 = vmax.f32 %v473, -128.0
        %v602 = vmax.f32 %v474, -128.0
        %v603 = vmax.f32 %v475, -128.0
        %v604 = vmax.f32 %v476, -128.0
        %v605 = vmax.f32 %v477, -128.0
        %v606 = vmax.f32 %v478, -128.0
        %v607 = vmax.f32 %v479, -128.0
        %v608 = vmax.f32 %v480, -128.0
        %v609 = vmax.f32 %v481, -128.0
        %v610 = vmax.f32 %v482, -128.0
        %v611 = vmax.f32 %v483, -128.0
        %v612 = vmax.f32 %v484, -128.0
        %v613 = vmax.f32 %v485, -128.0
        %v614 = vmax.f32 %v486, -128.0
        %v615 = vmax.f32 %v487, -128.0
        %v616 = vmax.f32 %v488, -128.0
        %v617 = vmax.f32 %v489, -128.0
        %v618 = vmax.f32 %v490, -128.0
        %v619 = vmax.f32 %v491, -128.0
        %v620 = vmax.f32 %v492, -128.0
        %v621 = vmax.f32 %v493, -128.0
        %v622 = vmax.f32 %v494, -128.0
        %v623 = vmax.f32 %v495, -128.0
        %v624 = vmax.f32 %v496, -128.0
        %v625 = vmax.f32 %v497, -128.0
        %v626 = vmax.f32 %v498, -128.0
        %v627 = vmax.f32 %v499, -128.0
        %v628 = vmax.f32 %v500, -128.0
        %v629 = vmax.f32 %v501, -128.0
        %v630 = vmax.f32 %v502, -128.0
        %v631 = vmax.f32 %v503, -128.0
        %v632 = vmax.f32 %v504, -128.0
        %v633 = vmax.f32 %v505, -128.0
        %v634 = vmax.f32 %v506, -128.0
        %v635 = vmax.f32 %v507, -128.0
        %v636 = vmax.f32 %v508, -128.0
        %v637 = vmax.f32 %v509, -128.0
        %v638 = vmax.f32 %v510, -128.0
        %v639 = vmax.f32 %v511, -128.0
        %v640 = vmax.f32 %v512, -128.0
        %v641 = vmax.f32 %v513, -128.0
        %v642 = vmax.f32 %v514, -128.0
        %v643 = vmax.f32 %v515, -128.0
        %v644 = vmax.f32 %v516, -128.0
        %v645 = vmax.f32 %v517, -128.0
        %v646 = vmax.f32 %v518, -128.0
        %v647 = vmax.f32 %v519, -128.0
        %v648 = vmax.f32 %v520, -128.0
        %v649 = vmax.f32 %v521, -128.0
        %v650 = vmax.f32 %v522, -128.0
        %v651 = vmax.f32 %v523, -128.0
        %v652 = vmax.f32 %v524, -128.0
        %v653 = vmax.f32 %v525, -128.0
        %v654 = vmax.f32 %v526, -128.0
        %v655 = vmax.f32 %v527, -128.0
        %v656 = vmax.f32 %v528, -128.0
        %v657 = vmax.f32 %v529, -128.0
        %v658 = vmax.f32 %v530, -128.0
        %v659 = vmax.f32 %v531, -128.0
        %v660 = vmax.f32 %v532, -128.0
        %v661 = vmax.f32 %v533, -128.0
        %v662 = vmax.f32 %v534, -128.0
        %v663 = vmax.f32 %v535, -128.0
        %v664 = vmax.f32 %v536, -128.0
        %v665 = vmax.f32 %v537, -128.0
        %v666 = vmax.f32 %v538, -128.0
        %v667 = vmax.f32 %v539, -128.0
        %v668 = vmax.f32 %v540, -128.0
        %v669 = vmax.f32 %v541, -128.0
        %v670 = vmax.f32 %v542, -128.0
        %v671 = vmax.f32 %v543, -128.0
        %v672 = vmax.f32 %v544, -128.0
        %v673 = vmax.f32 %v545, -128.0
        %v674 = vmax.f32 %v546, -128.0
        %v675 = vmax.f32 %v547, -128.0
        %v676 = vmax.f32 %v548, -128.0
        %v677 = vmax.f32 %v549, -128.0
        %v678 = vmax.f32 %v550, -128.0
        %v679 = vmax.f32 %v551, -128.0
        %v680 = vmax.f32 %v552, -128.0
        %v681 = vmax.f32 %v553, -128.0
        %v682 = vmax.f32 %v554, -128.0
        %v683 = vmax.f32 %v555, -128.0
        %v684 = vmax.f32 %v556, -128.0
        %v685 = vmax.f32 %v557, -128.0
        %v686 = vmax.f32 %v558, -128.0
        %v687 = vmax.f32 %v559, -128.0
        %v688 = vmax.f32 %v560, -128.0
        %v689 = vmax.f32 %v561, -128.0
        %v690 = vmax.f32 %v562, -128.0
        %v691 = vmax.f32 %v563, -128.0
        %v692 = vmax.f32 %v564, -128.0
        %v693 = vmax.f32 %v565, -128.0
        %v694 = vmax.f32 %v566, -128.0
        %v695 = vmax.f32 %v567, -128.0
        %v696 = vmax.f32 %v568, -128.0
        %v697 = vmax.f32 %v569, -128.0
        %v698 = vmax.f32 %v570, -128.0
        %v699 = vmax.f32 %v571, -128.0
        %v700 = vmax.f32 %v572, -128.0
        %v701 = vmax.f32 %v573, -128.0
        %v702 = vmax.f32 %v574, -128.0
        %v703 = vmax.f32 %v575, -128.0
        %v704 = vmax.f32 %v576, -128.0
        %v705 = vmax.f32 %v577, -128.0
        %v706 = vmax.f32 %v578, -128.0
        %v707 = vmax.f32 %v579, -128.0
        %v708 = vmax.f32 %v580, -128.0
        %v709 = vmax.f32 %v581, -128.0
        %v710 = vmax.f32 %v582, -128.0
        %v711 = vmax.f32 %v583, -128.0
        %v712 = vmin.f32 %v584, 127.0
        %v713 = vmin.f32 %v585, 127.0
        %v714 = vmin.f32 %v586, 127.0
        %v715 = vmin.f32 %v587, 127.0
        %v716 = vmin.f32 %v588, 127.0
        %v717 = vmin.f32 %v589, 127.0
        %v718 = vmin.f32 %v590, 127.0
        %v719 = vmin.f32 %v591, 127.0
        %v720 = vmin.f32 %v592, 127.0
        %v721 = vmin.f32 %v593, 127.0
        %v722 = vmin.f32 %v594, 127.0
        %v723 = vmin.f32 %v595, 127.0
        %v724 = vmin.f32 %v596, 127.0
        %v725 = vmin.f32 %v597, 127.0
        %v726 = vmin.f32 %v598, 127.0
        %v727 = vmin.f32 %v599, 127.0
        %v728 = vmin.f32 %v600, 127.0
        %v729 = vmin.f32 %v601, 127.0
        %v730 = vmin.f32 %v602, 127.0
        %v731 = vmin.f32 %v603, 127.0
        %v732 = vmin.f32 %v604, 127.0
        %v733 = vmin.f32 %v605, 127.0
        %v734 = vmin.f32 %v606, 127.0
        %v735 = vmin.f32 %v607, 127.0
        %v736 = vmin.f32 %v608, 127.0
        %v737 = vmin.f32 %v609, 127.0
        %v738 = vmin.f32 %v610, 127.0
        %v739 = vmin.f32 %v611, 127.0
        %v740 = vmin.f32 %v612, 127.0
        %v741 = vmin.f32 %v613, 127.0
        %v742 = vmin.f32 %v614, 127.0
        %v743 = vmin.f32 %v615, 127.0
        %v744 = vmin.f32 %v616, 127.0
        %v745 = vmin.f32 %v617, 127.0
        %v746 = vmin.f32 %v618, 127.0
        %v747 = vmin.f32 %v619, 127.0
        %v748 = vmin.f32 %v620, 127.0
        %v749 = vmin.f32 %v621, 127.0
        %v750 = vmin.f32 %v622, 127.0
        %v751 = vmin.f32 %v623, 127.0
        %v752 = vmin.f32 %v624, 127.0
        %v753 = vmin.f32 %v625, 127.0
        %v754 = vmin.f32 %v626, 127.0
        %v755 = vmin.f32 %v627, 127.0
        %v756 = vmin.f32 %v628, 127.0
        %v757 = vmin.f32 %v629, 127.0
        %v758 = vmin.f32 %v630, 127.0
        %v759 = vmin.f32 %v631, 127.0
        %v760 = vmin.f32 %v632, 127.0
        %v761 = vmin.f32 %v633, 127.0
        %v762 = vmin.f32 %v634, 127.0
        %v763 = vmin.f32 %v635, 127.0
        %v764 = vmin.f32 %v636, 127.0
        %v765 = vmin.f32 %v637, 127.0
        %v766 = vmin.f32 %v638, 127.0
        %v767 = vmin.f32 %v639, 127.0
        %v768 = vmin.f32 %v640, 127.0
        %v769 = vmin.f32 %v641, 127.0
        %v770 = vmin.f32 %v642, 127.0
        %v771 = vmin.f32 %v643, 127.0
        %v772 = vmin.f32 %v644, 127.0
        %v773 = vmin.f32 %v645, 127.0
        %v774 = vmin.f32 %v646, 127.0
        %v775 = vmin.f32 %v647, 127.0
        %v776 = vmin.f32 %v648, 127.0
        %v777 = vmin.f32 %v649, 127.0
        %v778 = vmin.f32 %v650, 127.0
        %v779 = vmin.f32 %v651, 127.0
        %v780 = vmin.f32 %v652, 127.0
        %v781 = vmin.f32 %v653, 127.0
        %v782 = vmin.f32 %v654, 127.0
        %v783 = vmin.f32 %v655, 127.0
        %v784 = vmin.f32 %v656, 127.0
        %v785 = vmin.f32 %v657, 127.0
        %v786 = vmin.f32 %v658, 127.0
        %v787 = vmin.f32 %v659, 127.0
        %v788 = vmin.f32 %v660, 127.0
        %v789 = vmin.f32 %v661, 127.0
        %v790 = vmin.f32 %v662, 127.0
        %v791 = vmin.f32 %v663, 127.0
        %v792 = vmin.f32 %v664, 127.0
        %v793 = vmin.f32 %v665, 127.0
        %v794 = vmin.f32 %v666, 127.0
        %v795 = vmin.f32 %v667, 127.0
        %v796 = vmin.f32 %v668, 127.0
        %v797 = vmin.f32 %v669, 127.0
        %v798 = vmin.f32 %v670, 127.0
        %v799 = vmin.f32 %v671, 127.0
        %v800 = vmin.f32 %v672, 127.0
        %v801 = vmin.f32 %v673, 127.0
        %v802 = vmin.f32 %v674, 127.0
        %v803 = vmin.f32 %v675, 127.0
        %v804 = vmin.f32 %v676, 127.0
        %v805 = vmin.f32 %v677, 127.0
        %v806 = vmin.f32 %v678, 127.0
        %v807 = vmin.f32 %v679, 127.0
        %v808 = vmin.f32 %v680, 127.0
        %v809 = vmin.f32 %v681, 127.0
        %v810 = vmin.f32 %v682, 127.0
        %v811 = vmin.f32 %v683, 127.0
        %v812 = vmin.f32 %v684, 127.0
        %v813 = vmin.f32 %v685, 127.0
        %v814 = vmin.f32 %v686, 127.0
        %v815 = vmin.f32 %v687, 127.0
        %v816 = vmin.f32 %v688, 127.0
        %v817 = vmin.f32 %v689, 127.0
        %v818 = vmin.f32 %v690, 127.0
        %v819 = vmin.f32 %v691, 127.0
        %v820 = vmin.f32 %v692, 127.0
        %v821 = vmin.f32 %v693, 127.0
        %v822 = vmin.f32 %v694, 127.0
        %v823 = vmin.f32 %v695, 127.0
        %v824 = vmin.f32 %v696, 127.0
        %v825 = vmin.f32 %v697, 127.0
        %v826 = vmin.f32 %v698, 127.0
        %v827 = vmin.f32 %v699, 127.0
        %v828 = vmin.f32 %v700, 127.0
        %v829 = vmin.f32 %v701, 127.0
        %v830 = vmin.f32 %v702, 127.0
        %v831 = vmin.f32 %v703, 127.0
        %v832 = vmin.f32 %v704, 127.0
        %v833 = vmin.f32 %v705, 127.0
        %v834 = vmin.f32 %v706, 127.0
        %v835 = vmin.f32 %v707, 127.0
        %v836 = vmin.f32 %v708, 127.0
        %v837 = vmin.f32 %v709, 127.0
        %v838 = vmin.f32 %v710, 127.0
        %v839 = vmin.f32 %v711, 127.0
        %v840 = vstv %s198
        %v841 = vmul.f32 %v712, %v840
        %v842 = vmul.f32 %v713, %v840
        %v843 = vmul.f32 %v714, %v840
        %v844 = vmul.f32 %v715, %v840
        %v845 = vmul.f32 %v716, %v840
        %v846 = vmul.f32 %v717, %v840
        %v847 = vmul.f32 %v718, %v840
        %v848 = vmul.f32 %v719, %v840
        %v849 = vmul.f32 %v720, %v840
        %v850 = vmul.f32 %v721, %v840
        %v851 = vmul.f32 %v722, %v840
        %v852 = vmul.f32 %v723, %v840
        %v853 = vmul.f32 %v724, %v840
        %v854 = vmul.f32 %v725, %v840
        %v855 = vmul.f32 %v726, %v840
        %v856 = vmul.f32 %v727, %v840
        %v857 = vmul.f32 %v728, %v840
        %v858 = vmul.f32 %v729, %v840
        %v859 = vmul.f32 %v730, %v840
        %v860 = vmul.f32 %v731, %v840
        %v861 = vmul.f32 %v732, %v840
        %v862 = vmul.f32 %v733, %v840
        %v863 = vmul.f32 %v734, %v840
        %v864 = vmul.f32 %v735, %v840
        %v865 = vmul.f32 %v736, %v840
        %v866 = vmul.f32 %v737, %v840
        %v867 = vmul.f32 %v738, %v840
        %v868 = vmul.f32 %v739, %v840
        %v869 = vmul.f32 %v740, %v840
        %v870 = vmul.f32 %v741, %v840
        %v871 = vmul.f32 %v742, %v840
        %v872 = vmul.f32 %v743, %v840
        %v873 = vmul.f32 %v744, %v840
        %v874 = vmul.f32 %v745, %v840
        %v875 = vmul.f32 %v746, %v840
        %v876 = vmul.f32 %v747, %v840
        %v877 = vmul.f32 %v748, %v840
        %v878 = vmul.f32 %v749, %v840
        %v879 = vmul.f32 %v750, %v840
        %v880 = vmul.f32 %v751, %v840
        %v881 = vmul.f32 %v752, %v840
        %v882 = vmul.f32 %v753, %v840
        %v883 = vmul.f32 %v754, %v840
        %v884 = vmul.f32 %v755, %v840
        %v885 = vmul.f32 %v756, %v840
        %v886 = vmul.f32 %v757, %v840
        %v887 = vmul.f32 %v758, %v840
        %v888 = vmul.f32 %v759, %v840
        %v889 = vmul.f32 %v760, %v840
        %v890 = vmul.f32 %v761, %v840
        %v891 = vmul.f32 %v762, %v840
        %v892 = vmul.f32 %v763, %v840
        %v893 = vmul.f32 %v764, %v840
        %v894 = vmul.f32 %v765, %v840
        %v895 = vmul.f32 %v766, %v840
        %v896 = vmul.f32 %v767, %v840
        %v897 = vmul.f32 %v768, %v840
        %v898 = vmul.f32 %v769, %v840
        %v899 = vmul.f32 %v770, %v840
        %v900 = vmul.f32 %v771, %v840
        %v901 = vmul.f32 %v772, %v840
        %v902 = vmul.f32 %v773, %v840
        %v903 = vmul.f32 %v774, %v840
        %v904 = vmul.f32 %v775, %v840
        %v905 = vmul.f32 %v776, %v840
        %v906 = vmul.f32 %v777, %v840
        %v907 = vmul.f32 %v778, %v840
        %v908 = vmul.f32 %v779, %v840
        %v909 = vmul.f32 %v780, %v840
        %v910 = vmul.f32 %v781, %v840
        %v911 = vmul.f32 %v782, %v840
        %v912 = vmul.f32 %v783, %v840
        %v913 = vmul.f32 %v784, %v840
        %v914 = vmul.f32 %v785, %v840
        %v915 = vmul.f32 %v786, %v840
        %v916 = vmul.f32 %v787, %v840
        %v917 = vmul.f32 %v788, %v840
        %v918 = vmul.f32 %v789, %v840
        %v919 = vmul.f32 %v790, %v840
        %v920 = vmul.f32 %v791, %v840
        %v921 = vmul.f32 %v792, %v840
        %v922 = vmul.f32 %v793, %v840
        %v923 = vmul.f32 %v794, %v840
        %v924 = vmul.f32 %v795, %v840
        %v925 = vmul.f32 %v796, %v840
        %v926 = vmul.f32 %v797, %v840
        %v927 = vmul.f32 %v798, %v840
        %v928 = vmul.f32 %v799, %v840
        %v929 = vmul.f32 %v800, %v840
        %v930 = vmul.f32 %v801, %v840
        %v931 = vmul.f32 %v802, %v840
        %v932 = vmul.f32 %v803, %v840
        %v933 = vmul.f32 %v804, %v840
        %v934 = vmul.f32 %v805, %v840
        %v935 = vmul.f32 %v806, %v840
        %v936 = vmul.f32 %v807, %v840
        %v937 = vmul.f32 %v808, %v840
        %v938 = vmul.f32 %v809, %v840
        %v939 = vmul.f32 %v810, %v840
        %v940 = vmul.f32 %v811, %v840
        %v941 = vmul.f32 %v812, %v840
        %v942 = vmul.f32 %v813, %v840
        %v943 = vmul.f32 %v814, %v840
        %v944 = vmul.f32 %v815, %v840
        %v945 = vmul.f32 %v816, %v840
        %v946 = vmul.f32 %v817, %v840
        %v947 = vmul.f32 %v818, %v840
        %v948 = vmul.f32 %v819, %v840
        %v949 = vmul.f32 %v820, %v840
        %v950 = vmul.f32 %v821, %v840
        %v951 = vmul.f32 %v822, %v840
        %v952 = vmul.f32 %v823, %v840
        %v953 = vmul.f32 %v824, %v840
        %v954 = vmul.f32 %v825, %v840
        %v955 = vmul.f32 %v826, %v840
        %v956 = vmul.f32 %v827, %v840
        %v957 = vmul.f32 %v828, %v840
        %v958 = vmul.f32 %v829, %v840
        %v959 = vmul.f32 %v830, %v840
        %v960 = vmul.f32 %v831, %v840
        %v961 = vmul.f32 %v832, %v840
        %v962 = vmul.f32 %v833, %v840
        %v963 = vmul.f32 %v834, %v840
        %v964 = vmul.f32 %v835, %v840
        %v965 = vmul.f32 %v836, %v840
        %v966 = vmul.f32 %v837, %v840
        %v967 = vmul.f32 %v838, %v840
        %v968 = vmul.f32 %v839, %v840
        %969 = vxpose.xlu0.b32.start [1/16] %v841, 128
        %970 = vxpose.xlu0.b32.cont [2/16] %v842, 128
        %971 = vxpose.xlu0.b32.cont [3/16] %v843, 128
        %972 = vxpose.xlu0.b32.cont [4/16] %v844, 128
        %973 = vxpose.xlu0.b32.cont [5/16] %v845, 128
        %974 = vxpose.xlu0.b32.cont [6/16] %v846, 128
        %975 = vxpose.xlu0.b32.cont [7/16] %v847, 128
        %976 = vxpose.xlu0.b32.cont [8/16] %v848, 128
        %977 = vxpose.xlu0.b32.cont [9/16] %v849, 128
        %978 = vxpose.xlu0.b32.cont [10/16] %v850, 128
        %979 = vxpose.xlu0.b32.cont [11/16] %v851, 128
        %980 = vxpose.xlu0.b32.cont [12/16] %v852, 128
        %981 = vxpose.xlu0.b32.cont [13/16] %v853, 128
        %982 = vxpose.xlu0.b32.cont [14/16] %v854, 128
        %983 = vxpose.xlu0.b32.cont [15/16] %v855, 128
        %984 = vxpose.xlu0.b32.end [16/16] %v856, 128
        %v985 = vpop.trf.xlu0
        %v986 = vpop.trf.xlu0
        %v987 = vpop.trf.xlu0
        %v988 = vpop.trf.xlu0
        %v989 = vpop.trf.xlu0
        %v990 = vpop.trf.xlu0
        %v991 = vpop.trf.xlu0
        %v992 = vpop.trf.xlu0
        %v993 = vpop.trf.xlu0
        %v994 = vpop.trf.xlu0
        %v995 = vpop.trf.xlu0
        %v996 = vpop.trf.xlu0
        %v997 = vpop.trf.xlu0
        %v998 = vpop.trf.xlu0
        %v999 = vpop.trf.xlu0
        %v1000 = vpop.trf.xlu0
        %1001 = vxpose.xlu0.b32.start [1/16] %v857, 128
        %1002 = vxpose.xlu0.b32.cont [2/16] %v858, 128
        %1003 = vxpose.xlu0.b32.cont [3/16] %v859, 128
        %1004 = vxpose.xlu0.b32.cont [4/16] %v860, 128
        %1005 = vxpose.xlu0.b32.cont [5/16] %v861, 128
        %1006 = vxpose.xlu0.b32.cont [6/16] %v862, 128
        %1007 = vxpose.xlu0.b32.cont [7/16] %v863, 128
        %1008 = vxpose.xlu0.b32.cont [8/16] %v864, 128
        %1009 = vxpose.xlu0.b32.cont [9/16] %v865, 128
        %1010 = vxpose.xlu0.b32.cont [10/16] %v866, 128
        %1011 = vxpose.xlu0.b32.cont [11/16] %v867, 128
        %1012 = vxpose.xlu0.b32.cont [12/16] %v868, 128
        %1013 = vxpose.xlu0.b32.cont [13/16] %v869, 128
        %1014 = vxpose.xlu0.b32.cont [14/16] %v870, 128
        %1015 = vxpose.xlu0.b32.cont [15/16] %v871, 128
        %1016 = vxpose.xlu0.b32.end [16/16] %v872, 128
        %v1017 = vpop.trf.xlu0
        %v1018 = vpop.trf.xlu0
        %v1019 = vpop.trf.xlu0
        %v1020 = vpop.trf.xlu0
        %v1021 = vpop.trf.xlu0
        %v1022 = vpop.trf.xlu0
        %v1023 = vpop.trf.xlu0
        %v1024 = vpop.trf.xlu0
        %v1025 = vpop.trf.xlu0
        %v1026 = vpop.trf.xlu0
        %v1027 = vpop.trf.xlu0
        %v1028 = vpop.trf.xlu0
        %v1029 = vpop.trf.xlu0
        %v1030 = vpop.trf.xlu0
        %v1031 = vpop.trf.xlu0
        %v1032 = vpop.trf.xlu0
        %1033 = vxpose.xlu0.b32.start [1/16] %v873, 128
        %1034 = vxpose.xlu0.b32.cont [2/16] %v874, 128
        %1035 = vxpose.xlu0.b32.cont [3/16] %v875, 128
        %1036 = vxpose.xlu0.b32.cont [4/16] %v876, 128
        %1037 = vxpose.xlu0.b32.cont [5/16] %v877, 128
        %1038 = vxpose.xlu0.b32.cont [6/16] %v878, 128
        %1039 = vxpose.xlu0.b32.cont [7/16] %v879, 128
        %1040 = vxpose.xlu0.b32.cont [8/16] %v880, 128
        %1041 = vxpose.xlu0.b32.cont [9/16] %v881, 128
        %1042 = vxpose.xlu0.b32.cont [10/16] %v882, 128
        %1043 = vxpose.xlu0.b32.cont [11/16] %v883, 128
        %1044 = vxpose.xlu0.b32.cont [12/16] %v884, 128
        %1045 = vxpose.xlu0.b32.cont [13/16] %v885, 128
        %1046 = vxpose.xlu0.b32.cont [14/16] %v886, 128
        %1047 = vxpose.xlu0.b32.cont [15/16] %v887, 128
        %1048 = vxpose.xlu0.b32.end [16/16] %v888, 128
        %v1049 = vpop.trf.xlu0
        %v1050 = vpop.trf.xlu0
        %v1051 = vpop.trf.xlu0
        %v1052 = vpop.trf.xlu0
        %v1053 = vpop.trf.xlu0
        %v1054 = vpop.trf.xlu0
        %v1055 = vpop.trf.xlu0
        %v1056 = vpop.trf.xlu0
        %v1057 = vpop.trf.xlu0
        %v1058 = vpop.trf.xlu0
        %v1059 = vpop.trf.xlu0
        %v1060 = vpop.trf.xlu0
        %v1061 = vpop.trf.xlu0
        %v1062 = vpop.trf.xlu0
        %v1063 = vpop.trf.xlu0
        %v1064 = vpop.trf.xlu0
        %1065 = vxpose.xlu0.b32.start [1/16] %v889, 128
        %1066 = vxpose.xlu0.b32.cont [2/16] %v890, 128
        %1067 = vxpose.xlu0.b32.cont [3/16] %v891, 128
        %1068 = vxpose.xlu0.b32.cont [4/16] %v892, 128
        %1069 = vxpose.xlu0.b32.cont [5/16] %v893, 128
        %1070 = vxpose.xlu0.b32.cont [6/16] %v894, 128
        %1071 = vxpose.xlu0.b32.cont [7/16] %v895, 128
        %1072 = vxpose.xlu0.b32.cont [8/16] %v896, 128
        %1073 = vxpose.xlu0.b32.cont [9/16] %v897, 128
        %1074 = vxpose.xlu0.b32.cont [10/16] %v898, 128
        %1075 = vxpose.xlu0.b32.cont [11/16] %v899, 128
        %1076 = vxpose.xlu0.b32.cont [12/16] %v900, 128
        %1077 = vxpose.xlu0.b32.cont [13/16] %v901, 128
        %1078 = vxpose.xlu0.b32.cont [14/16] %v902, 128
        %1079 = vxpose.xlu0.b32.cont [15/16] %v903, 128
        %1080 = vxpose.xlu0.b32.end [16/16] %v904, 128
        %v1081 = vpop.trf.xlu0
        %v1082 = vpop.trf.xlu0
        %v1083 = vpop.trf.xlu0
        %v1084 = vpop.trf.xlu0
        %v1085 = vpop.trf.xlu0
        %v1086 = vpop.trf.xlu0
        %v1087 = vpop.trf.xlu0
        %v1088 = vpop.trf.xlu0
        %v1089 = vpop.trf.xlu0
        %v1090 = vpop.trf.xlu0
        %v1091 = vpop.trf.xlu0
        %v1092 = vpop.trf.xlu0
        %v1093 = vpop.trf.xlu0
        %v1094 = vpop.trf.xlu0
        %v1095 = vpop.trf.xlu0
        %v1096 = vpop.trf.xlu0
        %1097 = vxpose.xlu0.b32.start [1/16] %v905, 128
        %1098 = vxpose.xlu0.b32.cont [2/16] %v906, 128
        %1099 = vxpose.xlu0.b32.cont [3/16] %v907, 128
        %1100 = vxpose.xlu0.b32.cont [4/16] %v908, 128
        %1101 = vxpose.xlu0.b32.cont [5/16] %v909, 128
        %1102 = vxpose.xlu0.b32.cont [6/16] %v910, 128
        %1103 = vxpose.xlu0.b32.cont [7/16] %v911, 128
        %1104 = vxpose.xlu0.b32.cont [8/16] %v912, 128
        %1105 = vxpose.xlu0.b32.cont [9/16] %v913, 128
        %1106 = vxpose.xlu0.b32.cont [10/16] %v914, 128
        %1107 = vxpose.xlu0.b32.cont [11/16] %v915, 128
        %1108 = vxpose.xlu0.b32.cont [12/16] %v916, 128
        %1109 = vxpose.xlu0.b32.cont [13/16] %v917, 128
        %1110 = vxpose.xlu0.b32.cont [14/16] %v918, 128
        %1111 = vxpose.xlu0.b32.cont [15/16] %v919, 128
        %1112 = vxpose.xlu0.b32.end [16/16] %v920, 128
        %v1113 = vpop.trf.xlu0
        %v1114 = vpop.trf.xlu0
        %v1115 = vpop.trf.xlu0
        %v1116 = vpop.trf.xlu0
        %v1117 = vpop.trf.xlu0
        %v1118 = vpop.trf.xlu0
        %v1119 = vpop.trf.xlu0
        %v1120 = vpop.trf.xlu0
        %v1121 = vpop.trf.xlu0
        %v1122 = vpop.trf.xlu0
        %v1123 = vpop.trf.xlu0
        %v1124 = vpop.trf.xlu0
        %v1125 = vpop.trf.xlu0
        %v1126 = vpop.trf.xlu0
        %v1127 = vpop.trf.xlu0
        %v1128 = vpop.trf.xlu0
        %1129 = vxpose.xlu0.b32.start [1/16] %v921, 128
        %1130 = vxpose.xlu0.b32.cont [2/16] %v922, 128
        %1131 = vxpose.xlu0.b32.cont [3/16] %v923, 128
        %1132 = vxpose.xlu0.b32.cont [4/16] %v924, 128
        %1133 = vxpose.xlu0.b32.cont [5/16] %v925, 128
        %1134 = vxpose.xlu0.b32.cont [6/16] %v926, 128
        %1135 = vxpose.xlu0.b32.cont [7/16] %v927, 128
        %1136 = vxpose.xlu0.b32.cont [8/16] %v928, 128
        %1137 = vxpose.xlu0.b32.cont [9/16] %v929, 128
        %1138 = vxpose.xlu0.b32.cont [10/16] %v930, 128
        %1139 = vxpose.xlu0.b32.cont [11/16] %v931, 128
        %1140 = vxpose.xlu0.b32.cont [12/16] %v932, 128
        %1141 = vxpose.xlu0.b32.cont [13/16] %v933, 128
        %1142 = vxpose.xlu0.b32.cont [14/16] %v934, 128
        %1143 = vxpose.xlu0.b32.cont [15/16] %v935, 128
        %1144 = vxpose.xlu0.b32.end [16/16] %v936, 128
        %v1145 = vpop.trf.xlu0
        %v1146 = vpop.trf.xlu0
        %v1147 = vpop.trf.xlu0
        %v1148 = vpop.trf.xlu0
        %v1149 = vpop.trf.xlu0
        %v1150 = vpop.trf.xlu0
        %v1151 = vpop.trf.xlu0
        %v1152 = vpop.trf.xlu0
        %v1153 = vpop.trf.xlu0
        %v1154 = vpop.trf.xlu0
        %v1155 = vpop.trf.xlu0
        %v1156 = vpop.trf.xlu0
        %v1157 = vpop.trf.xlu0
        %v1158 = vpop.trf.xlu0
        %v1159 = vpop.trf.xlu0
        %v1160 = vpop.trf.xlu0
        %1161 = vxpose.xlu0.b32.start [1/16] %v937, 128
        %1162 = vxpose.xlu0.b32.cont [2/16] %v938, 128
        %1163 = vxpose.xlu0.b32.cont [3/16] %v939, 128
        %1164 = vxpose.xlu0.b32.cont [4/16] %v940, 128
        %1165 = vxpose.xlu0.b32.cont [5/16] %v941, 128
        %1166 = vxpose.xlu0.b32.cont [6/16] %v942, 128
        %1167 = vxpose.xlu0.b32.cont [7/16] %v943, 128
        %1168 = vxpose.xlu0.b32.cont [8/16] %v944, 128
        %1169 = vxpose.xlu0.b32.cont [9/16] %v945, 128
        %1170 = vxpose.xlu0.b32.cont [10/16] %v946, 128
        %1171 = vxpose.xlu0.b32.cont [11/16] %v947, 128
        %1172 = vxpose.xlu0.b32.cont [12/16] %v948, 128
        %1173 = vxpose.xlu0.b32.cont [13/16] %v949, 128
        %1174 = vxpose.xlu0.b32.cont [14/16] %v950, 128
        %1175 = vxpose.xlu0.b32.cont [15/16] %v951, 128
        %1176 = vxpose.xlu0.b32.end [16/16] %v952, 128
        %v1177 = vpop.trf.xlu0
        %v1178 = vpop.trf.xlu0
        %v1179 = vpop.trf.xlu0
        %v1180 = vpop.trf.xlu0
        %v1181 = vpop.trf.xlu0
        %v1182 = vpop.trf.xlu0
        %v1183 = vpop.trf.xlu0
        %v1184 = vpop.trf.xlu0
        %v1185 = vpop.trf.xlu0
        %v1186 = vpop.trf.xlu0
        %v1187 = vpop.trf.xlu0
        %v1188 = vpop.trf.xlu0
        %v1189 = vpop.trf.xlu0
        %v1190 = vpop.trf.xlu0
        %v1191 = vpop.trf.xlu0
        %v1192 = vpop.trf.xlu0
        %1193 = vxpose.xlu0.b32.start [1/16] %v953, 128
        %1194 = vxpose.xlu0.b32.cont [2/16] %v954, 128
        %1195 = vxpose.xlu0.b32.cont [3/16] %v955, 128
        %1196 = vxpose.xlu0.b32.cont [4/16] %v956, 128
        %1197 = vxpose.xlu0.b32.cont [5/16] %v957, 128
        %1198 = vxpose.xlu0.b32.cont [6/16] %v958, 128
        %1199 = vxpose.xlu0.b32.cont [7/16] %v959, 128
        %1200 = vxpose.xlu0.b32.cont [8/16] %v960, 128
        %1201 = vxpose.xlu0.b32.cont [9/16] %v961, 128
        %1202 = vxpose.xlu0.b32.cont [10/16] %v962, 128
        %1203 = vxpose.xlu0.b32.cont [11/16] %v963, 128
        %1204 = vxpose.xlu0.b32.cont [12/16] %v964, 128
        %1205 = vxpose.xlu0.b32.cont [13/16] %v965, 128
        %1206 = vxpose.xlu0.b32.cont [14/16] %v966, 128
        %1207 = vxpose.xlu0.b32.cont [15/16] %v967, 128
        %1208 = vxpose.xlu0.b32.end [16/16] %v968, 128
        %v1209 = vpop.trf.xlu0
        %v1210 = vpop.trf.xlu0
        %v1211 = vpop.trf.xlu0
        %v1212 = vpop.trf.xlu0
        %v1213 = vpop.trf.xlu0
        %v1214 = vpop.trf.xlu0
        %v1215 = vpop.trf.xlu0
        %v1216 = vpop.trf.xlu0
        %v1217 = vpop.trf.xlu0
        %v1218 = vpop.trf.xlu0
        %v1219 = vpop.trf.xlu0
        %v1220 = vpop.trf.xlu0
        %v1221 = vpop.trf.xlu0
        %v1222 = vpop.trf.xlu0
        %v1223 = vpop.trf.xlu0
        %v1224 = vpop.trf.xlu0
        %1225 = vst [vmem:[%s195] sm:$0xff] %v985
        %1226 = vst [vmem:[%s195 + $0x8] sm:$0xff] %v1017
        %1227 = vst [vmem:[%s195 + $0x10] sm:$0xff] %v1049
        %1228 = vst [vmem:[%s195 + $0x18] sm:$0xff] %v1081
        %1229 = vst [vmem:[%s195 + $0x20] sm:$0xff] %v1113
        %1230 = vst [vmem:[%s195 + $0x28] sm:$0xff] %v1145
        %1231 = vst [vmem:[%s195 + $0x30] sm:$0xff] %v1177
        %1232 = vst [vmem:[%s195 + $0x38] sm:$0xff] %v1209
        %1233 = vst [vmem:[%s195 + $0x40] sm:$0xff] %v986
        %1234 = vst [vmem:[%s195 + $0x48] sm:$0xff] %v1018
        %1235 = vst [vmem:[%s195 + $0x50] sm:$0xff] %v1050
        %1236 = vst [vmem:[%s195 + $0x58] sm:$0xff] %v1082
        %1237 = vst [vmem:[%s195 + $0x60] sm:$0xff] %v1114
        %1238 = vst [vmem:[%s195 + $0x68] sm:$0xff] %v1146
        %1239 = vst [vmem:[%s195 + $0x70] sm:$0xff] %v1178
        %1240 = vst [vmem:[%s195 + $0x78] sm:$0xff] %v1210
        %1241 = vst [vmem:[%s195 + $0x80] sm:$0xff] %v987
        %1242 = vst [vmem:[%s195 + $0x88] sm:$0xff] %v1019
        %1243 = vst [vmem:[%s195 + $0x90] sm:$0xff] %v1051
        %1244 = vst [vmem:[%s195 + $0x98] sm:$0xff] %v1083
        %1245 = vst [vmem:[%s195 + $0xa0] sm:$0xff] %v1115
        %1246 = vst [vmem:[%s195 + $0xa8] sm:$0xff] %v1147
        %1247 = vst [vmem:[%s195 + $0xb0] sm:$0xff] %v1179
        %1248 = vst [vmem:[%s195 + $0xb8] sm:$0xff] %v1211
        %1249 = vst [vmem:[%s195 + $0xc0] sm:$0xff] %v988
        %1250 = vst [vmem:[%s195 + $0xc8] sm:$0xff] %v1020
        %1251 = vst [vmem:[%s195 + $0xd0] sm:$0xff] %v1052
        %1252 = vst [vmem:[%s195 + $0xd8] sm:$0xff] %v1084
        %1253 = vst [vmem:[%s195 + $0xe0] sm:$0xff] %v1116
        %1254 = vst [vmem:[%s195 + $0xe8] sm:$0xff] %v1148
        %1255 = vst [vmem:[%s195 + $0xf0] sm:$0xff] %v1180
        %1256 = vst [vmem:[%s195 + $0xf8] sm:$0xff] %v1212
        %1257 = vst [vmem:[%s195 + $0x100] sm:$0xff] %v989
        %1258 = vst [vmem:[%s195 + $0x108] sm:$0xff] %v1021
        %1259 = vst [vmem:[%s195 + $0x110] sm:$0xff] %v1053
        %1260 = vst [vmem:[%s195 + $0x118] sm:$0xff] %v1085
        %1261 = vst [vmem:[%s195 + $0x120] sm:$0xff] %v1117
        %1262 = vst [vmem:[%s195 + $0x128] sm:$0xff] %v1149
        %1263 = vst [vmem:[%s195 + $0x130] sm:$0xff] %v1181
        %1264 = vst [vmem:[%s195 + $0x138] sm:$0xff] %v1213
        %1265 = vst [vmem:[%s195 + $0x140] sm:$0xff] %v990
        %1266 = vst [vmem:[%s195 + $0x148] sm:$0xff] %v1022
        %1267 = vst [vmem:[%s195 + $0x150] sm:$0xff] %v1054
        %1268 = vst [vmem:[%s195 + $0x158] sm:$0xff] %v1086
        %1269 = vst [vmem:[%s195 + $0x160] sm:$0xff] %v1118
        %1270 = vst [vmem:[%s195 + $0x168] sm:$0xff] %v1150
        %1271 = vst [vmem:[%s195 + $0x170] sm:$0xff] %v1182
        %1272 = vst [vmem:[%s195 + $0x178] sm:$0xff] %v1214
        %1273 = vst [vmem:[%s195 + $0x180] sm:$0xff] %v991
        %1274 = vst [vmem:[%s195 + $0x188] sm:$0xff] %v1023
        %1275 = vst [vmem:[%s195 + $0x190] sm:$0xff] %v1055
        %1276 = vst [vmem:[%s195 + $0x198] sm:$0xff] %v1087
        %1277 = vst [vmem:[%s195 + $0x1a0] sm:$0xff] %v1119
        %1278 = vst [vmem:[%s195 + $0x1a8] sm:$0xff] %v1151
        %1279 = vst [vmem:[%s195 + $0x1b0] sm:$0xff] %v1183
        %1280 = vst [vmem:[%s195 + $0x1b8] sm:$0xff] %v1215
        %1281 = vst [vmem:[%s195 + $0x1c0] sm:$0xff] %v992
        %1282 = vst [vmem:[%s195 + $0x1c8] sm:$0xff] %v1024
        %1283 = vst [vmem:[%s195 + $0x1d0] sm:$0xff] %v1056
        %1284 = vst [vmem:[%s195 + $0x1d8] sm:$0xff] %v1088
        %1285 = vst [vmem:[%s195 + $0x1e0] sm:$0xff] %v1120
        %1286 = vst [vmem:[%s195 + $0x1e8] sm:$0xff] %v1152
        %1287 = vst [vmem:[%s195 + $0x1f0] sm:$0xff] %v1184
        %1288 = vst [vmem:[%s195 + $0x1f8] sm:$0xff] %v1216
        %1289 = vst [vmem:[%s195 + $0x200] sm:$0xff] %v993
        %1290 = vst [vmem:[%s195 + $0x208] sm:$0xff] %v1025
        %1291 = vst [vmem:[%s195 + $0x210] sm:$0xff] %v1057
        %1292 = vst [vmem:[%s195 + $0x218] sm:$0xff] %v1089
        %1293 = vst [vmem:[%s195 + $0x220] sm:$0xff] %v1121
        %1294 = vst [vmem:[%s195 + $0x228] sm:$0xff] %v1153
        %1295 = vst [vmem:[%s195 + $0x230] sm:$0xff] %v1185
        %1296 = vst [vmem:[%s195 + $0x238] sm:$0xff] %v1217
        %1297 = vst [vmem:[%s195 + $0x240] sm:$0xff] %v994
        %1298 = vst [vmem:[%s195 + $0x248] sm:$0xff] %v1026
        %1299 = vst [vmem:[%s195 + $0x250] sm:$0xff] %v1058
        %1300 = vst [vmem:[%s195 + $0x258] sm:$0xff] %v1090
        %1301 = vst [vmem:[%s195 + $0x260] sm:$0xff] %v1122
        %1302 = vst [vmem:[%s195 + $0x268] sm:$0xff] %v1154
        %1303 = vst [vmem:[%s195 + $0x270] sm:$0xff] %v1186
        %1304 = vst [vmem:[%s195 + $0x278] sm:$0xff] %v1218
        %1305 = vst [vmem:[%s195 + $0x280] sm:$0xff] %v995
        %1306 = vst [vmem:[%s195 + $0x288] sm:$0xff] %v1027
        %1307 = vst [vmem:[%s195 + $0x290] sm:$0xff] %v1059
        %1308 = vst [vmem:[%s195 + $0x298] sm:$0xff] %v1091
        %1309 = vst [vmem:[%s195 + $0x2a0] sm:$0xff] %v1123
        %1310 = vst [vmem:[%s195 + $0x2a8] sm:$0xff] %v1155
        %1311 = vst [vmem:[%s195 + $0x2b0] sm:$0xff] %v1187
        %1312 = vst [vmem:[%s195 + $0x2b8] sm:$0xff] %v1219
        %1313 = vst [vmem:[%s195 + $0x2c0] sm:$0xff] %v996
        %1314 = vst [vmem:[%s195 + $0x2c8] sm:$0xff] %v1028
        %1315 = vst [vmem:[%s195 + $0x2d0] sm:$0xff] %v1060
        %1316 = vst [vmem:[%s195 + $0x2d8] sm:$0xff] %v1092
        %1317 = vst [vmem:[%s195 + $0x2e0] sm:$0xff] %v1124
        %1318 = vst [vmem:[%s195 + $0x2e8] sm:$0xff] %v1156
        %1319 = vst [vmem:[%s195 + $0x2f0] sm:$0xff] %v1188
        %1320 = vst [vmem:[%s195 + $0x2f8] sm:$0xff] %v1220
        %1321 = vst [vmem:[%s195 + $0x300] sm:$0xff] %v997
        %1322 = vst [vmem:[%s195 + $0x308] sm:$0xff] %v1029
        %1323 = vst [vmem:[%s195 + $0x310] sm:$0xff] %v1061
        %1324 = vst [vmem:[%s195 + $0x318] sm:$0xff] %v1093
        %1325 = vst [vmem:[%s195 + $0x320] sm:$0xff] %v1125
        %1326 = vst [vmem:[%s195 + $0x328] sm:$0xff] %v1157
        %1327 = vst [vmem:[%s195 + $0x330] sm:$0xff] %v1189
        %1328 = vst [vmem:[%s195 + $0x338] sm:$0xff] %v1221
        %1329 = vst [vmem:[%s195 + $0x340] sm:$0xff] %v998
        %1330 = vst [vmem:[%s195 + $0x348] sm:$0xff] %v1030
        %1331 = vst [vmem:[%s195 + $0x350] sm:$0xff] %v1062
        %1332 = vst [vmem:[%s195 + $0x358] sm:$0xff] %v1094
        %1333 = vst [vmem:[%s195 + $0x360] sm:$0xff] %v1126
        %1334 = vst [vmem:[%s195 + $0x368] sm:$0xff] %v1158
        %1335 = vst [vmem:[%s195 + $0x370] sm:$0xff] %v1190
        %1336 = vst [vmem:[%s195 + $0x378] sm:$0xff] %v1222
        %1337 = vst [vmem:[%s195 + $0x380] sm:$0xff] %v999
        %1338 = vst [vmem:[%s195 + $0x388] sm:$0xff] %v1031
        %1339 = vst [vmem:[%s195 + $0x390] sm:$0xff] %v1063
        %1340 = vst [vmem:[%s195 + $0x398] sm:$0xff] %v1095
        %1341 = vst [vmem:[%s195 + $0x3a0] sm:$0xff] %v1127
        %1342 = vst [vmem:[%s195 + $0x3a8] sm:$0xff] %v1159
        %1343 = vst [vmem:[%s195 + $0x3b0] sm:$0xff] %v1191
        %1344 = vst [vmem:[%s195 + $0x3b8] sm:$0xff] %v1223
        %1345 = vst [vmem:[%s195 + $0x3c0] sm:$0xff] %v1000
        %1346 = vst [vmem:[%s195 + $0x3c8] sm:$0xff] %v1032
        %1347 = vst [vmem:[%s195 + $0x3d0] sm:$0xff] %v1064
        %1348 = vst [vmem:[%s195 + $0x3d8] sm:$0xff] %v1096
        %1349 = vst [vmem:[%s195 + $0x3e0] sm:$0xff] %v1128
        %1350 = vst [vmem:[%s195 + $0x3e8] sm:$0xff] %v1160
        %1351 = vst [vmem:[%s195 + $0x3f0] sm:$0xff] %v1192
        %1352 = vst [vmem:[%s195 + $0x3f8] sm:$0xff] %v1224
        %s1353 = smul.u32 8, %s19
        %p1354 = scmp.lt.s32.totalorder %s18, 1
        %s1355 = scalar_select %p1354, %s18, 1
        %p1356 = scmp.lt.s32.totalorder %s1353, 7
        %s1357 = scalar_select %p1356, %s1353, 7
        %s1358 = smul.addr %s1355, 128
        %s1359 = sadd.s32 %s1357, %s1358
        %s1360 = smul.addr %s1359, 8
        %s1361 = scalar_lea.vmem %s2, %s1360
        // Predicated region
        $region33: #{quant_conv_forward.3} parent=27 // pred_check
          %p1362 = pneg %p95
        $region34: #{quant_conv_forward.3} parent=27 // pred_check_branch
          %1364 = sbr.rel (%p1362) target = $region36
        $region35: #{quant_conv_forward.3} parent=27 // pred_region
          %s1365 = smul.u32 8, %s19
        $region36: #{quant_conv_forward.3} parent=27 // pred_fallthru
          _
      $region28: #{quant_conv_forward.3} parent=5 // pred_fallthru
        _
      %p1366 = scmp.le.s32.totalorder 2, %s9
      // Predicated region
      $region37: #{quant_conv_forward.3} parent=5 // pred_check
        %p1367 = pneg %p1366
      $region38: #{quant_conv_forward.3} parent=5 // pred_check_branch
        %1369 = sbr.rel (%p1367) target = $region40
      $region39: #{quant_conv_forward.3} parent=5 // pred_region
        %s1370 = ssub.s32 %s9, 2
        // Predicated region
        $region41: #{quant_conv_forward.3} parent=39 // pred_check
          %p1371 = pneg %p101
        $region42: #{quant_conv_forward.3} parent=39 // pred_check_branch
          %1373 = sbr.rel (%p1371) target = $region44
        $region43: #{quant_conv_forward.3} parent=39 // pred_region
          %s1374 = smul.u32 8, %s21
          %p1375 = scmp.lt.s32.totalorder %s20, 1
          %s1376 = scalar_select %p1375, %s20, 1
          %p1377 = scmp.lt.s32.totalorder %s1374, 7
          %s1378 = scalar_select %p1377, %s1374, 7
          %s1379 = smul.addr %s1376, 128
          %s1380 = sadd.s32 %s1378, %s1379
          %s1381 = smul.addr %s1380, 8
          %s1382 = scalar_lea.vmem %s2, %s1381
        $region44: #{quant_conv_forward.3} parent=39 // pred_fallthru
          _
      $region40: #{quant_conv_forward.3} parent=5 // pred_fallthru
        _
    $region6: #{quant_conv_forward.3} parent=1 // loop_footer
      %s13 = sadd.s32 1, %s9
    $region7: #{quant_conv_forward.3} parent=1 // loop_footer_branch
      %8 = sbr.rel target = $region3
    $region8: #{quant_conv_forward.3} parent=1 // loop_exit
      _
    %1383 = vsyncpa [#allocation3], 1
    %s1384 = scalar_lea.sflag [#allocation3], 1
    %1385 = vsyncpa %s1384, 1

// kernel: quant_conv_forward.2
$region0: #{quant_conv_forward.2}
  #allocation0 [shape = 'u32[]', space=smem, size = 0x4, offset = 0x4, fixed_abs, tag = 'smem constant byte address 0x4 - core index']
  #allocation1 [shape = 'u32[144,128]{1,0:T(1,128)}', space=vmem, size = 0x12000, scoped, tag = 'internal scratch']
  %s0 = inlined_call_operand.vmem [shape: f32[2], index: 0, kind: input, shape index: {}]
  %s1 = inlined_call_operand.vmem [shape: f32[2,1024,27], index: 1, kind: input, shape index: {}]
  %s2 = inlined_call_operand.vmem [shape: bf16[27,128], index: 2, kind: input, shape index: {}]
  %s3 = inlined_call_operand.vmem [shape: f32[1,128], index: 3, kind: input, shape index: {}]
  %s4 = inlined_call_operand.vmem [shape: f32[2,1024,128], index: 4, kind: output, shape index: {0}]
  %s5 = inlined_call_operand.vmem [shape: f32[2,1,8,128], index: 5, kind: output, shape index: {1}]
  %6 = xla_tuple %s4, %s5
  %s7 = sld [smem:[#allocation0]]
  $region61: #{quant_conv_forward.2} parent=0
    _
  %s9 = ssub.s32 1, %s7
  %s10 = scalar_select 0, %s9, %s7
  $region1: #{quant_conv_forward.2} parent=0
    #allocation2 [shape = 'u8[512]{0}', space=smem, size = 0x200, scoped, tag = 'input window, operand 0, single buffered']
    #allocation3 [shape = 's32[2]{0}', space=sflag, size = 0x8, scoped, tag = 'scoped memory for quant_conv_forward.2']
    %11 = vsyncpa [#allocation3], 0
    loop: start=0, step=1, limit=4
    $region2: #{quant_conv_forward.2} parent=1 // loop_pre_header
      _
    $region3: #{quant_conv_forward.2} parent=1 // loop_header
      %s13 = sphi 0, %s17
      %p14 = scmp.ge.s32.totalorder %s13, 4
      %s20 = sphi 0, %s32
      %s21 = sphi 0, %s28
      %s22 = sphi 0, %s20
      %s23 = sphi 0, %s21
      %s24 = sphi 0, %s22
      %s25 = sphi 0, %s23
      %s33 = sphi 0, %s33
      %s35 = sphi 0, %s33
      %s36 = sphi 0, %s35
      %s50 = sphi 0, %s36
      %s58 = sphi 0, %s60
      %s61 = sphi 0, %s58
      %s62 = sphi 0, %s61
      %s78 = sphi 0, %s62
      %s82 = sphi 0, %s82
      %s84 = sphi 0, %s82
      %s85 = sphi 0, %s84
      %s99 = sphi 0, %s85
      %s103 = sphi 0, %s103
      %s105 = sphi 0, %s103
      %s106 = sphi 0, %s105
      %s120 = sphi 0, %s106
      %s128 = sphi 0, %s130
      %s131 = sphi 0, %s128
      %s132 = sphi 0, %s131
      %s148 = sphi 0, %s132
      %s156 = sphi 0, %s158
      %s159 = sphi 0, %s156
      %s160 = sphi 0, %s159
      %s176 = sphi 0, %s160
    $region4: #{quant_conv_forward.2} parent=1 // loop_header_branch
      %16 = sbr.rel (%p14) target = $region8
    $region5: #{quant_conv_forward.2} parent=1 // loop_body
      %s18 = ssub.s32 %s13, 1
      %s19 = ssub.s32 %s13, 2
      %s26 = sadd.s32 1, %s21
      %p27 = scmp.ge.s32.totalorder %s26, 1
      %s28 = scalar_select %p27, 0, %s26
      %s29 = sadd.s32 1, %s20
      %s30 = scalar_select %p27, %s29, %s20
      %p31 = scmp.ge.s32.totalorder %s30, 2
      %s32 = scalar_select %p31, 0, %s30
      %s34 = sadd.s32 %s33, 1
      %p37 = scmp.eq.s32.totalorder %s13, 1
      %p38 = scmp.ne.s32.totalorder %s33, %s35
      %p39 = scmp.eq.s32.totalorder %s13, 0
      %p40 = por %p38, %p39
      %p41 = scmp.ne.s32.totalorder %s33, %s35
      %p42 = scmp.eq.s32.totalorder %s18, 1
      %p43 = por %p41, %p42
      %p44 = scmp.ne.s32.totalorder %s35, %s36
      %p45 = scmp.eq.s32.totalorder %s18, 0
      %p46 = por %p44, %p45
      %p47 = scmp.ne.s32.totalorder %s35, %s36
      %p48 = scmp.eq.s32.totalorder %s19, 1
      %p49 = por %p47, %p48
      %p51 = scmp.ne.s32.totalorder %s36, %s50
      %p52 = scmp.eq.s32.totalorder %s19, 0
      %p53 = por %p51, %p52
      %s54 = ssub.s32 %s20, %s32
      %s55 = ssub.s32 %s21, %s28
      %s56 = sor.u32 %s54, %s55
      %p57 = scmp.eq.s32.totalorder %s56, 0
      %s59 = sadd.s32 %s58, 1
      %s60 = scalar_select %p57, %s58, %s59
      %p63 = pneg %p57
      %p64 = scmp.eq.s32.totalorder %s13, 1
      %p65 = por %p63, %p64
      %p66 = scmp.ne.s32.totalorder %s58, %s61
      %p67 = scmp.eq.s32.totalorder %s13, 0
      %p68 = por %p66, %p67
      %p69 = scmp.ne.s32.totalorder %s58, %s61
      %p70 = scmp.eq.s32.totalorder %s18, 1
      %p71 = por %p69, %p70
      %p72 = scmp.ne.s32.totalorder %s61, %s62
      %p73 = scmp.eq.s32.totalorder %s18, 0
      %p74 = por %p72, %p73
      %p75 = scmp.ne.s32.totalorder %s61, %s62
      %p76 = scmp.eq.s32.totalorder %s19, 1
      %p77 = por %p75, %p76
      %p79 = scmp.ne.s32.totalorder %s62, %s78
      %p80 = scmp.eq.s32.totalorder %s19, 0
      %p81 = por %p79, %p80
      %s83 = sadd.s32 %s82, 1
      %p86 = scmp.eq.s32.totalorder %s13, 1
      %p87 = scmp.ne.s32.totalorder %s82, %s84
      %p88 = scmp.eq.s32.totalorder %s13, 0
      %p89 = por %p87, %p88
      %p90 = scmp.ne.s32.totalorder %s82, %s84
      %p91 = scmp.eq.s32.totalorder %s18, 1
      %p92 = por %p90, %p91
      %p93 = scmp.ne.s32.totalorder %s84, %s85
      %p94 = scmp.eq.s32.totalorder %s18, 0
      %p95 = por %p93, %p94
      %p96 = scmp.ne.s32.totalorder %s84, %s85
      %p97 = scmp.eq.s32.totalorder %s19, 1
      %p98 = por %p96, %p97
      %p100 = scmp.ne.s32.totalorder %s85, %s99
      %p101 = scmp.eq.s32.totalorder %s19, 0
      %p102 = por %p100, %p101
      %s104 = sadd.s32 %s103, 1
      %p107 = scmp.eq.s32.totalorder %s13, 1
      %p108 = scmp.ne.s32.totalorder %s103, %s105
      %p109 = scmp.eq.s32.totalorder %s13, 0
      %p110 = por %p108, %p109
      %p111 = scmp.ne.s32.totalorder %s103, %s105
      %p112 = scmp.eq.s32.totalorder %s18, 1
      %p113 = por %p111, %p112
      %p114 = scmp.ne.s32.totalorder %s105, %s106
      %p115 = scmp.eq.s32.totalorder %s18, 0
      %p116 = por %p114, %p115
      %p117 = scmp.ne.s32.totalorder %s105, %s106
      %p118 = scmp.eq.s32.totalorder %s19, 1
      %p119 = por %p117, %p118
      %p121 = scmp.ne.s32.totalorder %s106, %s120
      %p122 = scmp.eq.s32.totalorder %s19, 0
      %p123 = por %p121, %p122
      %s124 = ssub.s32 %s20, %s32
      %s125 = ssub.s32 %s21, %s28
      %s126 = sor.u32 %s124, %s125
      %p127 = scmp.eq.s32.totalorder %s126, 0
      %s129 = sadd.s32 %s128, 1
      %s130 = scalar_select %p127, %s128, %s129
      %p133 = pneg %p127
      %p134 = scmp.eq.s32.totalorder %s13, 1
      %p135 = por %p133, %p134
      %p136 = scmp.ne.s32.totalorder %s128, %s131
      %p137 = scmp.eq.s32.totalorder %s13, 0
      %p138 = por %p136, %p137
      %p139 = scmp.ne.s32.totalorder %s128, %s131
      %p140 = scmp.eq.s32.totalorder %s18, 1
      %p141 = por %p139, %p140
      %p142 = scmp.ne.s32.totalorder %s131, %s132
      %p143 = scmp.eq.s32.totalorder %s18, 0
      %p144 = por %p142, %p143
      %p145 = scmp.ne.s32.totalorder %s131, %s132
      %p146 = scmp.eq.s32.totalorder %s19, 1
      %p147 = por %p145, %p146
      %p149 = scmp.ne.s32.totalorder %s132, %s148
      %p150 = scmp.eq.s32.totalorder %s19, 0
      %p151 = por %p149, %p150
      %s152 = ssub.s32 %s20, %s32
      %s153 = ssub.s32 %s21, %s28
      %s154 = sor.u32 %s152, %s153
      %p155 = scmp.eq.s32.totalorder %s154, 0
      %s157 = sadd.s32 %s156, 1
      %s158 = scalar_select %p155, %s156, %s157
      %p161 = pneg %p155
      %p162 = scmp.eq.s32.totalorder %s13, 1
      %p163 = por %p161, %p162
      %p164 = scmp.ne.s32.totalorder %s156, %s159
      %p165 = scmp.eq.s32.totalorder %s13, 0
      %p166 = por %p164, %p165
      %p167 = scmp.ne.s32.totalorder %s156, %s159
      %p168 = scmp.eq.s32.totalorder %s18, 1
      %p169 = por %p167, %p168
      %p170 = scmp.ne.s32.totalorder %s159, %s160
      %p171 = scmp.eq.s32.totalorder %s18, 0
      %p172 = por %p170, %p171
      %p173 = scmp.ne.s32.totalorder %s159, %s160
      %p174 = scmp.eq.s32.totalorder %s19, 1
      %p175 = por %p173, %p174
      %p177 = scmp.ne.s32.totalorder %s160, %s176
      %p178 = scmp.eq.s32.totalorder %s19, 0
      %p179 = por %p177, %p178
      %p180 = scmp.le.s32.totalorder 1, %s13
      %p181 = scmp.lt.s32.totalorder %s13, 3
      %p182 = pnand %p180, %p181
      %p183 = pneg %p182
      // Predicated region
      $region9: #{quant_conv_forward.2} parent=5 // pred_check
        _
      $region10: #{quant_conv_forward.2} parent=5 // pred_check_branch
        %185 = sbr.rel (%p182) target = $region12
      $region11: #{quant_conv_forward.2} parent=5 // pred_region
        %s186 = ssub.s32 %s13, 1
        // Predicated region
        $region13: #{quant_conv_forward.2} parent=11 // pred_check
          %p187 = pneg %p46
        $region14: #{quant_conv_forward.2} parent=11 // pred_check_branch
          %189 = sbr.rel (%p187) target = $region16
        $region15: #{quant_conv_forward.2} parent=11 // pred_region
          %s191 = ssub.s32 16, 16
          %192 = vsyncadd [#allocation3], %s191
          %s194 = sshll.u32 %s0, 4
          %s195 = int_to_ptr.vmem [resolvable:$true] %s194
          %197 = dma.vmem_to_smem %s195, 16, [#allocation2], [#allocation3]
        $region16: #{quant_conv_forward.2} parent=11 // pred_fallthru
          _
        // Predicated region
        $region17: #{quant_conv_forward.2} parent=11 // pred_check
          %p198 = pneg %p95
        $region18: #{quant_conv_forward.2} parent=11 // pred_check_branch
          %200 = sbr.rel (%p198) target = $region20
        $region19: #{quant_conv_forward.2} parent=11 // pred_region
          _
        $region20: #{quant_conv_forward.2} parent=11 // pred_fallthru
          _
        // Predicated region
        $region21: #{quant_conv_forward.2} parent=11 // pred_check
          %p201 = pneg %p116
        $region22: #{quant_conv_forward.2} parent=11 // pred_check_branch
          %203 = sbr.rel (%p201) target = $region24
        $region23: #{quant_conv_forward.2} parent=11 // pred_region
          _
        $region24: #{quant_conv_forward.2} parent=11 // pred_fallthru
          _
      $region12: #{quant_conv_forward.2} parent=5 // pred_fallthru
        _
      %p204 = scmp.lt.s32.totalorder %s13, 2
      // Predicated region
      $region25: #{quant_conv_forward.2} parent=5 // pred_check
        %p205 = pneg %p204
      $region26: #{quant_conv_forward.2} parent=5 // pred_check_branch
        %207 = sbr.rel (%p205) target = $region28
      $region27: #{quant_conv_forward.2} parent=5 // pred_region
        // Predicated region
        $region29: #{quant_conv_forward.2} parent=27 // pred_check
          %p208 = pneg %p68
        $region30: #{quant_conv_forward.2} parent=27 // pred_check_branch
          %210 = sbr.rel (%p208) target = $region32
        $region31: #{quant_conv_forward.2} parent=27 // pred_region
          %s211 = smul.u32 128, %s21
          %p212 = scmp.lt.s32.totalorder %s20, 1
          %s213 = scalar_select %p212, %s20, 1
          %p214 = scmp.lt.s32.totalorder %s211, 127
          %s215 = scalar_select %p214, %s211, 127
          %s216 = smul.addr %s213, 128
          %s217 = sadd.s32 %s215, %s216
          %s218 = smul.addr %s217, 8
          %s219 = scalar_lea.vmem %s1, %s218
          %s220 = smul.u32 128, %s21
        $region32: #{quant_conv_forward.2} parent=27 // pred_fallthru
          _
      $region28: #{quant_conv_forward.2} parent=5 // pred_fallthru
        _
      %p221 = scmp.le.s32.totalorder 1, %s13
      %p222 = scmp.lt.s32.totalorder %s13, 3
      %p223 = pnand %p221, %p222
      %p224 = pneg %p223
      // Predicated region
      $region33: #{quant_conv_forward.2} parent=5 // pred_check
        _
      $region34: #{quant_conv_forward.2} parent=5 // pred_check_branch
        %226 = sbr.rel (%p223) target = $region36
      $region35: #{quant_conv_forward.2} parent=5 // pred_region
        %s227 = ssub.s32 %s13, 1
        // Predicated region
        $region37: #{quant_conv_forward.2} parent=35 // pred_check
          %p228 = pneg %p46
        $region38: #{quant_conv_forward.2} parent=35 // pred_check_branch
          %230 = sbr.rel (%p228) target = $region40
        $region39: #{quant_conv_forward.2} parent=35 // pred_region
          %231 = dma.done [#allocation3], 16
        $region40: #{quant_conv_forward.2} parent=35 // pred_fallthru
          _
        %232 = sfence
        %p233 = pneg %p46
        %p234 = pneg %p43
        %s235 = smul.u32 128, %s23
        %p236 = scmp.lt.s32.totalorder %s22, 1
        %s237 = scalar_select %p236, %s22, 1
        %p238 = scmp.lt.s32.totalorder %s235, 127
        %s239 = scalar_select %p238, %s235, 127
        %s240 = smul.addr %s237, 128
        %s241 = sadd.s32 %s239, %s240
        %s242 = smul.addr %s241, 8
        %s243 = scalar_lea.vmem %s1, %s242
        %p244 = pneg %p74
        %p245 = pneg %p71
        %p246 = pneg %p95
        %p247 = pneg %p92
        %p248 = pneg %p116
        %p249 = pneg %p113
        %p250 = pneg %p144
        %p251 = pneg %p141
        %s252 = smul.u32 128, %s23
        %p253 = scmp.lt.s32.totalorder %s22, 1
        %s254 = scalar_select %p253, %s22, 1
        %p255 = scmp.lt.s32.totalorder %s252, 127
        %s256 = scalar_select %p255, %s252, 127
        %s257 = smul.addr %s254, 128
        %s258 = sadd.s32 %s256, %s257
        %s259 = smul.addr %s258, 8
        %s260 = scalar_lea.vmem %s4, %s259
        %p261 = pneg %p172
        %p262 = pneg %p169
        %p263 = scmp.lt.s32.totalorder %s22, 1
        %s264 = scalar_select %p263, %s22, 1
        %p265 = scmp.lt.s32.totalorder %s23, 0
        %s266 = scalar_select %p265, %s23, 0
        %s267 = sadd.s32 %s266, %s264
        %s268 = smul.addr %s267, 8
        %s269 = scalar_lea.vmem %s5, %s268
        %s270 = smul.u32 128, %s23
        %p271 = scmp.lt.s32.totalorder %s22, 1
        %s272 = scalar_select %p271, %s22, 1
        %p273 = scmp.lt.s32.totalorder %s270, 127
        %s274 = scalar_select %p273, %s270, 127
        %s275 = smul.addr %s272, 128
        %s276 = sadd.s32 %s274, %s275
        %s277 = smul.addr %s276, 8
        %s278 = scalar_lea.vmem %s1, %s277
        %s279 = smul.u32 128, %s23
        %s280 = smul.u32 128, %s23
        %p281 = scmp.lt.s32.totalorder %s22, 1
        %s282 = scalar_select %p281, %s22, 1
        %p283 = scmp.lt.s32.totalorder %s280, 127
        %s284 = scalar_select %p283, %s280, 127
        %s285 = smul.addr %s282, 128
        %s286 = sadd.s32 %s284, %s285
        %s287 = smul.addr %s286, 8
        %s288 = scalar_lea.vmem %s4, %s287
        %s289 = smul.u32 128, %s23
        %p290 = scmp.lt.s32.totalorder %s22, 1
        %s291 = scalar_select %p290, %s22, 1
        %p292 = scmp.lt.s32.totalorder %s23, 0
        %s293 = scalar_select %p292, %s23, 0
        %s294 = sadd.s32 %s293, %s291
        %s295 = smul.addr %s294, 8
        %s296 = scalar_lea.vmem %s5, %s295
        %s298 = sld [smem:[#allocation2]]
        %s299 = sld [smem:[#allocation2 + $0x1]]
        %v300 = vld [vmem:[%s278] sm:$0xff]
        %v301 = vld [vmem:[%s278 + $0x8] sm:$0xff]
        %v302 = vld [vmem:[%s278 + $0x10] sm:$0xff]
        %v303 = vld [vmem:[%s278 + $0x18] sm:$0xff]
        %v304 = vld [vmem:[%s278 + $0x20] sm:$0xff]
        %v305 = vld [vmem:[%s278 + $0x28] sm:$0xff]
        %v306 = vld [vmem:[%s278 + $0x30] sm:$0xff]
        %v307 = vld [vmem:[%s278 + $0x38] sm:$0xff]
        %v308 = vld [vmem:[%s278 + $0x40] sm:$0xff]
        %v309 = vld [vmem:[%s278 + $0x48] sm:$0xff]
        %v310 = vld [vmem:[%s278 + $0x50] sm:$0xff]
        %v311 = vld [vmem:[%s278 + $0x58] sm:$0xff]
        %v312 = vld [vmem:[%s278 + $0x60] sm:$0xff]
        %v313 = vld [vmem:[%s278 + $0x68] sm:$0xff]
        %v314 = vld [vmem:[%s278 + $0x70] sm:$0xff]
        %v315 = vld [vmem:[%s278 + $0x78] sm:$0xff]
        %v316 = vld [vmem:[%s278 + $0x80] sm:$0xff]
        %v317 = vld [vmem:[%s278 + $0x88] sm:$0xff]
        %v318 = vld [vmem:[%s278 + $0x90] sm:$0xff]
        %v319 = vld [vmem:[%s278 + $0x98] sm:$0xff]
        %v320 = vld [vmem:[%s278 + $0xa0] sm:$0xff]
        %v321 = vld [vmem:[%s278 + $0xa8] sm:$0xff]
        %v322 = vld [vmem:[%s278 + $0xb0] sm:$0xff]
        %v323 = vld [vmem:[%s278 + $0xb8] sm:$0xff]
        %v324 = vld [vmem:[%s278 + $0xc0] sm:$0xff]
        %v325 = vld [vmem:[%s278 + $0xc8] sm:$0xff]
        %v326 = vld [vmem:[%s278 + $0xd0] sm:$0xff]
        %v327 = vld [vmem:[%s278 + $0xd8] sm:$0xff]
        %v328 = vld [vmem:[%s278 + $0xe0] sm:$0xff]
        %v329 = vld [vmem:[%s278 + $0xe8] sm:$0xff]
        %v330 = vld [vmem:[%s278 + $0xf0] sm:$0xff]
        %v331 = vld [vmem:[%s278 + $0xf8] sm:$0xff]
        %v332 = vld [vmem:[%s278 + $0x100] sm:$0xff]
        %v333 = vld [vmem:[%s278 + $0x108] sm:$0xff]
        %v334 = vld [vmem:[%s278 + $0x110] sm:$0xff]
        %v335 = vld [vmem:[%s278 + $0x118] sm:$0xff]
        %v336 = vld [vmem:[%s278 + $0x120] sm:$0xff]
        %v337 = vld [vmem:[%s278 + $0x128] sm:$0xff]
        %v338 = vld [vmem:[%s278 + $0x130] sm:$0xff]
        %v339 = vld [vmem:[%s278 + $0x138] sm:$0xff]
        %v340 = vld [vmem:[%s278 + $0x140] sm:$0xff]
        %v341 = vld [vmem:[%s278 + $0x148] sm:$0xff]
        %v342 = vld [vmem:[%s278 + $0x150] sm:$0xff]
        %v343 = vld [vmem:[%s278 + $0x158] sm:$0xff]
        %v344 = vld [vmem:[%s278 + $0x160] sm:$0xff]
        %v345 = vld [vmem:[%s278 + $0x168] sm:$0xff]
        %v346 = vld [vmem:[%s278 + $0x170] sm:$0xff]
        %v347 = vld [vmem:[%s278 + $0x178] sm:$0xff]
        %v348 = vld [vmem:[%s278 + $0x180] sm:$0xff]
        %v349 = vld [vmem:[%s278 + $0x188] sm:$0xff]
        %v350 = vld [vmem:[%s278 + $0x190] sm:$0xff]
        %v351 = vld [vmem:[%s278 + $0x198] sm:$0xff]
        %v352 = vld [vmem:[%s278 + $0x1a0] sm:$0xff]
        %v353 = vld [vmem:[%s278 + $0x1a8] sm:$0xff]
        %v354 = vld [vmem:[%s278 + $0x1b0] sm:$0xff]
        %v355 = vld [vmem:[%s278 + $0x1b8] sm:$0xff]
        %v356 = vld [vmem:[%s278 + $0x1c0] sm:$0xff]
        %v357 = vld [vmem:[%s278 + $0x1c8] sm:$0xff]
        %v358 = vld [vmem:[%s278 + $0x1d0] sm:$0xff]
        %v359 = vld [vmem:[%s278 + $0x1d8] sm:$0xff]
        %v360 = vld [vmem:[%s278 + $0x1e0] sm:$0xff]
        %v361 = vld [vmem:[%s278 + $0x1e8] sm:$0xff]
        %v362 = vld [vmem:[%s278 + $0x1f0] sm:$0xff]
        %v363 = vld [vmem:[%s278 + $0x1f8] sm:$0xff]
        %v364 = vld [vmem:[%s278 + $0x200] sm:$0xff]
        %v365 = vld [vmem:[%s278 + $0x208] sm:$0xff]
        %v366 = vld [vmem:[%s278 + $0x210] sm:$0xff]
        %v367 = vld [vmem:[%s278 + $0x218] sm:$0xff]
        %v368 = vld [vmem:[%s278 + $0x220] sm:$0xff]
        %v369 = vld [vmem:[%s278 + $0x228] sm:$0xff]
        %v370 = vld [vmem:[%s278 + $0x230] sm:$0xff]
        %v371 = vld [vmem:[%s278 + $0x238] sm:$0xff]
        %v372 = vld [vmem:[%s278 + $0x240] sm:$0xff]
        %v373 = vld [vmem:[%s278 + $0x248] sm:$0xff]
        %v374 = vld [vmem:[%s278 + $0x250] sm:$0xff]
        %v375 = vld [vmem:[%s278 + $0x258] sm:$0xff]
        %v376 = vld [vmem:[%s278 + $0x260] sm:$0xff]
        %v377 = vld [vmem:[%s278 + $0x268] sm:$0xff]
        %v378 = vld [vmem:[%s278 + $0x270] sm:$0xff]
        %v379 = vld [vmem:[%s278 + $0x278] sm:$0xff]
        %v380 = vld [vmem:[%s278 + $0x280] sm:$0xff]
        %v381 = vld [vmem:[%s278 + $0x288] sm:$0xff]
        %v382 = vld [vmem:[%s278 + $0x290] sm:$0xff]
        %v383 = vld [vmem:[%s278 + $0x298] sm:$0xff]
        %v384 = vld [vmem:[%s278 + $0x2a0] sm:$0xff]
        %v385 = vld [vmem:[%s278 + $0x2a8] sm:$0xff]
        %v386 = vld [vmem:[%s278 + $0x2b0] sm:$0xff]
        %v387 = vld [vmem:[%s278 + $0x2b8] sm:$0xff]
        %v388 = vld [vmem:[%s278 + $0x2c0] sm:$0xff]
        %v389 = vld [vmem:[%s278 + $0x2c8] sm:$0xff]
        %v390 = vld [vmem:[%s278 + $0x2d0] sm:$0xff]
        %v391 = vld [vmem:[%s278 + $0x2d8] sm:$0xff]
        %v392 = vld [vmem:[%s278 + $0x2e0] sm:$0xff]
        %v393 = vld [vmem:[%s278 + $0x2e8] sm:$0xff]
        %v394 = vld [vmem:[%s278 + $0x2f0] sm:$0xff]
        %v395 = vld [vmem:[%s278 + $0x2f8] sm:$0xff]
        %v396 = vld [vmem:[%s278 + $0x300] sm:$0xff]
        %v397 = vld [vmem:[%s278 + $0x308] sm:$0xff]
        %v398 = vld [vmem:[%s278 + $0x310] sm:$0xff]
        %v399 = vld [vmem:[%s278 + $0x318] sm:$0xff]
        %v400 = vld [vmem:[%s278 + $0x320] sm:$0xff]
        %v401 = vld [vmem:[%s278 + $0x328] sm:$0xff]
        %v402 = vld [vmem:[%s278 + $0x330] sm:$0xff]
        %v403 = vld [vmem:[%s278 + $0x338] sm:$0xff]
        %v404 = vld [vmem:[%s278 + $0x340] sm:$0xff]
        %v405 = vld [vmem:[%s278 + $0x348] sm:$0xff]
        %v406 = vld [vmem:[%s278 + $0x350] sm:$0xff]
        %v407 = vld [vmem:[%s278 + $0x358] sm:$0xff]
        %v408 = vld [vmem:[%s278 + $0x360] sm:$0xff]
        %v409 = vld [vmem:[%s278 + $0x368] sm:$0xff]
        %v410 = vld [vmem:[%s278 + $0x370] sm:$0xff]
        %v411 = vld [vmem:[%s278 + $0x378] sm:$0xff]
        %v412 = vld [vmem:[%s278 + $0x380] sm:$0xff]
        %v413 = vld [vmem:[%s278 + $0x388] sm:$0xff]
        %v414 = vld [vmem:[%s278 + $0x390] sm:$0xff]
        %v415 = vld [vmem:[%s278 + $0x398] sm:$0xff]
        %v416 = vld [vmem:[%s278 + $0x3a0] sm:$0xff]
        %v417 = vld [vmem:[%s278 + $0x3a8] sm:$0xff]
        %v418 = vld [vmem:[%s278 + $0x3b0] sm:$0xff]
        %v419 = vld [vmem:[%s278 + $0x3b8] sm:$0xff]
        %v420 = vld [vmem:[%s278 + $0x3c0] sm:$0xff]
        %v421 = vld [vmem:[%s278 + $0x3c8] sm:$0xff]
        %v422 = vld [vmem:[%s278 + $0x3d0] sm:$0xff]
        %v423 = vld [vmem:[%s278 + $0x3d8] sm:$0xff]
        %v424 = vld [vmem:[%s278 + $0x3e0] sm:$0xff]
        %v425 = vld [vmem:[%s278 + $0x3e8] sm:$0xff]
        %v426 = vld [vmem:[%s278 + $0x3f0] sm:$0xff]
        %v427 = vld [vmem:[%s278 + $0x3f8] sm:$0xff]
        %v428 = vstv %s298
        %v429 = vmul.f32 %v300, %v428
        %v430 = vmul.f32 %v301, %v428
        %v431 = vmul.f32 %v302, %v428
        %v432 = vmul.f32 %v303, %v428
        %v433 = vmul.f32 %v304, %v428
        %v434 = vmul.f32 %v305, %v428
        %v435 = vmul.f32 %v306, %v428
        %v436 = vmul.f32 %v307, %v428
        %v437 = vmul.f32 %v308, %v428
        %v438 = vmul.f32 %v309, %v428
        %v439 = vmul.f32 %v310, %v428
        %v440 = vmul.f32 %v311, %v428
        %v441 = vmul.f32 %v312, %v428
        %v442 = vmul.f32 %v313, %v428
        %v443 = vmul.f32 %v314, %v428
        %v444 = vmul.f32 %v315, %v428
        %v445 = vmul.f32 %v316, %v428
        %v446 = vmul.f32 %v317, %v428
        %v447 = vmul.f32 %v318, %v428
        %v448 = vmul.f32 %v319, %v428
        %v449 = vmul.f32 %v320, %v428
        %v450 = vmul.f32 %v321, %v428
        %v451 = vmul.f32 %v322, %v428
        %v452 = vmul.f32 %v323, %v428
        %v453 = vmul.f32 %v324, %v428
        %v454 = vmul.f32 %v325, %v428
        %v455 = vmul.f32 %v326, %v428
        %v456 = vmul.f32 %v327, %v428
        %v457 = vmul.f32 %v328, %v428
        %v458 = vmul.f32 %v329, %v428
        %v459 = vmul.f32 %v330, %v428
        %v460 = vmul.f32 %v331, %v428
        %v461 = vmul.f32 %v332, %v428
        %v462 = vmul.f32 %v333, %v428
        %v463 = vmul.f32 %v334, %v428
        %v464 = vmul.f32 %v335, %v428
        %v465 = vmul.f32 %v336, %v428
        %v466 = vmul.f32 %v337, %v428
        %v467 = vmul.f32 %v338, %v428
        %v468 = vmul.f32 %v339, %v428
        %v469 = vmul.f32 %v340, %v428
        %v470 = vmul.f32 %v341, %v428
        %v471 = vmul.f32 %v342, %v428
        %v472 = vmul.f32 %v343, %v428
        %v473 = vmul.f32 %v344, %v428
        %v474 = vmul.f32 %v345, %v428
        %v475 = vmul.f32 %v346, %v428
        %v476 = vmul.f32 %v347, %v428
        %v477 = vmul.f32 %v348, %v428
        %v478 = vmul.f32 %v349, %v428
        %v479 = vmul.f32 %v350, %v428
        %v480 = vmul.f32 %v351, %v428
        %v481 = vmul.f32 %v352, %v428
        %v482 = vmul.f32 %v353, %v428
        %v483 = vmul.f32 %v354, %v428
        %v484 = vmul.f32 %v355, %v428
        %v485 = vmul.f32 %v356, %v428
        %v486 = vmul.f32 %v357, %v428
        %v487 = vmul.f32 %v358, %v428
        %v488 = vmul.f32 %v359, %v428
        %v489 = vmul.f32 %v360, %v428
        %v490 = vmul.f32 %v361, %v428
        %v491 = vmul.f32 %v362, %v428
        %v492 = vmul.f32 %v363, %v428
        %v493 = vmul.f32 %v364, %v428
        %v494 = vmul.f32 %v365, %v428
        %v495 = vmul.f32 %v366, %v428
        %v496 = vmul.f32 %v367, %v428
        %v497 = vmul.f32 %v368, %v428
        %v498 = vmul.f32 %v369, %v428
        %v499 = vmul.f32 %v370, %v428
        %v500 = vmul.f32 %v371, %v428
        %v501 = vmul.f32 %v372, %v428
        %v502 = vmul.f32 %v373, %v428
        %v503 = vmul.f32 %v374, %v428
        %v504 = vmul.f32 %v375, %v428
        %v505 = vmul.f32 %v376, %v428
        %v506 = vmul.f32 %v377, %v428
        %v507 = vmul.f32 %v378, %v428
        %v508 = vmul.f32 %v379, %v428
        %v509 = vmul.f32 %v380, %v428
        %v510 = vmul.f32 %v381, %v428
        %v511 = vmul.f32 %v382, %v428
        %v512 = vmul.f32 %v383, %v428
        %v513 = vmul.f32 %v384, %v428
        %v514 = vmul.f32 %v385, %v428
        %v515 = vmul.f32 %v386, %v428
        %v516 = vmul.f32 %v387, %v428
        %v517 = vmul.f32 %v388, %v428
        %v518 = vmul.f32 %v389, %v428
        %v519 = vmul.f32 %v390, %v428
        %v520 = vmul.f32 %v391, %v428
        %v521 = vmul.f32 %v392, %v428
        %v522 = vmul.f32 %v393, %v428
        %v523 = vmul.f32 %v394, %v428
        %v524 = vmul.f32 %v395, %v428
        %v525 = vmul.f32 %v396, %v428
        %v526 = vmul.f32 %v397, %v428
        %v527 = vmul.f32 %v398, %v428
        %v528 = vmul.f32 %v399, %v428
        %v529 = vmul.f32 %v400, %v428
        %v530 = vmul.f32 %v401, %v428
        %v531 = vmul.f32 %v402, %v428
        %v532 = vmul.f32 %v403, %v428
        %v533 = vmul.f32 %v404, %v428
        %v534 = vmul.f32 %v405, %v428
        %v535 = vmul.f32 %v406, %v428
        %v536 = vmul.f32 %v407, %v428
        %v537 = vmul.f32 %v408, %v428
        %v538 = vmul.f32 %v409, %v428
        %v539 = vmul.f32 %v410, %v428
        %v540 = vmul.f32 %v411, %v428
        %v541 = vmul.f32 %v412, %v428
        %v542 = vmul.f32 %v413, %v428
        %v543 = vmul.f32 %v414, %v428
        %v544 = vmul.f32 %v415, %v428
        %v545 = vmul.f32 %v416, %v428
        %v546 = vmul.f32 %v417, %v428
        %v547 = vmul.f32 %v418, %v428
        %v548 = vmul.f32 %v419, %v428
        %v549 = vmul.f32 %v420, %v428
        %v550 = vmul.f32 %v421, %v428
        %v551 = vmul.f32 %v422, %v428
        %v552 = vmul.f32 %v423, %v428
        %v553 = vmul.f32 %v424, %v428
        %v554 = vmul.f32 %v425, %v428
        %v555 = vmul.f32 %v426, %v428
        %v556 = vmul.f32 %v427, %v428
        %v557 = vround.ne.pseudo %v429
        %v558 = vround.ne.pseudo %v430
        %v559 = vround.ne.pseudo %v431
        %v560 = vround.ne.pseudo %v432
        %v561 = vround.ne.pseudo %v433
        %v562 = vround.ne.pseudo %v434
        %v563 = vround.ne.pseudo %v435
        %v564 = vround.ne.pseudo %v436
        %v565 = vround.ne.pseudo %v437
        %v566 = vround.ne.pseudo %v438
        %v567 = vround.ne.pseudo %v439
        %v568 = vround.ne.pseudo %v440
        %v569 = vround.ne.pseudo %v441
        %v570 = vround.ne.pseudo %v442
        %v571 = vround.ne.pseudo %v443
        %v572 = vround.ne.pseudo %v444
        %v573 = vround.ne.pseudo %v445
        %v574 = vround.ne.pseudo %v446
        %v575 = vround.ne.pseudo %v447
        %v576 = vround.ne.pseudo %v448
        %v577 = vround.ne.pseudo %v449
        %v578 = vround.ne.pseudo %v450
        %v579 = vround.ne.pseudo %v451
        %v580 = vround.ne.pseudo %v452
        %v581 = vround.ne.pseudo %v453
        %v582 = vround.ne.pseudo %v454
        %v583 = vround.ne.pseudo %v455
        %v584 = vround.ne.pseudo %v456
        %v585 = vround.ne.pseudo %v457
        %v586 = vround.ne.pseudo %v458
        %v587 = vround.ne.pseudo %v459
        %v588 = vround.ne.pseudo %v460
        %v589 = vround.ne.pseudo %v461
        %v590 = vround.ne.pseudo %v462
        %v591 = vround.ne.pseudo %v463
        %v592 = vround.ne.pseudo %v464
        %v593 = vround.ne.pseudo %v465
        %v594 = vround.ne.pseudo %v466
        %v595 = vround.ne.pseudo %v467
        %v596 = vround.ne.pseudo %v468
        %v597 = vround.ne.pseudo %v469
        %v598 = vround.ne.pseudo %v470
        %v599 = vround.ne.pseudo %v471
        %v600 = vround.ne.pseudo %v472
        %v601 = vround.ne.pseudo %v473
        %v602 = vround.ne.pseudo %v474
        %v603 = vround.ne.pseudo %v475
        %v604 = vround.ne.pseudo %v476
        %v605 = vround.ne.pseudo %v477
        %v606 = vround.ne.pseudo %v478
        %v607 = vround.ne.pseudo %v479
        %v608 = vround.ne.pseudo %v480
        %v609 = vround.ne.pseudo %v481
        %v610 = vround.ne.pseudo %v482
        %v611 = vround.ne.pseudo %v483
        %v612 = vround.ne.pseudo %v484
        %v613 = vround.ne.pseudo %v485
        %v614 = vround.ne.pseudo %v486
        %v615 = vround.ne.pseudo %v487
        %v616 = vround.ne.pseudo %v488
        %v617 = vround.ne.pseudo %v489
        %v618 = vround.ne.pseudo %v490
        %v619 = vround.ne.pseudo %v491
        %v620 = vround.ne.pseudo %v492
        %v621 = vround.ne.pseudo %v493
        %v622 = vround.ne.pseudo %v494
        %v623 = vround.ne.pseudo %v495
        %v624 = vround.ne.pseudo %v496
        %v625 = vround.ne.pseudo %v497
        %v626 = vround.ne.pseudo %v498
        %v627 = vround.ne.pseudo %v499
        %v628 = vround.ne.pseudo %v500
        %v629 = vround.ne.pseudo %v501
        %v630 = vround.ne.pseudo %v502
        %v631 = vround.ne.pseudo %v503
        %v632 = vround.ne.pseudo %v504
        %v633 = vround.ne.pseudo %v505
        %v634 = vround.ne.pseudo %v506
        %v635 = vround.ne.pseudo %v507
        %v636 = vround.ne.pseudo %v508
        %v637 = vround.ne.pseudo %v509
        %v638 = vround.ne.pseudo %v510
        %v639 = vround.ne.pseudo %v511
        %v640 = vround.ne.pseudo %v512
        %v641 = vround.ne.pseudo %v513
        %v642 = vround.ne.pseudo %v514
        %v643 = vround.ne.pseudo %v515
        %v644 = vround.ne.pseudo %v516
        %v645 = vround.ne.pseudo %v517
        %v646 = vround.ne.pseudo %v518
        %v647 = vround.ne.pseudo %v519
        %v648 = vround.ne.pseudo %v520
        %v649 = vround.ne.pseudo %v521
        %v650 = vround.ne.pseudo %v522
        %v651 = vround.ne.pseudo %v523
        %v652 = vround.ne.pseudo %v524
        %v653 = vround.ne.pseudo %v525
        %v654 = vround.ne.pseudo %v526
        %v655 = vround.ne.pseudo %v527
        %v656 = vround.ne.pseudo %v528
        %v657 = vround.ne.pseudo %v529
        %v658 = vround.ne.pseudo %v530
        %v659 = vround.ne.pseudo %v531
        %v660 = vround.ne.pseudo %v532
        %v661 = vround.ne.pseudo %v533
        %v662 = vround.ne.pseudo %v534
        %v663 = vround.ne.pseudo %v535
        %v664 = vround.ne.pseudo %v536
        %v665 = vround.ne.pseudo %v537
        %v666 = vround.ne.pseudo %v538
        %v667 = vround.ne.pseudo %v539
        %v668 = vround.ne.pseudo %v540
        %v669 = vround.ne.pseudo %v541
        %v670 = vround.ne.pseudo %v542
        %v671 = vround.ne.pseudo %v543
        %v672 = vround.ne.pseudo %v544
        %v673 = vround.ne.pseudo %v545
        %v674 = vround.ne.pseudo %v546
        %v675 = vround.ne.pseudo %v547
        %v676 = vround.ne.pseudo %v548
        %v677 = vround.ne.pseudo %v549
        %v678 = vround.ne.pseudo %v550
        %v679 = vround.ne.pseudo %v551
        %v680 = vround.ne.pseudo %v552
        %v681 = vround.ne.pseudo %v553
        %v682 = vround.ne.pseudo %v554
        %v683 = vround.ne.pseudo %v555
        %v684 = vround.ne.pseudo %v556
        %v685 = vmax.f32 %v557, -128.0
        %v686 = vmax.f32 %v558, -128.0
        %v687 = vmax.f32 %v559, -128.0
        %v688 = vmax.f32 %v560, -128.0
        %v689 = vmax.f32 %v561, -128.0
        %v690 = vmax.f32 %v562, -128.0
        %v691 = vmax.f32 %v563, -128.0
        %v692 = vmax.f32 %v564, -128.0
        %v693 = vmax.f32 %v565, -128.0
        %v694 = vmax.f32 %v566, -128.0
        %v695 = vmax.f32 %v567, -128.0
        %v696 = vmax.f32 %v568, -128.0
        %v697 = vmax.f32 %v569, -128.0
        %v698 = vmax.f32 %v570, -128.0
        %v699 = vmax.f32 %v571, -128.0
        %v700 = vmax.f32 %v572, -128.0
        %v701 = vmax.f32 %v573, -128.0
        %v702 = vmax.f32 %v574, -128.0
        %v703 = vmax.f32 %v575, -128.0
        %v704 = vmax.f32 %v576, -128.0
        %v705 = vmax.f32 %v577, -128.0
        %v706 = vmax.f32 %v578, -128.0
        %v707 = vmax.f32 %v579, -128.0
        %v708 = vmax.f32 %v580, -128.0
        %v709 = vmax.f32 %v581, -128.0
        %v710 = vmax.f32 %v582, -128.0
        %v711 = vmax.f32 %v583, -128.0
        %v712 = vmax.f32 %v584, -128.0
        %v713 = vmax.f32 %v585, -128.0
        %v714 = vmax.f32 %v586, -128.0
        %v715 = vmax.f32 %v587, -128.0
        %v716 = vmax.f32 %v588, -128.0
        %v717 = vmax.f32 %v589, -128.0
        %v718 = vmax.f32 %v590, -128.0
        %v719 = vmax.f32 %v591, -128.0
        %v720 = vmax.f32 %v592, -128.0
        %v721 = vmax.f32 %v593, -128.0
        %v722 = vmax.f32 %v594, -128.0
        %v723 = vmax.f32 %v595, -128.0
        %v724 = vmax.f32 %v596, -128.0
        %v725 = vmax.f32 %v597, -128.0
        %v726 = vmax.f32 %v598, -128.0
        %v727 = vmax.f32 %v599, -128.0
        %v728 = vmax.f32 %v600, -128.0
        %v729 = vmax.f32 %v601, -128.0
        %v730 = vmax.f32 %v602, -128.0
        %v731 = vmax.f32 %v603, -128.0
        %v732 = vmax.f32 %v604, -128.0
        %v733 = vmax.f32 %v605, -128.0
        %v734 = vmax.f32 %v606, -128.0
        %v735 = vmax.f32 %v607, -128.0
        %v736 = vmax.f32 %v608, -128.0
        %v737 = vmax.f32 %v609, -128.0
        %v738 = vmax.f32 %v610, -128.0
        %v739 = vmax.f32 %v611, -128.0
        %v740 = vmax.f32 %v612, -128.0
        %v741 = vmax.f32 %v613, -128.0
        %v742 = vmax.f32 %v614, -128.0
        %v743 = vmax.f32 %v615, -128.0
        %v744 = vmax.f32 %v616, -128.0
        %v745 = vmax.f32 %v617, -128.0
        %v746 = vmax.f32 %v618, -128.0
        %v747 = vmax.f32 %v619, -128.0
        %v748 = vmax.f32 %v620, -128.0
        %v749 = vmax.f32 %v621, -128.0
        %v750 = vmax.f32 %v622, -128.0
        %v751 = vmax.f32 %v623, -128.0
        %v752 = vmax.f32 %v624, -128.0
        %v753 = vmax.f32 %v625, -128.0
        %v754 = vmax.f32 %v626, -128.0
        %v755 = vmax.f32 %v627, -128.0
        %v756 = vmax.f32 %v628, -128.0
        %v757 = vmax.f32 %v629, -128.0
        %v758 = vmax.f32 %v630, -128.0
        %v759 = vmax.f32 %v631, -128.0
        %v760 = vmax.f32 %v632, -128.0
        %v761 = vmax.f32 %v633, -128.0
        %v762 = vmax.f32 %v634, -128.0
        %v763 = vmax.f32 %v635, -128.0
        %v764 = vmax.f32 %v636, -128.0
        %v765 = vmax.f32 %v637, -128.0
        %v766 = vmax.f32 %v638, -128.0
        %v767 = vmax.f32 %v639, -128.0
        %v768 = vmax.f32 %v640, -128.0
        %v769 = vmax.f32 %v641, -128.0
        %v770 = vmax.f32 %v642, -128.0
        %v771 = vmax.f32 %v643, -128.0
        %v772 = vmax.f32 %v644, -128.0
        %v773 = vmax.f32 %v645, -128.0
        %v774 = vmax.f32 %v646, -128.0
        %v775 = vmax.f32 %v647, -128.0
        %v776 = vmax.f32 %v648, -128.0
        %v777 = vmax.f32 %v649, -128.0
        %v778 = vmax.f32 %v650, -128.0
        %v779 = vmax.f32 %v651, -128.0
        %v780 = vmax.f32 %v652, -128.0
        %v781 = vmax.f32 %v653, -128.0
        %v782 = vmax.f32 %v654, -128.0
        %v783 = vmax.f32 %v655, -128.0
        %v784 = vmax.f32 %v656, -128.0
        %v785 = vmax.f32 %v657, -128.0
        %v786 = vmax.f32 %v658, -128.0
        %v787 = vmax.f32 %v659, -128.0
        %v788 = vmax.f32 %v660, -128.0
        %v789 = vmax.f32 %v661, -128.0
        %v790 = vmax.f32 %v662, -128.0
        %v791 = vmax.f32 %v663, -128.0
        %v792 = vmax.f32 %v664, -128.0
        %v793 = vmax.f32 %v665, -128.0
        %v794 = vmax.f32 %v666, -128.0
        %v795 = vmax.f32 %v667, -128.0
        %v796 = vmax.f32 %v668, -128.0
        %v797 = vmax.f32 %v669, -128.0
        %v798 = vmax.f32 %v670, -128.0
        %v799 = vmax.f32 %v671, -128.0
        %v800 = vmax.f32 %v672, -128.0
        %v801 = vmax.f32 %v673, -128.0
        %v802 = vmax.f32 %v674, -128.0
        %v803 = vmax.f32 %v675, -128.0
        %v804 = vmax.f32 %v676, -128.0
        %v805 = vmax.f32 %v677, -128.0
        %v806 = vmax.f32 %v678, -128.0
        %v807 = vmax.f32 %v679, -128.0
        %v808 = vmax.f32 %v680, -128.0
        %v809 = vmax.f32 %v681, -128.0
        %v810 = vmax.f32 %v682, -128.0
        %v811 = vmax.f32 %v683, -128.0
        %v812 = vmax.f32 %v684, -128.0
        %v813 = vmin.f32 %v685, 127.0
        %v814 = vmin.f32 %v686, 127.0
        %v815 = vmin.f32 %v687, 127.0
        %v816 = vmin.f32 %v688, 127.0
        %v817 = vmin.f32 %v689, 127.0
        %v818 = vmin.f32 %v690, 127.0
        %v819 = vmin.f32 %v691, 127.0
        %v820 = vmin.f32 %v692, 127.0
        %v821 = vmin.f32 %v693, 127.0
        %v822 = vmin.f32 %v694, 127.0
        %v823 = vmin.f32 %v695, 127.0
        %v824 = vmin.f32 %v696, 127.0
        %v825 = vmin.f32 %v697, 127.0
        %v826 = vmin.f32 %v698, 127.0
        %v827 = vmin.f32 %v699, 127.0
        %v828 = vmin.f32 %v700, 127.0
        %v829 = vmin.f32 %v701, 127.0
        %v830 = vmin.f32 %v702, 127.0
        %v831 = vmin.f32 %v703, 127.0
        %v832 = vmin.f32 %v704, 127.0
        %v833 = vmin.f32 %v705, 127.0
        %v834 = vmin.f32 %v706, 127.0
        %v835 = vmin.f32 %v707, 127.0
        %v836 = vmin.f32 %v708, 127.0
        %v837 = vmin.f32 %v709, 127.0
        %v838 = vmin.f32 %v710, 127.0
        %v839 = vmin.f32 %v711, 127.0
        %v840 = vmin.f32 %v712, 127.0
        %v841 = vmin.f32 %v713, 127.0
        %v842 = vmin.f32 %v714, 127.0
        %v843 = vmin.f32 %v715, 127.0
        %v844 = vmin.f32 %v716, 127.0
        %v845 = vmin.f32 %v717, 127.0
        %v846 = vmin.f32 %v718, 127.0
        %v847 = vmin.f32 %v719, 127.0
        %v848 = vmin.f32 %v720, 127.0
        %v849 = vmin.f32 %v721, 127.0
        %v850 = vmin.f32 %v722, 127.0
        %v851 = vmin.f32 %v723, 127.0
        %v852 = vmin.f32 %v724, 127.0
        %v853 = vmin.f32 %v725, 127.0
        %v854 = vmin.f32 %v726, 127.0
        %v855 = vmin.f32 %v727, 127.0
        %v856 = vmin.f32 %v728, 127.0
        %v857 = vmin.f32 %v729, 127.0
        %v858 = vmin.f32 %v730, 127.0
        %v859 = vmin.f32 %v731, 127.0
        %v860 = vmin.f32 %v732, 127.0
        %v861 = vmin.f32 %v733, 127.0
        %v862 = vmin.f32 %v734, 127.0
        %v863 = vmin.f32 %v735, 127.0
        %v864 = vmin.f32 %v736, 127.0
        %v865 = vmin.f32 %v737, 127.0
        %v866 = vmin.f32 %v738, 127.0
        %v867 = vmin.f32 %v739, 127.0
        %v868 = vmin.f32 %v740, 127.0
        %v869 = vmin.f32 %v741, 127.0
        %v870 = vmin.f32 %v742, 127.0
        %v871 = vmin.f32 %v743, 127.0
        %v872 = vmin.f32 %v744, 127.0
        %v873 = vmin.f32 %v745, 127.0
        %v874 = vmin.f32 %v746, 127.0
        %v875 = vmin.f32 %v747, 127.0
        %v876 = vmin.f32 %v748, 127.0
        %v877 = vmin.f32 %v749, 127.0
        %v878 = vmin.f32 %v750, 127.0
        %v879 = vmin.f32 %v751, 127.0
        %v880 = vmin.f32 %v752, 127.0
        %v881 = vmin.f32 %v753, 127.0
        %v882 = vmin.f32 %v754, 127.0
        %v883 = vmin.f32 %v755, 127.0
        %v884 = vmin.f32 %v756, 127.0
        %v885 = vmin.f32 %v757, 127.0
        %v886 = vmin.f32 %v758, 127.0
        %v887 = vmin.f32 %v759, 127.0
        %v888 = vmin.f32 %v760, 127.0
        %v889 = vmin.f32 %v761, 127.0
        %v890 = vmin.f32 %v762, 127.0
        %v891 = vmin.f32 %v763, 127.0
        %v892 = vmin.f32 %v764, 127.0
        %v893 = vmin.f32 %v765, 127.0
        %v894 = vmin.f32 %v766, 127.0
        %v895 = vmin.f32 %v767, 127.0
        %v896 = vmin.f32 %v768, 127.0
        %v897 = vmin.f32 %v769, 127.0
        %v898 = vmin.f32 %v770, 127.0
        %v899 = vmin.f32 %v771, 127.0
        %v900 = vmin.f32 %v772, 127.0
        %v901 = vmin.f32 %v773, 127.0
        %v902 = vmin.f32 %v774, 127.0
        %v903 = vmin.f32 %v775, 127.0
        %v904 = vmin.f32 %v776, 127.0
        %v905 = vmin.f32 %v777, 127.0
        %v906 = vmin.f32 %v778, 127.0
        %v907 = vmin.f32 %v779, 127.0
        %v908 = vmin.f32 %v780, 127.0
        %v909 = vmin.f32 %v781, 127.0
        %v910 = vmin.f32 %v782, 127.0
        %v911 = vmin.f32 %v783, 127.0
        %v912 = vmin.f32 %v784, 127.0
        %v913 = vmin.f32 %v785, 127.0
        %v914 = vmin.f32 %v786, 127.0
        %v915 = vmin.f32 %v787, 127.0
        %v916 = vmin.f32 %v788, 127.0
        %v917 = vmin.f32 %v789, 127.0
        %v918 = vmin.f32 %v790, 127.0
        %v919 = vmin.f32 %v791, 127.0
        %v920 = vmin.f32 %v792, 127.0
        %v921 = vmin.f32 %v793, 127.0
        %v922 = vmin.f32 %v794, 127.0
        %v923 = vmin.f32 %v795, 127.0
        %v924 = vmin.f32 %v796, 127.0
        %v925 = vmin.f32 %v797, 127.0
        %v926 = vmin.f32 %v798, 127.0
        %v927 = vmin.f32 %v799, 127.0
        %v928 = vmin.f32 %v800, 127.0
        %v929 = vmin.f32 %v801, 127.0
        %v930 = vmin.f32 %v802, 127.0
        %v931 = vmin.f32 %v803, 127.0
        %v932 = vmin.f32 %v804, 127.0
        %v933 = vmin.f32 %v805, 127.0
        %v934 = vmin.f32 %v806, 127.0
        %v935 = vmin.f32 %v807, 127.0
        %v936 = vmin.f32 %v808, 127.0
        %v937 = vmin.f32 %v809, 127.0
        %v938 = vmin.f32 %v810, 127.0
        %v939 = vmin.f32 %v811, 127.0
        %v940 = vmin.f32 %v812, 127.0
        %v941 = vpack.c.bf16 %v814, %v813
        %v942 = vpack.c.bf16 %v816, %v815
        %v943 = vpack.c.bf16 %v818, %v817
        %v944 = vpack.c.bf16 %v820, %v819
        %v945 = vpack.c.bf16 %v822, %v821
        %v946 = vpack.c.bf16 %v824, %v823
        %v947 = vpack.c.bf16 %v826, %v825
        %v948 = vpack.c.bf16 %v828, %v827
        %v949 = vpack.c.bf16 %v830, %v829
        %v950 = vpack.c.bf16 %v832, %v831
        %v951 = vpack.c.bf16 %v834, %v833
        %v952 = vpack.c.bf16 %v836, %v835
        %v953 = vpack.c.bf16 %v838, %v837
        %v954 = vpack.c.bf16 %v840, %v839
        %v955 = vpack.c.bf16 %v842, %v841
        %v956 = vpack.c.bf16 %v844, %v843
        %v957 = vpack.c.bf16 %v846, %v845
        %v958 = vpack.c.bf16 %v848, %v847
        %v959 = vpack.c.bf16 %v850, %v849
        %v960 = vpack.c.bf16 %v852, %v851
        %v961 = vpack.c.bf16 %v854, %v853
        %v962 = vpack.c.bf16 %v856, %v855
        %v963 = vpack.c.bf16 %v858, %v857
        %v964 = vpack.c.bf16 %v860, %v859
        %v965 = vpack.c.bf16 %v862, %v861
        %v966 = vpack.c.bf16 %v864, %v863
        %v967 = vpack.c.bf16 %v866, %v865
        %v968 = vpack.c.bf16 %v868, %v867
        %v969 = vpack.c.bf16 %v870, %v869
        %v970 = vpack.c.bf16 %v872, %v871
        %v971 = vpack.c.bf16 %v874, %v873
        %v972 = vpack.c.bf16 %v876, %v875
        %v973 = vpack.c.bf16 %v878, %v877
        %v974 = vpack.c.bf16 %v880, %v879
        %v975 = vpack.c.bf16 %v882, %v881
        %v976 = vpack.c.bf16 %v884, %v883
        %v977 = vpack.c.bf16 %v886, %v885
        %v978 = vpack.c.bf16 %v888, %v887
        %v979 = vpack.c.bf16 %v890, %v889
        %v980 = vpack.c.bf16 %v892, %v891
        %v981 = vpack.c.bf16 %v894, %v893
        %v982 = vpack.c.bf16 %v896, %v895
        %v983 = vpack.c.bf16 %v898, %v897
        %v984 = vpack.c.bf16 %v900, %v899
        %v985 = vpack.c.bf16 %v902, %v901
        %v986 = vpack.c.bf16 %v904, %v903
        %v987 = vpack.c.bf16 %v906, %v905
        %v988 = vpack.c.bf16 %v908, %v907
        %v989 = vpack.c.bf16 %v910, %v909
        %v990 = vpack.c.bf16 %v912, %v911
        %v991 = vpack.c.bf16 %v914, %v913
        %v992 = vpack.c.bf16 %v916, %v915
        %v993 = vpack.c.bf16 %v918, %v917
        %v994 = vpack.c.bf16 %v920, %v919
        %v995 = vpack.c.bf16 %v922, %v921
        %v996 = vpack.c.bf16 %v924, %v923
        %v997 = vpack.c.bf16 %v926, %v925
        %v998 = vpack.c.bf16 %v928, %v927
        %v999 = vpack.c.bf16 %v930, %v929
        %v1000 = vpack.c.bf16 %v932, %v931
        %v1001 = vpack.c.bf16 %v934, %v933
        %v1002 = vpack.c.bf16 %v936, %v935
        %v1003 = vpack.c.bf16 %v938, %v937
        %v1004 = vpack.c.bf16 %v940, %v939
        %v1005 = vld [vmem:[%s2] sm:$0xf]
        %v1006 = vld [vmem:[%s2 + $0x4] sm:$0xf]
        %v1007 = vld [vmem:[%s2 + $0x8] sm:$0xf]
        %v1008 = vld [vmem:[%s2 + $0xc] sm:$0x3]
        %v1013 = vunpack.c.l.b16 %v1005
        %v1014 = vunpack.c.l.b16 %v1006
        %v1015 = vunpack.c.l.b16 %v1007
        %v1016 = vunpack.c.l.b16 %v1008
        %v1017 = vpack.c.b16 %v1014, %v1013
        %v1018 = vpack.c.b16 %v1016, %v1015
        %vm1020 = vcmask 220160
        %v1022 = vsel %vm1020, %v941, 0
        %v1025 = vsel %vm1020, %v942, 0
        %v1028 = vsel %vm1020, %v943, 0
        %v1031 = vsel %vm1020, %v944, 0
        %v1034 = vsel %vm1020, %v945, 0
        %v1037 = vsel %vm1020, %v946, 0
        %v1040 = vsel %vm1020, %v947, 0
        %v1043 = vsel %vm1020, %v948, 0
        %v1046 = vsel %vm1020, %v949, 0
        %v1049 = vsel %vm1020, %v950, 0
        %v1052 = vsel %vm1020, %v951, 0
        %v1055 = vsel %vm1020, %v952, 0
        %v1058 = vsel %vm1020, %v953, 0
        %v1061 = vsel %vm1020, %v954, 0
        %v1064 = vsel %vm1020, %v955, 0
        %v1067 = vsel %vm1020, %v956, 0
        %v1070 = vsel %vm1020, %v957, 0
        %v1073 = vsel %vm1020, %v958, 0
        %v1076 = vsel %vm1020, %v959, 0
        %v1079 = vsel %vm1020, %v960, 0
        %v1082 = vsel %vm1020, %v961, 0
        %v1085 = vsel %vm1020, %v962, 0
        %v1088 = vsel %vm1020, %v963, 0
        %v1091 = vsel %vm1020, %v964, 0
        %v1094 = vsel %vm1020, %v965, 0
        %v1097 = vsel %vm1020, %v966, 0
        %v1100 = vsel %vm1020, %v967, 0
        %v1103 = vsel %vm1020, %v968, 0
        %v1106 = vsel %vm1020, %v969, 0
        %v1109 = vsel %vm1020, %v970, 0
        %v1112 = vsel %vm1020, %v971, 0
        %v1115 = vsel %vm1020, %v972, 0
        %v1118 = vsel %vm1020, %v973, 0
        %v1121 = vsel %vm1020, %v974, 0
        %v1124 = vsel %vm1020, %v975, 0
        %v1127 = vsel %vm1020, %v976, 0
        %v1130 = vsel %vm1020, %v977, 0
        %v1133 = vsel %vm1020, %v978, 0
        %v1136 = vsel %vm1020, %v979, 0
        %v1139 = vsel %vm1020, %v980, 0
        %v1142 = vsel %vm1020, %v981, 0
        %v1145 = vsel %vm1020, %v982, 0
        %v1148 = vsel %vm1020, %v983, 0
        %v1151 = vsel %vm1020, %v984, 0
        %v1154 = vsel %vm1020, %v985, 0
        %v1157 = vsel %vm1020, %v986, 0
        %v1160 = vsel %vm1020, %v987, 0
        %v1163 = vsel %vm1020, %v988, 0
        %v1166 = vsel %vm1020, %v989, 0
        %v1169 = vsel %vm1020, %v990, 0
        %v1172 = vsel %vm1020, %v991, 0
        %v1175 = vsel %vm1020, %v992, 0
        %v1178 = vsel %vm1020, %v993, 0
        %v1181 = vsel %vm1020, %v994, 0
        %v1184 = vsel %vm1020, %v995, 0
        %v1187 = vsel %vm1020, %v996, 0
        %v1190 = vsel %vm1020, %v997, 0
        %v1193 = vsel %vm1020, %v998, 0
        %v1196 = vsel %vm1020, %v999, 0
        %v1199 = vsel %vm1020, %v1000, 0
        %v1202 = vsel %vm1020, %v1001, 0
        %v1205 = vsel %vm1020, %v1002, 0
        %v1208 = vsel %vm1020, %v1003, 0
        %v1211 = vsel %vm1020, %v1004, 0
        %vm1213 = vcmask 1044480
        %vm1214 = vcmask 1045504
        %v1215 = vsel %vm1213, 4294967295, 65535
        %v1216 = vsel %vm1214, %v1215, 0
        %v1218 = vand.u32 %v1018, %v1216
        %1220 = vmatprep.subr.bf16.mxu0 0
        %1221 = vmatpush1.bf16.msra.mxu0 %v1017
        %1222 = vmatprep.subr.bf16.mxu0 0
        %1223 = vmatpush1.bf16.msra.mxu0 %v1218
        %1224 = vmatprep.subr.bf16.mxu0 0
        %1225 = vmatpush1.bf16.msra.mxu0 0
        %1226 = vmatprep.subr.bf16.mxu0 0
        %1227 = vmatpush1.bf16.msra.mxu0 0
        %1228 = vmatprep.subr.bf16.mxu0 0
        %1229 = vmatpush1.bf16.msra.mxu0 0
        %1230 = vmatprep.subr.bf16.mxu0 0
        %1231 = vmatpush1.bf16.msra.mxu0 0
        %1232 = vmatprep.subr.bf16.mxu0 0
        %1233 = vmatpush1.bf16.msra.mxu0 0
        %1234 = vmatprep.subr.bf16.mxu0 0
        %1235 = vmatpush1.bf16.msra.mxu0 0
        %1236 = vmatprep.subr.bf16.mxu0 0
        %1237 = vmatpush1.bf16.msra.mxu0 0
        %1238 = vmatprep.subr.bf16.mxu0 0
        %1239 = vmatpush1.bf16.msra.mxu0 0
        %1240 = vmatprep.subr.bf16.mxu0 0
        %1241 = vmatpush1.bf16.msra.mxu0 0
        %1242 = vmatprep.subr.bf16.mxu0 0
        %1243 = vmatpush1.bf16.msra.mxu0 0
        %1244 = vmatprep.subr.bf16.mxu0 0
        %1245 = vmatpush1.bf16.msra.mxu0 0
        %1246 = vmatprep.subr.bf16.mxu0 0
        %1247 = vmatpush1.bf16.msra.mxu0 0
        %1248 = vmatprep.subr.bf16.mxu0 0
        %1249 = vmatpush1.bf16.msra.mxu0 0
        %1250 = vmatprep.subr.bf16.mxu0 0
        %1251 = vmatpush1.bf16.msra.mxu0 0
        %1252 = vmatprep.mubr.bf16.mxu0 0
        %1253 = vmatmul.mubr.bf16.gmra.mrb[0].mxu0 %v1022
        %v1254 = vpop.f32.mrb[0].mxu0
        %v1255 = vadd.f32 0.0, %v1254
        %v1256 = vpop.f32.mrb[0].mxu0
        %v1257 = vpop.f32.mrb[0].mxu0
        %v1258 = vadd.f32 0.0, %v1257
        %v1259 = vpop.f32.mrb[0].mxu0
        %1260 = vmatprep.mubr.bf16.mxu0 0
        %1261 = vmatmul.mubr.bf16.gmra.mrb[0].mxu0 %v1025
        %v1262 = vpop.f32.mrb[0].mxu0
        %v1263 = vadd.f32 0.0, %v1262
        %v1264 = vpop.f32.mrb[0].mxu0
        %v1265 = vpop.f32.mrb[0].mxu0
        %v1266 = vadd.f32 0.0, %v1265
        %v1267 = vpop.f32.mrb[0].mxu0
        %1268 = vmatprep.mubr.bf16.mxu0 0
        %1269 = vmatmul.mubr.bf16.gmra.mrb[0].mxu0 %v1028
        %v1270 = vpop.f32.mrb[0].mxu0
        %v1271 = vadd.f32 0.0, %v1270
        %v1272 = vpop.f32.mrb[0].mxu0
        %v1273 = vpop.f32.mrb[0].mxu0
        %v1274 = vadd.f32 0.0, %v1273
        %v1275 = vpop.f32.mrb[0].mxu0
        %1276 = vmatprep.mubr.bf16.mxu0 0
        %1277 = vmatmul.mubr.bf16.gmra.mrb[0].mxu0 %v1031
        %v1278 = vpop.f32.mrb[0].mxu0
        %v1279 = vadd.f32 0.0, %v1278
        %v1280 = vpop.f32.mrb[0].mxu0
        %v1281 = vpop.f32.mrb[0].mxu0
        %v1282 = vadd.f32 0.0, %v1281
        %v1283 = vpop.f32.mrb[0].mxu0
        %1284 = vmatprep.mubr.bf16.mxu0 0
        %1285 = vmatmul.mubr.bf16.gmra.mrb[0].mxu0 %v1034
        %v1286 = vpop.f32.mrb[0].mxu0
        %v1287 = vadd.f32 0.0, %v1286
        %v1288 = vpop.f32.mrb[0].mxu0
        %v1289 = vpop.f32.mrb[0].mxu0
        %v1290 = vadd.f32 0.0, %v1289
        %v1291 = vpop.f32.mrb[0].mxu0
        %1292 = vmatprep.mubr.bf16.mxu0 0
        %1293 = vmatmul.mubr.bf16.gmra.mrb[0].mxu0 %v1037
        %v1294 = vpop.f32.mrb[0].mxu0
        %v1295 = vadd.f32 0.0, %v1294
        %v1296 = vpop.f32.mrb[0].mxu0
        %v1297 = vpop.f32.mrb[0].mxu0
        %v1298 = vadd.f32 0.0, %v1297
        %v1299 = vpop.f32.mrb[0].mxu0
        %1300 = vmatprep.mubr.bf16.mxu0 0
        %1301 = vmatmul.mubr.bf16.gmra.mrb[0].mxu0 %v1040
        %v1302 = vpop.f32.mrb[0].mxu0
        %v1303 = vadd.f32 0.0, %v1302
        %v1304 = vpop.f32.mrb[0].mxu0
        %v1305 = vpop.f32.mrb[0].mxu0
        %v1306 = vadd.f32 0.0, %v1305
        %v1307 = vpop.f32.mrb[0].mxu0
        %1308 = vmatprep.mubr.bf16.mxu0 0
        %1309 = vmatmul.mubr.bf16.gmra.mrb[0].mxu0 %v1043
        %v1310 = vpop.f32.mrb[0].mxu0
        %v1311 = vadd.f32 0.0, %v1310
        %v1312 = vpop.f32.mrb[0].mxu0
        %v1313 = vpop.f32.mrb[0].mxu0
        %v1314 = vadd.f32 0.0, %v1313
        %v1315 = vpop.f32.mrb[0].mxu0
        %1316 = vmatprep.mubr.bf16.mxu0 0
        %1317 = vmatmul.mubr.bf16.gmra.mrb[0].mxu0 %v1046
        %v1318 = vpop.f32.mrb[0].mxu0
        %v1319 = vadd.f32 0.0, %v1318
        %v1320 = vpop.f32.mrb[0].mxu0
        %v1321 = vpop.f32.mrb[0].mxu0
        %v1322 = vadd.f32 0.0, %v1321
        %v1323 = vpop.f32.mrb[0].mxu0
        %1324 = vmatprep.mubr.bf16.mxu0 0
        %1325 = vmatmul.mubr.bf16.gmra.mrb[0].mxu0 %v1049
        %v1326 = vpop.f32.mrb[0].mxu0
        %v1327 = vadd.f32 0.0, %v1326
        %v1328 = vpop.f32.mrb[0].mxu0
        %v1329 = vpop.f32.mrb[0].mxu0
        %v1330 = vadd.f32 0.0, %v1329
        %v1331 = vpop.f32.mrb[0].mxu0
        %1332 = vmatprep.mubr.bf16.mxu0 0
        %1333 = vmatmul.mubr.bf16.gmra.mrb[0].mxu0 %v1052
        %v1334 = vpop.f32.mrb[0].mxu0
        %v1335 = vadd.f32 0.0, %v1334
        %v1336 = vpop.f32.mrb[0].mxu0
        %v1337 = vpop.f32.mrb[0].mxu0
        %v1338 = vadd.f32 0.0, %v1337
        %v1339 = vpop.f32.mrb[0].mxu0
        %1340 = vmatprep.mubr.bf16.mxu0 0
        %1341 = vmatmul.mubr.bf16.gmra.mrb[0].mxu0 %v1055
        %v1342 = vpop.f32.mrb[0].mxu0
        %v1343 = vadd.f32 0.0, %v1342
        %v1344 = vpop.f32.mrb[0].mxu0
        %v1345 = vpop.f32.mrb[0].mxu0
        %v1346 = vadd.f32 0.0, %v1345
        %v1347 = vpop.f32.mrb[0].mxu0
        %1348 = vmatprep.mubr.bf16.mxu0 0
        %1349 = vmatmul.mubr.bf16.gmra.mrb[0].mxu0 %v1058
        %v1350 = vpop.f32.mrb[0].mxu0
        %v1351 = vadd.f32 0.0, %v1350
        %v1352 = vpop.f32.mrb[0].mxu0
        %v1353 = vpop.f32.mrb[0].mxu0
        %v1354 = vadd.f32 0.0, %v1353
        %v1355 = vpop.f32.mrb[0].mxu0
        %1356 = vmatprep.mubr.bf16.mxu0 0
        %1357 = vmatmul.mubr.bf16.gmra.mrb[0].mxu0 %v1061
        %v1358 = vpop.f32.mrb[0].mxu0
        %v1359 = vadd.f32 0.0, %v1358
        %v1360 = vpop.f32.mrb[0].mxu0
        %v1361 = vpop.f32.mrb[0].mxu0
        %v1362 = vadd.f32 0.0, %v1361
        %v1363 = vpop.f32.mrb[0].mxu0
        %1364 = vmatprep.mubr.bf16.mxu0 0
        %1365 = vmatmul.mubr.bf16.gmra.mrb[0].mxu0 %v1064
        %v1366 = vpop.f32.mrb[0].mxu0
        %v1367 = vadd.f32 0.0, %v1366
        %v1368 = vpop.f32.mrb[0].mxu0
        %v1369 = vpop.f32.mrb[0].mxu0
        %v1370 = vadd.f32 0.0, %v1369
        %v1371 = vpop.f32.mrb[0].mxu0
        %1372 = vmatprep.mubr.bf16.mxu0 0
        %1373 = vmatmul.mubr.bf16.gmra.mrb[0].mxu0 %v1067
        %v1374 = vpop.f32.mrb[0].mxu0
        %v1375 = vadd.f32 0.0, %v1374
        %v1376 = vpop.f32.mrb[0].mxu0
        %v1377 = vpop.f32.mrb[0].mxu0
        %v1378 = vadd.f32 0.0, %v1377
        %v1379 = vpop.f32.mrb[0].mxu0
        %1380 = vmatprep.mubr.bf16.mxu0 0
        %1381 = vmatmul.mubr.bf16.gmra.mrb[0].mxu0 %v1070
        %v1382 = vpop.f32.mrb[0].mxu0
        %v1383 = vadd.f32 0.0, %v1382
        %v1384 = vpop.f32.mrb[0].mxu0
        %v1385 = vpop.f32.mrb[0].mxu0
        %v1386 = vadd.f32 0.0, %v1385
        %v1387 = vpop.f32.mrb[0].mxu0
        %1388 = vmatprep.mubr.bf16.mxu0 0
        %1389 = vmatmul.mubr.bf16.gmra.mrb[0].mxu0 %v1073
        %v1390 = vpop.f32.mrb[0].mxu0
        %v1391 = vadd.f32 0.0, %v1390
        %v1392 = vpop.f32.mrb[0].mxu0
        %v1393 = vpop.f32.mrb[0].mxu0
        %v1394 = vadd.f32 0.0, %v1393
        %v1395 = vpop.f32.mrb[0].mxu0
        %1396 = vmatprep.mubr.bf16.mxu0 0
        %1397 = vmatmul.mubr.bf16.gmra.mrb[0].mxu0 %v1076
        %v1398 = vpop.f32.mrb[0].mxu0
        %v1399 = vadd.f32 0.0, %v1398
        %v1400 = vpop.f32.mrb[0].mxu0
        %v1401 = vpop.f32.mrb[0].mxu0
        %v1402 = vadd.f32 0.0, %v1401
        %v1403 = vpop.f32.mrb[0].mxu0
        %1404 = vmatprep.mubr.bf16.mxu0 0
        %1405 = vmatmul.mubr.bf16.gmra.mrb[0].mxu0 %v1079
        %v1406 = vpop.f32.mrb[0].mxu0
        %v1407 = vadd.f32 0.0, %v1406
        %v1408 = vpop.f32.mrb[0].mxu0
        %v1409 = vpop.f32.mrb[0].mxu0
        %v1410 = vadd.f32 0.0, %v1409
        %v1411 = vpop.f32.mrb[0].mxu0
        %1412 = vmatprep.mubr.bf16.mxu0 0
        %1413 = vmatmul.mubr.bf16.gmra.mrb[0].mxu0 %v1082
        %v1414 = vpop.f32.mrb[0].mxu0
        %v1415 = vadd.f32 0.0, %v1414
        %v1416 = vpop.f32.mrb[0].mxu0
        %v1417 = vpop.f32.mrb[0].mxu0
        %v1418 = vadd.f32 0.0, %v1417
        %v1419 = vpop.f32.mrb[0].mxu0
        %1420 = vmatprep.mubr.bf16.mxu0 0
        %1421 = vmatmul.mubr.bf16.gmra.mrb[0].mxu0 %v1085
        %v1422 = vpop.f32.mrb[0].mxu0
        %v1423 = vadd.f32 0.0, %v1422
        %v1424 = vpop.f32.mrb[0].mxu0
        %v1425 = vpop.f32.mrb[0].mxu0
        %v1426 = vadd.f32 0.0, %v1425
        %v1427 = vpop.f32.mrb[0].mxu0
        %1428 = vmatprep.mubr.bf16.mxu0 0
        %1429 = vmatmul.mubr.bf16.gmra.mrb[0].mxu0 %v1088
        %v1430 = vpop.f32.mrb[0].mxu0
        %v1431 = vadd.f32 0.0, %v1430
        %v1432 = vpop.f32.mrb[0].mxu0
        %v1433 = vpop.f32.mrb[0].mxu0
        %v1434 = vadd.f32 0.0, %v1433
        %v1435 = vpop.f32.mrb[0].mxu0
        %1436 = vmatprep.mubr.bf16.mxu0 0
        %1437 = vmatmul.mubr.bf16.gmra.mrb[0].mxu0 %v1091
        %v1438 = vpop.f32.mrb[0].mxu0
        %v1439 = vadd.f32 0.0, %v1438
        %v1440 = vpop.f32.mrb[0].mxu0
        %v1441 = vpop.f32.mrb[0].mxu0
        %v1442 = vadd.f32 0.0, %v1441
        %v1443 = vpop.f32.mrb[0].mxu0
        %1444 = vmatprep.mubr.bf16.mxu0 0
        %1445 = vmatmul.mubr.bf16.gmra.mrb[0].mxu0 %v1094
        %v1446 = vpop.f32.mrb[0].mxu0
        %v1447 = vadd.f32 0.0, %v1446
        %v1448 = vpop.f32.mrb[0].mxu0
        %v1449 = vpop.f32.mrb[0].mxu0
        %v1450 = vadd.f32 0.0, %v1449
        %v1451 = vpop.f32.mrb[0].mxu0
        %1452 = vmatprep.mubr.bf16.mxu0 0
        %1453 = vmatmul.mubr.bf16.gmra.mrb[0].mxu0 %v1097
        %v1454 = vpop.f32.mrb[0].mxu0
        %v1455 = vadd.f32 0.0, %v1454
        %v1456 = vpop.f32.mrb[0].mxu0
        %v1457 = vpop.f32.mrb[0].mxu0
        %v1458 = vadd.f32 0.0, %v1457
        %v1459 = vpop.f32.mrb[0].mxu0
        %1460 = vmatprep.mubr.bf16.mxu0 0
        %1461 = vmatmul.mubr.bf16.gmra.mrb[0].mxu0 %v1100
        %v1462 = vpop.f32.mrb[0].mxu0
        %v1463 = vadd.f32 0.0, %v1462
        %v1464 = vpop.f32.mrb[0].mxu0
        %v1465 = vpop.f32.mrb[0].mxu0
        %v1466 = vadd.f32 0.0, %v1465
        %v1467 = vpop.f32.mrb[0].mxu0
        %1468 = vmatprep.mubr.bf16.mxu0 0
        %1469 = vmatmul.mubr.bf16.gmra.mrb[0].mxu0 %v1103
        %v1470 = vpop.f32.mrb[0].mxu0
        %v1471 = vadd.f32 0.0, %v1470
        %v1472 = vpop.f32.mrb[0].mxu0
        %v1473 = vpop.f32.mrb[0].mxu0
        %v1474 = vadd.f32 0.0, %v1473
        %v1475 = vpop.f32.mrb[0].mxu0
        %1476 = vmatprep.mubr.bf16.mxu0 0
        %1477 = vmatmul.mubr.bf16.gmra.mrb[0].mxu0 %v1106
        %v1478 = vpop.f32.mrb[0].mxu0
        %v1479 = vadd.f32 0.0, %v1478
        %v1480 = vpop.f32.mrb[0].mxu0
        %v1481 = vpop.f32.mrb[0].mxu0
        %v1482 = vadd.f32 0.0, %v1481
        %v1483 = vpop.f32.mrb[0].mxu0
        %1484 = vmatprep.mubr.bf16.mxu0 0
        %1485 = vmatmul.mubr.bf16.gmra.mrb[0].mxu0 %v1109
        %v1486 = vpop.f32.mrb[0].mxu0
        %v1487 = vadd.f32 0.0, %v1486
        %v1488 = vpop.f32.mrb[0].mxu0
        %v1489 = vpop.f32.mrb[0].mxu0
        %v1490 = vadd.f32 0.0, %v1489
        %v1491 = vpop.f32.mrb[0].mxu0
        %1492 = vmatprep.mubr.bf16.mxu0 0
        %1493 = vmatmul.mubr.bf16.gmra.mrb[0].mxu0 %v1112
        %v1494 = vpop.f32.mrb[0].mxu0
        %v1495 = vadd.f32 0.0, %v1494
        %v1496 = vpop.f32.mrb[0].mxu0
        %v1497 = vpop.f32.mrb[0].mxu0
        %v1498 = vadd.f32 0.0, %v1497
        %v1499 = vpop.f32.mrb[0].mxu0
        %1500 = vmatprep.mubr.bf16.mxu0 0
        %1501 = vmatmul.mubr.bf16.gmra.mrb[0].mxu0 %v1115
        %v1502 = vpop.f32.mrb[0].mxu0
        %v1503 = vadd.f32 0.0, %v1502
        %v1504 = vpop.f32.mrb[0].mxu0
        %v1505 = vpop.f32.mrb[0].mxu0
        %v1506 = vadd.f32 0.0, %v1505
        %v1507 = vpop.f32.mrb[0].mxu0
        %1508 = vmatprep.mubr.bf16.mxu0 0
        %1509 = vmatmul.mubr.bf16.gmra.mrb[0].mxu0 %v1118
        %v1510 = vpop.f32.mrb[0].mxu0
        %v1511 = vadd.f32 0.0, %v1510
        %v1512 = vpop.f32.mrb[0].mxu0
        %v1513 = vpop.f32.mrb[0].mxu0
        %v1514 = vadd.f32 0.0, %v1513
        %v1515 = vpop.f32.mrb[0].mxu0
        %1516 = vmatprep.mubr.bf16.mxu0 0
        %1517 = vmatmul.mubr.bf16.gmra.mrb[0].mxu0 %v1121
        %v1518 = vpop.f32.mrb[0].mxu0
        %v1519 = vadd.f32 0.0, %v1518
        %v1520 = vpop.f32.mrb[0].mxu0
        %v1521 = vpop.f32.mrb[0].mxu0
        %v1522 = vadd.f32 0.0, %v1521
        %v1523 = vpop.f32.mrb[0].mxu0
        %1524 = vmatprep.mubr.bf16.mxu0 0
        %1525 = vmatmul.mubr.bf16.gmra.mrb[0].mxu0 %v1124
        %v1526 = vpop.f32.mrb[0].mxu0
        %v1527 = vadd.f32 0.0, %v1526
        %v1528 = vpop.f32.mrb[0].mxu0
        %v1529 = vpop.f32.mrb[0].mxu0
        %v1530 = vadd.f32 0.0, %v1529
        %v1531 = vpop.f32.mrb[0].mxu0
        %1532 = vmatprep.mubr.bf16.mxu0 0
        %1533 = vmatmul.mubr.bf16.gmra.mrb[0].mxu0 %v1127
        %v1534 = vpop.f32.mrb[0].mxu0
        %v1535 = vadd.f32 0.0, %v1534
        %v1536 = vpop.f32.mrb[0].mxu0
        %v1537 = vpop.f32.mrb[0].mxu0
        %v1538 = vadd.f32 0.0, %v1537
        %v1539 = vpop.f32.mrb[0].mxu0
        %1540 = vmatprep.mubr.bf16.mxu0 0
        %1541 = vmatmul.mubr.bf16.gmra.mrb[0].mxu0 %v1130
        %v1542 = vpop.f32.mrb[0].mxu0
        %v1543 = vadd.f32 0.0, %v1542
        %v1544 = vpop.f32.mrb[0].mxu0
        %v1545 = vpop.f32.mrb[0].mxu0
        %v1546 = vadd.f32 0.0, %v1545
        %v1547 = vpop.f32.mrb[0].mxu0
        %1548 = vmatprep.mubr.bf16.mxu0 0
        %1549 = vmatmul.mubr.bf16.gmra.mrb[0].mxu0 %v1133
        %v1550 = vpop.f32.mrb[0].mxu0
        %v1551 = vadd.f32 0.0, %v1550
        %v1552 = vpop.f32.mrb[0].mxu0
        %v1553 = vpop.f32.mrb[0].mxu0
        %v1554 = vadd.f32 0.0, %v1553
        %v1555 = vpop.f32.mrb[0].mxu0
        %1556 = vmatprep.mubr.bf16.mxu0 0
        %1557 = vmatmul.mubr.bf16.gmra.mrb[0].mxu0 %v1136
        %v1558 = vpop.f32.mrb[0].mxu0
        %v1559 = vadd.f32 0.0, %v1558
        %v1560 = vpop.f32.mrb[0].mxu0
        %v1561 = vpop.f32.mrb[0].mxu0
        %v1562 = vadd.f32 0.0, %v1561
        %v1563 = vpop.f32.mrb[0].mxu0
        %1564 = vmatprep.mubr.bf16.mxu0 0
        %1565 = vmatmul.mubr.bf16.gmra.mrb[0].mxu0 %v1139
        %v1566 = vpop.f32.mrb[0].mxu0
        %v1567 = vadd.f32 0.0, %v1566
        %v1568 = vpop.f32.mrb[0].mxu0
        %v1569 = vpop.f32.mrb[0].mxu0
        %v1570 = vadd.f32 0.0, %v1569
        %v1571 = vpop.f32.mrb[0].mxu0
        %1572 = vmatprep.mubr.bf16.mxu0 0
        %1573 = vmatmul.mubr.bf16.gmra.mrb[0].mxu0 %v1142
        %v1574 = vpop.f32.mrb[0].mxu0
        %v1575 = vadd.f32 0.0, %v1574
        %v1576 = vpop.f32.mrb[0].mxu0
        %v1577 = vpop.f32.mrb[0].mxu0
        %v1578 = vadd.f32 0.0, %v1577
        %v1579 = vpop.f32.mrb[0].mxu0
        %1580 = vmatprep.mubr.bf16.mxu0 0
        %1581 = vmatmul.mubr.bf16.gmra.mrb[0].mxu0 %v1145
        %v1582 = vpop.f32.mrb[0].mxu0
        %v1583 = vadd.f32 0.0, %v1582
        %v1584 = vpop.f32.mrb[0].mxu0
        %v1585 = vpop.f32.mrb[0].mxu0
        %v1586 = vadd.f32 0.0, %v1585
        %v1587 = vpop.f32.mrb[0].mxu0
        %1588 = vmatprep.mubr.bf16.mxu0 0
        %1589 = vmatmul.mubr.bf16.gmra.mrb[0].mxu0 %v1148
        %v1590 = vpop.f32.mrb[0].mxu0
        %v1591 = vadd.f32 0.0, %v1590
        %v1592 = vpop.f32.mrb[0].mxu0
        %v1593 = vpop.f32.mrb[0].mxu0
        %v1594 = vadd.f32 0.0, %v1593
        %v1595 = vpop.f32.mrb[0].mxu0
        %1596 = vmatprep.mubr.bf16.mxu0 0
        %1597 = vmatmul.mubr.bf16.gmra.mrb[0].mxu0 %v1151
        %v1598 = vpop.f32.mrb[0].mxu0
        %v1599 = vadd.f32 0.0, %v1598
        %v1600 = vpop.f32.mrb[0].mxu0
        %v1601 = vpop.f32.mrb[0].mxu0
        %v1602 = vadd.f32 0.0, %v1601
        %v1603 = vpop.f32.mrb[0].mxu0
        %1604 = vmatprep.mubr.bf16.mxu0 0
        %1605 = vmatmul.mubr.bf16.gmra.mrb[0].mxu0 %v1154
        %v1606 = vpop.f32.mrb[0].mxu0
        %v1607 = vadd.f32 0.0, %v1606
        %v1608 = vpop.f32.mrb[0].mxu0
        %v1609 = vpop.f32.mrb[0].mxu0
        %v1610 = vadd.f32 0.0, %v1609
        %v1611 = vpop.f32.mrb[0].mxu0
        %1612 = vmatprep.mubr.bf16.mxu0 0
        %1613 = vmatmul.mubr.bf16.gmra.mrb[0].mxu0 %v1157
        %v1614 = vpop.f32.mrb[0].mxu0
        %v1615 = vadd.f32 0.0, %v1614
        %v1616 = vpop.f32.mrb[0].mxu0
        %v1617 = vpop.f32.mrb[0].mxu0
        %v1618 = vadd.f32 0.0, %v1617
        %v1619 = vpop.f32.mrb[0].mxu0
        %1620 = vmatprep.mubr.bf16.mxu0 0
        %1621 = vmatmul.mubr.bf16.gmra.mrb[0].mxu0 %v1160
        %v1622 = vpop.f32.mrb[0].mxu0
        %v1623 = vadd.f32 0.0, %v1622
        %v1624 = vpop.f32.mrb[0].mxu0
        %v1625 = vpop.f32.mrb[0].mxu0
        %v1626 = vadd.f32 0.0, %v1625
        %v1627 = vpop.f32.mrb[0].mxu0
        %1628 = vmatprep.mubr.bf16.mxu0 0
        %1629 = vmatmul.mubr.bf16.gmra.mrb[0].mxu0 %v1163
        %v1630 = vpop.f32.mrb[0].mxu0
        %v1631 = vadd.f32 0.0, %v1630
        %v1632 = vpop.f32.mrb[0].mxu0
        %v1633 = vpop.f32.mrb[0].mxu0
        %v1634 = vadd.f32 0.0, %v1633
        %v1635 = vpop.f32.mrb[0].mxu0
        %1636 = vmatprep.mubr.bf16.mxu0 0
        %1637 = vmatmul.mubr.bf16.gmra.mrb[0].mxu0 %v1166
        %v1638 = vpop.f32.mrb[0].mxu0
        %v1639 = vadd.f32 0.0, %v1638
        %v1640 = vpop.f32.mrb[0].mxu0
        %v1641 = vpop.f32.mrb[0].mxu0
        %v1642 = vadd.f32 0.0, %v1641
        %v1643 = vpop.f32.mrb[0].mxu0
        %1644 = vmatprep.mubr.bf16.mxu0 0
        %1645 = vmatmul.mubr.bf16.gmra.mrb[0].mxu0 %v1169
        %v1646 = vpop.f32.mrb[0].mxu0
        %v1647 = vadd.f32 0.0, %v1646
        %v1648 = vpop.f32.mrb[0].mxu0
        %v1649 = vpop.f32.mrb[0].mxu0
        %v1650 = vadd.f32 0.0, %v1649
        %v1651 = vpop.f32.mrb[0].mxu0
        %1652 = vmatprep.mubr.bf16.mxu0 0
        %1653 = vmatmul.mubr.bf16.gmra.mrb[0].mxu0 %v1172
        %v1654 = vpop.f32.mrb[0].mxu0
        %v1655 = vadd.f32 0.0, %v1654
        %v1656 = vpop.f32.mrb[0].mxu0
        %v1657 = vpop.f32.mrb[0].mxu0
        %v1658 = vadd.f32 0.0, %v1657
        %v1659 = vpop.f32.mrb[0].mxu0
        %1660 = vmatprep.mubr.bf16.mxu0 0
        %1661 = vmatmul.mubr.bf16.gmra.mrb[0].mxu0 %v1175
        %v1662 = vpop.f32.mrb[0].mxu0
        %v1663 = vadd.f32 0.0, %v1662
        %v1664 = vpop.f32.mrb[0].mxu0
        %v1665 = vpop.f32.mrb[0].mxu0
        %v1666 = vadd.f32 0.0, %v1665
        %v1667 = vpop.f32.mrb[0].mxu0
        %1668 = vmatprep.mubr.bf16.mxu0 0
        %1669 = vmatmul.mubr.bf16.gmra.mrb[0].mxu0 %v1178
        %v1670 = vpop.f32.mrb[0].mxu0
        %v1671 = vadd.f32 0.0, %v1670
        %v1672 = vpop.f32.mrb[0].mxu0
        %v1673 = vpop.f32.mrb[0].mxu0
        %v1674 = vadd.f32 0.0, %v1673
        %v1675 = vpop.f32.mrb[0].mxu0
        %1676 = vmatprep.mubr.bf16.mxu0 0
        %1677 = vmatmul.mubr.bf16.gmra.mrb[0].mxu0 %v1181
        %v1678 = vpop.f32.mrb[0].mxu0
        %v1679 = vadd.f32 0.0, %v1678
        %v1680 = vpop.f32.mrb[0].mxu0
        %v1681 = vpop.f32.mrb[0].mxu0
        %v1682 = vadd.f32 0.0, %v1681
        %v1683 = vpop.f32.mrb[0].mxu0
        %1684 = vmatprep.mubr.bf16.mxu0 0
        %1685 = vmatmul.mubr.bf16.gmra.mrb[0].mxu0 %v1184
        %v1686 = vpop.f32.mrb[0].mxu0
        %v1687 = vadd.f32 0.0, %v1686
        %v1688 = vpop.f32.mrb[0].mxu0
        %v1689 = vpop.f32.mrb[0].mxu0
        %v1690 = vadd.f32 0.0, %v1689
        %v1691 = vpop.f32.mrb[0].mxu0
        %1692 = vmatprep.mubr.bf16.mxu0 0
        %1693 = vmatmul.mubr.bf16.gmra.mrb[0].mxu0 %v1187
        %v1694 = vpop.f32.mrb[0].mxu0
        %v1695 = vadd.f32 0.0, %v1694
        %v1696 = vpop.f32.mrb[0].mxu0
        %v1697 = vpop.f32.mrb[0].mxu0
        %v1698 = vadd.f32 0.0, %v1697
        %v1699 = vpop.f32.mrb[0].mxu0
        %1700 = vmatprep.mubr.bf16.mxu0 0
        %1701 = vmatmul.mubr.bf16.gmra.mrb[0].mxu0 %v1190
        %v1702 = vpop.f32.mrb[0].mxu0
        %v1703 = vadd.f32 0.0, %v1702
        %v1704 = vpop.f32.mrb[0].mxu0
        %v1705 = vpop.f32.mrb[0].mxu0
        %v1706 = vadd.f32 0.0, %v1705
        %v1707 = vpop.f32.mrb[0].mxu0
        %1708 = vmatprep.mubr.bf16.mxu0 0
        %1709 = vmatmul.mubr.bf16.gmra.mrb[0].mxu0 %v1193
        %v1710 = vpop.f32.mrb[0].mxu0
        %v1711 = vadd.f32 0.0, %v1710
        %v1712 = vpop.f32.mrb[0].mxu0
        %v1713 = vpop.f32.mrb[0].mxu0
        %v1714 = vadd.f32 0.0, %v1713
        %v1715 = vpop.f32.mrb[0].mxu0
        %1716 = vmatprep.mubr.bf16.mxu0 0
        %1717 = vmatmul.mubr.bf16.gmra.mrb[0].mxu0 %v1196
        %v1718 = vpop.f32.mrb[0].mxu0
        %v1719 = vadd.f32 0.0, %v1718
        %v1720 = vpop.f32.mrb[0].mxu0
        %v1721 = vpop.f32.mrb[0].mxu0
        %v1722 = vadd.f32 0.0, %v1721
        %v1723 = vpop.f32.mrb[0].mxu0
        %1724 = vmatprep.mubr.bf16.mxu0 0
        %1725 = vmatmul.mubr.bf16.gmra.mrb[0].mxu0 %v1199
        %v1726 = vpop.f32.mrb[0].mxu0
        %v1727 = vadd.f32 0.0, %v1726
        %v1728 = vpop.f32.mrb[0].mxu0
        %v1729 = vpop.f32.mrb[0].mxu0
        %v1730 = vadd.f32 0.0, %v1729
        %v1731 = vpop.f32.mrb[0].mxu0
        %1732 = vmatprep.mubr.bf16.mxu0 0
        %1733 = vmatmul.mubr.bf16.gmra.mrb[0].mxu0 %v1202
        %v1734 = vpop.f32.mrb[0].mxu0
        %v1735 = vadd.f32 0.0, %v1734
        %v1736 = vpop.f32.mrb[0].mxu0
        %v1737 = vpop.f32.mrb[0].mxu0
        %v1738 = vadd.f32 0.0, %v1737
        %v1739 = vpop.f32.mrb[0].mxu0
        %1740 = vmatprep.mubr.bf16.mxu0 0
        %1741 = vmatmul.mubr.bf16.gmra.mrb[0].mxu0 %v1205
        %v1742 = vpop.f32.mrb[0].mxu0
        %v1743 = vadd.f32 0.0, %v1742
        %v1744 = vpop.f32.mrb[0].mxu0
        %v1745 = vpop.f32.mrb[0].mxu0
        %v1746 = vadd.f32 0.0, %v1745
        %v1747 = vpop.f32.mrb[0].mxu0
        %1748 = vmatprep.mubr.bf16.mxu0 0
        %1749 = vmatmul.mubr.bf16.gmra.mrb[0].mxu0 %v1208
        %v1750 = vpop.f32.mrb[0].mxu0
        %v1751 = vadd.f32 0.0, %v1750
        %v1752 = vpop.f32.mrb[0].mxu0
        %v1753 = vpop.f32.mrb[0].mxu0
        %v1754 = vadd.f32 0.0, %v1753
        %v1755 = vpop.f32.mrb[0].mxu0
        %1756 = vmatprep.mubr.bf16.mxu0 0
        %1757 = vmatmul.mubr.bf16.gmra.mrb[0].mxu0 %v1211
        %v1758 = vpop.f32.mrb[0].mxu0
        %v1759 = vadd.f32 0.0, %v1758
        %v1760 = vpop.f32.mrb[0].mxu0
        %v1761 = vpop.f32.mrb[0].mxu0
        %v1762 = vadd.f32 0.0, %v1761
        %v1763 = vpop.f32.mrb[0].mxu0
        %1764 = vdwg.mxu0
        %v1765 = vstv %s299
        %v1766 = vmul.f32 %v1255, %v1765
        %v1767 = vmul.f32 %v1258, %v1765
        %v1768 = vmul.f32 %v1263, %v1765
        %v1769 = vmul.f32 %v1266, %v1765
        %v1770 = vmul.f32 %v1271, %v1765
        %v1771 = vmul.f32 %v1274, %v1765
        %v1772 = vmul.f32 %v1279, %v1765
        %v1773 = vmul.f32 %v1282, %v1765
        %v1774 = vmul.f32 %v1287, %v1765
        %v1775 = vmul.f32 %v1290, %v1765
        %v1776 = vmul.f32 %v1295, %v1765
        %v1777 = vmul.f32 %v1298, %v1765
        %v1778 = vmul.f32 %v1303, %v1765
        %v1779 = vmul.f32 %v1306, %v1765
        %v1780 = vmul.f32 %v1311, %v1765
        %v1781 = vmul.f32 %v1314, %v1765
        %v1782 = vmul.f32 %v1319, %v1765
        %v1783 = vmul.f32 %v1322, %v1765
        %v1784 = vmul.f32 %v1327, %v1765
        %v1785 = vmul.f32 %v1330, %v1765
        %v1786 = vmul.f32 %v1335, %v1765
        %v1787 = vmul.f32 %v1338, %v1765
        %v1788 = vmul.f32 %v1343, %v1765
        %v1789 = vmul.f32 %v1346, %v1765
        %v1790 = vmul.f32 %v1351, %v1765
        %v1791 = vmul.f32 %v1354, %v1765
        %v1792 = vmul.f32 %v1359, %v1765
        %v1793 = vmul.f32 %v1362, %v1765
        %v1794 = vmul.f32 %v1367, %v1765
        %v1795 = vmul.f32 %v1370, %v1765
        %v1796 = vmul.f32 %v1375, %v1765
        %v1797 = vmul.f32 %v1378, %v1765
        %v1798 = vmul.f32 %v1383, %v1765
        %v1799 = vmul.f32 %v1386, %v1765
        %v1800 = vmul.f32 %v1391, %v1765
        %v1801 = vmul.f32 %v1394, %v1765
        %v1802 = vmul.f32 %v1399, %v1765
        %v1803 = vmul.f32 %v1402, %v1765
        %v1804 = vmul.f32 %v1407, %v1765
        %v1805 = vmul.f32 %v1410, %v1765
        %v1806 = vmul.f32 %v1415, %v1765
        %v1807 = vmul.f32 %v1418, %v1765
        %v1808 = vmul.f32 %v1423, %v1765
        %v1809 = vmul.f32 %v1426, %v1765
        %v1810 = vmul.f32 %v1431, %v1765
        %v1811 = vmul.f32 %v1434, %v1765
        %v1812 = vmul.f32 %v1439, %v1765
        %v1813 = vmul.f32 %v1442, %v1765
        %v1814 = vmul.f32 %v1447, %v1765
        %v1815 = vmul.f32 %v1450, %v1765
        %v1816 = vmul.f32 %v1455, %v1765
        %v1817 = vmul.f32 %v1458, %v1765
        %v1818 = vmul.f32 %v1463, %v1765
        %v1819 = vmul.f32 %v1466, %v1765
        %v1820 = vmul.f32 %v1471, %v1765
        %v1821 = vmul.f32 %v1474, %v1765
        %v1822 = vmul.f32 %v1479, %v1765
        %v1823 = vmul.f32 %v1482, %v1765
        %v1824 = vmul.f32 %v1487, %v1765
        %v1825 = vmul.f32 %v1490, %v1765
        %v1826 = vmul.f32 %v1495, %v1765
        %v1827 = vmul.f32 %v1498, %v1765
        %v1828 = vmul.f32 %v1503, %v1765
        %v1829 = vmul.f32 %v1506, %v1765
        %v1830 = vmul.f32 %v1511, %v1765
        %v1831 = vmul.f32 %v1514, %v1765
        %v1832 = vmul.f32 %v1519, %v1765
        %v1833 = vmul.f32 %v1522, %v1765
        %v1834 = vmul.f32 %v1527, %v1765
        %v1835 = vmul.f32 %v1530, %v1765
        %v1836 = vmul.f32 %v1535, %v1765
        %v1837 = vmul.f32 %v1538, %v1765
        %v1838 = vmul.f32 %v1543, %v1765
        %v1839 = vmul.f32 %v1546, %v1765
        %v1840 = vmul.f32 %v1551, %v1765
        %v1841 = vmul.f32 %v1554, %v1765
        %v1842 = vmul.f32 %v1559, %v1765
        %v1843 = vmul.f32 %v1562, %v1765
        %v1844 = vmul.f32 %v1567, %v1765
        %v1845 = vmul.f32 %v1570, %v1765
        %v1846 = vmul.f32 %v1575, %v1765
        %v1847 = vmul.f32 %v1578, %v1765
        %v1848 = vmul.f32 %v1583, %v1765
        %v1849 = vmul.f32 %v1586, %v1765
        %v1850 = vmul.f32 %v1591, %v1765
        %v1851 = vmul.f32 %v1594, %v1765
        %v1852 = vmul.f32 %v1599, %v1765
        %v1853 = vmul.f32 %v1602, %v1765
        %v1854 = vmul.f32 %v1607, %v1765
        %v1855 = vmul.f32 %v1610, %v1765
        %v1856 = vmul.f32 %v1615, %v1765
        %v1857 = vmul.f32 %v1618, %v1765
        %v1858 = vmul.f32 %v1623, %v1765
        %v1859 = vmul.f32 %v1626, %v1765
        %v1860 = vmul.f32 %v1631, %v1765
        %v1861 = vmul.f32 %v1634, %v1765
        %v1862 = vmul.f32 %v1639, %v1765
        %v1863 = vmul.f32 %v1642, %v1765
        %v1864 = vmul.f32 %v1647, %v1765
        %v1865 = vmul.f32 %v1650, %v1765
        %v1866 = vmul.f32 %v1655, %v1765
        %v1867 = vmul.f32 %v1658, %v1765
        %v1868 = vmul.f32 %v1663, %v1765
        %v1869 = vmul.f32 %v1666, %v1765
        %v1870 = vmul.f32 %v1671, %v1765
        %v1871 = vmul.f32 %v1674, %v1765
        %v1872 = vmul.f32 %v1679, %v1765
        %v1873 = vmul.f32 %v1682, %v1765
        %v1874 = vmul.f32 %v1687, %v1765
        %v1875 = vmul.f32 %v1690, %v1765
        %v1876 = vmul.f32 %v1695, %v1765
        %v1877 = vmul.f32 %v1698, %v1765
        %v1878 = vmul.f32 %v1703, %v1765
        %v1879 = vmul.f32 %v1706, %v1765
        %v1880 = vmul.f32 %v1711, %v1765
        %v1881 = vmul.f32 %v1714, %v1765
        %v1882 = vmul.f32 %v1719, %v1765
        %v1883 = vmul.f32 %v1722, %v1765
        %v1884 = vmul.f32 %v1727, %v1765
        %v1885 = vmul.f32 %v1730, %v1765
        %v1886 = vmul.f32 %v1735, %v1765
        %v1887 = vmul.f32 %v1738, %v1765
        %v1888 = vmul.f32 %v1743, %v1765
        %v1889 = vmul.f32 %v1746, %v1765
        %v1890 = vmul.f32 %v1751, %v1765
        %v1891 = vmul.f32 %v1754, %v1765
        %v1892 = vmul.f32 %v1759, %v1765
        %v1893 = vmul.f32 %v1762, %v1765
        %v1894 = vld [vmem:[%s3] sm:$0x1]
        %v1896 = vlaneseq
        %v1897 = vshrl.u32 %v1896, 7
        %v1898 = vsub.s32 0, %v1897
        %v1899 = vrot.slane %v1894, %v1898
        %v1901 = vadd.f32 %v1766, %v1899
        %v1902 = vadd.f32 %v1767, %v1899
        %v1903 = vadd.f32 %v1768, %v1899
        %v1904 = vadd.f32 %v1769, %v1899
        %v1905 = vadd.f32 %v1770, %v1899
        %v1906 = vadd.f32 %v1771, %v1899
        %v1907 = vadd.f32 %v1772, %v1899
        %v1908 = vadd.f32 %v1773, %v1899
        %v1909 = vadd.f32 %v1774, %v1899
        %v1910 = vadd.f32 %v1775, %v1899
        %v1911 = vadd.f32 %v1776, %v1899
        %v1912 = vadd.f32 %v1777, %v1899
        %v1913 = vadd.f32 %v1778, %v1899
        %v1914 = vadd.f32 %v1779, %v1899
        %v1915 = vadd.f32 %v1780, %v1899
        %v1916 = vadd.f32 %v1781, %v1899
        %v1917 = vadd.f32 %v1782, %v1899
        %v1918 = vadd.f32 %v1783, %v1899
        %v1919 = vadd.f32 %v1784, %v1899
        %v1920 = vadd.f32 %v1785, %v1899
        %v1921 = vadd.f32 %v1786, %v1899
        %v1922 = vadd.f32 %v1787, %v1899
        %v1923 = vadd.f32 %v1788, %v1899
        %v1924 = vadd.f32 %v1789, %v1899
        %v1925 = vadd.f32 %v1790, %v1899
        %v1926 = vadd.f32 %v1791, %v1899
        %v1927 = vadd.f32 %v1792, %v1899
        %v1928 = vadd.f32 %v1793, %v1899
        %v1929 = vadd.f32 %v1794, %v1899
        %v1930 = vadd.f32 %v1795, %v1899
        %v1931 = vadd.f32 %v1796, %v1899
        %v1932 = vadd.f32 %v1797, %v1899
        %v1933 = vadd.f32 %v1798, %v1899
        %v1934 = vadd.f32 %v1799, %v1899
        %v1935 = vadd.f32 %v1800, %v1899
        %v1936 = vadd.f32 %v1801, %v1899
        %v1937 = vadd.f32 %v1802, %v1899
        %v1938 = vadd.f32 %v1803, %v1899
        %v1939 = vadd.f32 %v1804, %v1899
        %v1940 = vadd.f32 %v1805, %v1899
        %v1941 = vadd.f32 %v1806, %v1899
        %v1942 = vadd.f32 %v1807, %v1899
        %v1943 = vadd.f32 %v1808, %v1899
        %v1944 = vadd.f32 %v1809, %v1899
        %v1945 = vadd.f32 %v1810, %v1899
        %v1946 = vadd.f32 %v1811, %v1899
        %v1947 = vadd.f32 %v1812, %v1899
        %v1948 = vadd.f32 %v1813, %v1899
        %v1949 = vadd.f32 %v1814, %v1899
        %v1950 = vadd.f32 %v1815, %v1899
        %v1951 = vadd.f32 %v1816, %v1899
        %v1952 = vadd.f32 %v1817, %v1899
        %v1953 = vadd.f32 %v1818, %v1899
        %v1954 = vadd.f32 %v1819, %v1899
        %v1955 = vadd.f32 %v1820, %v1899
        %v1956 = vadd.f32 %v1821, %v1899
        %v1957 = vadd.f32 %v1822, %v1899
        %v1958 = vadd.f32 %v1823, %v1899
        %v1959 = vadd.f32 %v1824, %v1899
        %v1960 = vadd.f32 %v1825, %v1899
        %v1961 = vadd.f32 %v1826, %v1899
        %v1962 = vadd.f32 %v1827, %v1899
        %v1963 = vadd.f32 %v1828, %v1899
        %v1964 = vadd.f32 %v1829, %v1899
        %v1965 = vadd.f32 %v1830, %v1899
        %v1966 = vadd.f32 %v1831, %v1899
        %v1967 = vadd.f32 %v1832, %v1899
        %v1968 = vadd.f32 %v1833, %v1899
        %v1969 = vadd.f32 %v1834, %v1899
        %v1970 = vadd.f32 %v1835, %v1899
        %v1971 = vadd.f32 %v1836, %v1899
        %v1972 = vadd.f32 %v1837, %v1899
        %v1973 = vadd.f32 %v1838, %v1899
        %v1974 = vadd.f32 %v1839, %v1899
        %v1975 = vadd.f32 %v1840, %v1899
        %v1976 = vadd.f32 %v1841, %v1899
        %v1977 = vadd.f32 %v1842, %v1899
        %v1978 = vadd.f32 %v1843, %v1899
        %v1979 = vadd.f32 %v1844, %v1899
        %v1980 = vadd.f32 %v1845, %v1899
        %v1981 = vadd.f32 %v1846, %v1899
        %v1982 = vadd.f32 %v1847, %v1899
        %v1983 = vadd.f32 %v1848, %v1899
        %v1984 = vadd.f32 %v1849, %v1899
        %v1985 = vadd.f32 %v1850, %v1899
        %v1986 = vadd.f32 %v1851, %v1899
        %v1987 = vadd.f32 %v1852, %v1899
        %v1988 = vadd.f32 %v1853, %v1899
        %v1989 = vadd.f32 %v1854, %v1899
        %v1990 = vadd.f32 %v1855, %v1899
        %v1991 = vadd.f32 %v1856, %v1899
        %v1992 = vadd.f32 %v1857, %v1899
        %v1993 = vadd.f32 %v1858, %v1899
        %v1994 = vadd.f32 %v1859, %v1899
        %v1995 = vadd.f32 %v1860, %v1899
        %v1996 = vadd.f32 %v1861, %v1899
        %v1997 = vadd.f32 %v1862, %v1899
        %v1998 = vadd.f32 %v1863, %v1899
        %v1999 = vadd.f32 %v1864, %v1899
        %v2000 = vadd.f32 %v1865, %v1899
        %v2001 = vadd.f32 %v1866, %v1899
        %v2002 = vadd.f32 %v1867, %v1899
        %v2003 = vadd.f32 %v1868, %v1899
        %v2004 = vadd.f32 %v1869, %v1899
        %v2005 = vadd.f32 %v1870, %v1899
        %v2006 = vadd.f32 %v1871, %v1899
        %v2007 = vadd.f32 %v1872, %v1899
        %v2008 = vadd.f32 %v1873, %v1899
        %v2009 = vadd.f32 %v1874, %v1899
        %v2010 = vadd.f32 %v1875, %v1899
        %v2011 = vadd.f32 %v1876, %v1899
        %v2012 = vadd.f32 %v1877, %v1899
        %v2013 = vadd.f32 %v1878, %v1899
        %v2014 = vadd.f32 %v1879, %v1899
        %v2015 = vadd.f32 %v1880, %v1899
        %v2016 = vadd.f32 %v1881, %v1899
        %v2017 = vadd.f32 %v1882, %v1899
        %v2018 = vadd.f32 %v1883, %v1899
        %v2019 = vadd.f32 %v1884, %v1899
        %v2020 = vadd.f32 %v1885, %v1899
        %v2021 = vadd.f32 %v1886, %v1899
        %v2022 = vadd.f32 %v1887, %v1899
        %v2023 = vadd.f32 %v1888, %v1899
        %v2024 = vadd.f32 %v1889, %v1899
        %v2025 = vadd.f32 %v1890, %v1899
        %v2026 = vadd.f32 %v1891, %v1899
        %v2027 = vadd.f32 %v1892, %v1899
        %v2028 = vadd.f32 %v1893, %v1899
        %2029 = vst [vmem:[%s288] sm:$0xff] %v1901
        %2030 = vst [vmem:[%s288 + $0x8] sm:$0xff] %v1902
        %2031 = vst [vmem:[%s288 + $0x10] sm:$0xff] %v1903
        %2032 = vst [vmem:[%s288 + $0x18] sm:$0xff] %v1904
        %2033 = vst [vmem:[%s288 + $0x20] sm:$0xff] %v1905
        %2034 = vst [vmem:[%s288 + $0x28] sm:$0xff] %v1906
        %2035 = vst [vmem:[%s288 + $0x30] sm:$0xff] %v1907
        %2036 = vst [vmem:[%s288 + $0x38] sm:$0xff] %v1908
        %2037 = vst [vmem:[%s288 + $0x40] sm:$0xff] %v1909
        %2038 = vst [vmem:[%s288 + $0x48] sm:$0xff] %v1910
        %2039 = vst [vmem:[%s288 + $0x50] sm:$0xff] %v1911
        %2040 = vst [vmem:[%s288 + $0x58] sm:$0xff] %v1912
        %2041 = vst [vmem:[%s288 + $0x60] sm:$0xff] %v1913
        %2042 = vst [vmem:[%s288 + $0x68] sm:$0xff] %v1914
        %2043 = vst [vmem:[%s288 + $0x70] sm:$0xff] %v1915
        %2044 = vst [vmem:[%s288 + $0x78] sm:$0xff] %v1916
        %2045 = vst [vmem:[%s288 + $0x80] sm:$0xff] %v1917
        %2046 = vst [vmem:[%s288 + $0x88] sm:$0xff] %v1918
        %2047 = vst [vmem:[%s288 + $0x90] sm:$0xff] %v1919
        %2048 = vst [vmem:[%s288 + $0x98] sm:$0xff] %v1920
        %2049 = vst [vmem:[%s288 + $0xa0] sm:$0xff] %v1921
        %2050 = vst [vmem:[%s288 + $0xa8] sm:$0xff] %v1922
        %2051 = vst [vmem:[%s288 + $0xb0] sm:$0xff] %v1923
        %2052 = vst [vmem:[%s288 + $0xb8] sm:$0xff] %v1924
        %2053 = vst [vmem:[%s288 + $0xc0] sm:$0xff] %v1925
        %2054 = vst [vmem:[%s288 + $0xc8] sm:$0xff] %v1926
        %2055 = vst [vmem:[%s288 + $0xd0] sm:$0xff] %v1927
        %2056 = vst [vmem:[%s288 + $0xd8] sm:$0xff] %v1928
        %2057 = vst [vmem:[%s288 + $0xe0] sm:$0xff] %v1929
        %2058 = vst [vmem:[%s288 + $0xe8] sm:$0xff] %v1930
        %2059 = vst [vmem:[%s288 + $0xf0] sm:$0xff] %v1931
        %2060 = vst [vmem:[%s288 + $0xf8] sm:$0xff] %v1932
        %2061 = vst [vmem:[%s288 + $0x100] sm:$0xff] %v1933
        %2062 = vst [vmem:[%s288 + $0x108] sm:$0xff] %v1934
        %2063 = vst [vmem:[%s288 + $0x110] sm:$0xff] %v1935
        %2064 = vst [vmem:[%s288 + $0x118] sm:$0xff] %v1936
        %2065 = vst [vmem:[%s288 + $0x120] sm:$0xff] %v1937
        %2066 = vst [vmem:[%s288 + $0x128] sm:$0xff] %v1938
        %2067 = vst [vmem:[%s288 + $0x130] sm:$0xff] %v1939
        %2068 = vst [vmem:[%s288 + $0x138] sm:$0xff] %v1940
        %2069 = vst [vmem:[%s288 + $0x140] sm:$0xff] %v1941
        %2070 = vst [vmem:[%s288 + $0x148] sm:$0xff] %v1942
        %2071 = vst [vmem:[%s288 + $0x150] sm:$0xff] %v1943
        %2072 = vst [vmem:[%s288 + $0x158] sm:$0xff] %v1944
        %2073 = vst [vmem:[%s288 + $0x160] sm:$0xff] %v1945
        %2074 = vst [vmem:[%s288 + $0x168] sm:$0xff] %v1946
        %2075 = vst [vmem:[%s288 + $0x170] sm:$0xff] %v1947
        %2076 = vst [vmem:[%s288 + $0x178] sm:$0xff] %v1948
        %2077 = vst [vmem:[%s288 + $0x180] sm:$0xff] %v1949
        %2078 = vst [vmem:[%s288 + $0x188] sm:$0xff] %v1950
        %2079 = vst [vmem:[%s288 + $0x190] sm:$0xff] %v1951
        %2080 = vst [vmem:[%s288 + $0x198] sm:$0xff] %v1952
        %2081 = vst [vmem:[%s288 + $0x1a0] sm:$0xff] %v1953
        %2082 = vst [vmem:[%s288 + $0x1a8] sm:$0xff] %v1954
        %2083 = vst [vmem:[%s288 + $0x1b0] sm:$0xff] %v1955
        %2084 = vst [vmem:[%s288 + $0x1b8] sm:$0xff] %v1956
        %2085 = vst [vmem:[%s288 + $0x1c0] sm:$0xff] %v1957
        %2086 = vst [vmem:[%s288 + $0x1c8] sm:$0xff] %v1958
        %2087 = vst [vmem:[%s288 + $0x1d0] sm:$0xff] %v1959
        %2088 = vst [vmem:[%s288 + $0x1d8] sm:$0xff] %v1960
        %2089 = vst [vmem:[%s288 + $0x1e0] sm:$0xff] %v1961
        %2090 = vst [vmem:[%s288 + $0x1e8] sm:$0xff] %v1962
        %2091 = vst [vmem:[%s288 + $0x1f0] sm:$0xff] %v1963
        %2092 = vst [vmem:[%s288 + $0x1f8] sm:$0xff] %v1964
        %2093 = vst [vmem:[%s288 + $0x200] sm:$0xff] %v1965
        %2094 = vst [vmem:[%s288 + $0x208] sm:$0xff] %v1966
        %2095 = vst [vmem:[%s288 + $0x210] sm:$0xff] %v1967
        %2096 = vst [vmem:[%s288 + $0x218] sm:$0xff] %v1968
        %2097 = vst [vmem:[%s288 + $0x220] sm:$0xff] %v1969
        %2098 = vst [vmem:[%s288 + $0x228] sm:$0xff] %v1970
        %2099 = vst [vmem:[%s288 + $0x230] sm:$0xff] %v1971
        %2100 = vst [vmem:[%s288 + $0x238] sm:$0xff] %v1972
        %2101 = vst [vmem:[%s288 + $0x240] sm:$0xff] %v1973
        %2102 = vst [vmem:[%s288 + $0x248] sm:$0xff] %v1974
        %2103 = vst [vmem:[%s288 + $0x250] sm:$0xff] %v1975
        %2104 = vst [vmem:[%s288 + $0x258] sm:$0xff] %v1976
        %2105 = vst [vmem:[%s288 + $0x260] sm:$0xff] %v1977
        %2106 = vst [vmem:[%s288 + $0x268] sm:$0xff] %v1978
        %2107 = vst [vmem:[%s288 + $0x270] sm:$0xff] %v1979
        %2108 = vst [vmem:[%s288 + $0x278] sm:$0xff] %v1980
        %2109 = vst [vmem:[%s288 + $0x280] sm:$0xff] %v1981
        %2110 = vst [vmem:[%s288 + $0x288] sm:$0xff] %v1982
        %2111 = vst [vmem:[%s288 + $0x290] sm:$0xff] %v1983
        %2112 = vst [vmem:[%s288 + $0x298] sm:$0xff] %v1984
        %2113 = vst [vmem:[%s288 + $0x2a0] sm:$0xff] %v1985
        %2114 = vst [vmem:[%s288 + $0x2a8] sm:$0xff] %v1986
        %2115 = vst [vmem:[%s288 + $0x2b0] sm:$0xff] %v1987
        %2116 = vst [vmem:[%s288 + $0x2b8] sm:$0xff] %v1988
        %2117 = vst [vmem:[%s288 + $0x2c0] sm:$0xff] %v1989
        %2118 = vst [vmem:[%s288 + $0x2c8] sm:$0xff] %v1990
        %2119 = vst [vmem:[%s288 + $0x2d0] sm:$0xff] %v1991
        %2120 = vst [vmem:[%s288 + $0x2d8] sm:$0xff] %v1992
        %2121 = vst [vmem:[%s288 + $0x2e0] sm:$0xff] %v1993
        %2122 = vst [vmem:[%s288 + $0x2e8] sm:$0xff] %v1994
        %2123 = vst [vmem:[%s288 + $0x2f0] sm:$0xff] %v1995
        %2124 = vst [vmem:[%s288 + $0x2f8] sm:$0xff] %v1996
        %2125 = vst [vmem:[%s288 + $0x300] sm:$0xff] %v1997
        %2126 = vst [vmem:[%s288 + $0x308] sm:$0xff] %v1998
        %2127 = vst [vmem:[%s288 + $0x310] sm:$0xff] %v1999
        %2128 = vst [vmem:[%s288 + $0x318] sm:$0xff] %v2000
        %2129 = vst [vmem:[%s288 + $0x320] sm:$0xff] %v2001
        %2130 = vst [vmem:[%s288 + $0x328] sm:$0xff] %v2002
        %2131 = vst [vmem:[%s288 + $0x330] sm:$0xff] %v2003
        %2132 = vst [vmem:[%s288 + $0x338] sm:$0xff] %v2004
        %2133 = vst [vmem:[%s288 + $0x340] sm:$0xff] %v2005
        %2134 = vst [vmem:[%s288 + $0x348] sm:$0xff] %v2006
        %2135 = vst [vmem:[%s288 + $0x350] sm:$0xff] %v2007
        %2136 = vst [vmem:[%s288 + $0x358] sm:$0xff] %v2008
        %2137 = vst [vmem:[%s288 + $0x360] sm:$0xff] %v2009
        %2138 = vst [vmem:[%s288 + $0x368] sm:$0xff] %v2010
        %2139 = vst [vmem:[%s288 + $0x370] sm:$0xff] %v2011
        %2140 = vst [vmem:[%s288 + $0x378] sm:$0xff] %v2012
        %2141 = vst [vmem:[%s288 + $0x380] sm:$0xff] %v2013
        %2142 = vst [vmem:[%s288 + $0x388] sm:$0xff] %v2014
        %2143 = vst [vmem:[%s288 + $0x390] sm:$0xff] %v2015
        %2144 = vst [vmem:[%s288 + $0x398] sm:$0xff] %v2016
        %2145 = vst [vmem:[%s288 + $0x3a0] sm:$0xff] %v2017
        %2146 = vst [vmem:[%s288 + $0x3a8] sm:$0xff] %v2018
        %2147 = vst [vmem:[%s288 + $0x3b0] sm:$0xff] %v2019
        %2148 = vst [vmem:[%s288 + $0x3b8] sm:$0xff] %v2020
        %2149 = vst [vmem:[%s288 + $0x3c0] sm:$0xff] %v2021
        %2150 = vst [vmem:[%s288 + $0x3c8] sm:$0xff] %v2022
        %2151 = vst [vmem:[%s288 + $0x3d0] sm:$0xff] %v2023
        %2152 = vst [vmem:[%s288 + $0x3d8] sm:$0xff] %v2024
        %2153 = vst [vmem:[%s288 + $0x3e0] sm:$0xff] %v2025
        %2154 = vst [vmem:[%s288 + $0x3e8] sm:$0xff] %v2026
        %2155 = vst [vmem:[%s288 + $0x3f0] sm:$0xff] %v2027
        %2156 = vst [vmem:[%s288 + $0x3f8] sm:$0xff] %v2028
        %v2157 = vand.u32 2147483647, %v1901
        %v2158 = vand.u32 2147483647, %v1902
        %v2159 = vand.u32 2147483647, %v1903
        %v2160 = vand.u32 2147483647, %v1904
        %v2161 = vand.u32 2147483647, %v1905
        %v2162 = vand.u32 2147483647, %v1906
        %v2163 = vand.u32 2147483647, %v1907
        %v2164 = vand.u32 2147483647, %v1908
        %v2165 = vand.u32 2147483647, %v1909
        %v2166 = vand.u32 2147483647, %v1910
        %v2167 = vand.u32 2147483647, %v1911
        %v2168 = vand.u32 2147483647, %v1912
        %v2169 = vand.u32 2147483647, %v1913
        %v2170 = vand.u32 2147483647, %v1914
        %v2171 = vand.u32 2147483647, %v1915
        %v2172 = vand.u32 2147483647, %v1916
        %v2173 = vand.u32 2147483647, %v1917
        %v2174 = vand.u32 2147483647, %v1918
        %v2175 = vand.u32 2147483647, %v1919
        %v2176 = vand.u32 2147483647, %v1920
        %v2177 = vand.u32 2147483647, %v1921
        %v2178 = vand.u32 2147483647, %v1922
        %v2179 = vand.u32 2147483647, %v1923
        %v2180 = vand.u32 2147483647, %v1924
        %v2181 = vand.u32 2147483647, %v1925
        %v2182 = vand.u32 2147483647, %v1926
        %v2183 = vand.u32 2147483647, %v1927
        %v2184 = vand.u32 2147483647, %v1928
        %v2185 = vand.u32 2147483647, %v1929
        %v2186 = vand.u32 2147483647, %v1930
        %v2187 = vand.u32 2147483647, %v1931
        %v2188 = vand.u32 2147483647, %v1932
        %v2189 = vand.u32 2147483647, %v1933
        %v2190 = vand.u32 2147483647, %v1934
        %v2191 = vand.u32 2147483647, %v1935
        %v2192 = vand.u32 2147483647, %v1936
        %v2193 = vand.u32 2147483647, %v1937
        %v2194 = vand.u32 2147483647, %v1938
        %v2195 = vand.u32 2147483647, %v1939
        %v2196 = vand.u32 2147483647, %v1940
        %v2197 = vand.u32 2147483647, %v1941
        %v2198 = vand.u32 2147483647, %v1942
        %v2199 = vand.u32 2147483647, %v1943
        %v2200 = vand.u32 2147483647, %v1944
        %v2201 = vand.u32 2147483647, %v1945
        %v2202 = vand.u32 2147483647, %v1946
        %v2203 = vand.u32 2147483647, %v1947
        %v2204 = vand.u32 2147483647, %v1948
        %v2205 = vand.u32 2147483647, %v1949
        %v2206 = vand.u32 2147483647, %v1950
        %v2207 = vand.u32 2147483647, %v1951
        %v2208 = vand.u32 2147483647, %v1952
        %v2209 = vand.u32 2147483647, %v1953
        %v2210 = vand.u32 2147483647, %v1954
        %v2211 = vand.u32 2147483647, %v1955
        %v2212 = vand.u32 2147483647, %v1956
        %v2213 = vand.u32 2147483647, %v1957
        %v2214 = vand.u32 2147483647, %v1958
        %v2215 = vand.u32 2147483647, %v1959
        %v2216 = vand.u32 2147483647, %v1960
        %v2217 = vand.u32 2147483647, %v1961
        %v2218 = vand.u32 2147483647, %v1962
        %v2219 = vand.u32 2147483647, %v1963
        %v2220 = vand.u32 2147483647, %v1964
        %v2221 = vand.u32 2147483647, %v1965
        %v2222 = vand.u32 2147483647, %v1966
        %v2223 = vand.u32 2147483647, %v1967
        %v2224 = vand.u32 2147483647, %v1968
        %v2225 = vand.u32 2147483647, %v1969
        %v2226 = vand.u32 2147483647, %v1970
        %v2227 = vand.u32 2147483647, %v1971
        %v2228 = vand.u32 2147483647, %v1972
        %v2229 = vand.u32 2147483647, %v1973
        %v2230 = vand.u32 2147483647, %v1974
        %v2231 = vand.u32 2147483647, %v1975
        %v2232 = vand.u32 2147483647, %v1976
        %v2233 = vand.u32 2147483647, %v1977
        %v2234 = vand.u32 2147483647, %v1978
        %v2235 = vand.u32 2147483647, %v1979
        %v2236 = vand.u32 2147483647, %v1980
        %v2237 = vand.u32 2147483647, %v1981
        %v2238 = vand.u32 2147483647, %v1982
        %v2239 = vand.u32 2147483647, %v1983
        %v2240 = vand.u32 2147483647, %v1984
        %v2241 = vand.u32 2147483647, %v1985
        %v2242 = vand.u32 2147483647, %v1986
        %v2243 = vand.u32 2147483647, %v1987
        %v2244 = vand.u32 2147483647, %v1988
        %v2245 = vand.u32 2147483647, %v1989
        %v2246 = vand.u32 2147483647, %v1990
        %v2247 = vand.u32 2147483647, %v1991
        %v2248 = vand.u32 2147483647, %v1992
        %v2249 = vand.u32 2147483647, %v1993
        %v2250 = vand.u32 2147483647, %v1994
        %v2251 = vand.u32 2147483647, %v1995
        %v2252 = vand.u32 2147483647, %v1996
        %v2253 = vand.u32 2147483647, %v1997
        %v2254 = vand.u32 2147483647, %v1998
        %v2255 = vand.u32 2147483647, %v1999
        %v2256 = vand.u32 2147483647, %v2000
        %v2257 = vand.u32 2147483647, %v2001
        %v2258 = vand.u32 2147483647, %v2002
        %v2259 = vand.u32 2147483647, %v2003
        %v2260 = vand.u32 2147483647, %v2004
        %v2261 = vand.u32 2147483647, %v2005
        %v2262 = vand.u32 2147483647, %v2006
        %v2263 = vand.u32 2147483647, %v2007
        %v2264 = vand.u32 2147483647, %v2008
        %v2265 = vand.u32 2147483647, %v2009
        %v2266 = vand.u32 2147483647, %v2010
        %v2267 = vand.u32 2147483647, %v2011
        %v2268 = vand.u32 2147483647, %v2012
        %v2269 = vand.u32 2147483647, %v2013
        %v2270 = vand.u32 2147483647, %v2014
        %v2271 = vand.u32 2147483647, %v2015
        %v2272 = vand.u32 2147483647, %v2016
        %v2273 = vand.u32 2147483647, %v2017
        %v2274 = vand.u32 2147483647, %v2018
        %v2275 = vand.u32 2147483647, %v2019
        %v2276 = vand.u32 2147483647, %v2020
        %v2277 = vand.u32 2147483647, %v2021
        %v2278 = vand.u32 2147483647, %v2022
        %v2279 = vand.u32 2147483647, %v2023
        %v2280 = vand.u32 2147483647, %v2024
        %v2281 = vand.u32 2147483647, %v2025
        %v2282 = vand.u32 2147483647, %v2026
        %v2283 = vand.u32 2147483647, %v2027
        %v2284 = vand.u32 2147483647, %v2028
        %v2285 = vmax.f32 %v2157, %v2161
        %v2286 = vmax.f32 %v2158, %v2162
        %v2287 = vmax.f32 %v2159, %v2163
        %v2288 = vmax.f32 %v2160, %v2164
        %v2289 = vmax.f32 %v2285, %v2165
        %v2290 = vmax.f32 %v2286, %v2166
        %v2291 = vmax.f32 %v2287, %v2167
        %v2292 = vmax.f32 %v2288, %v2168
        %v2293 = vmax.f32 %v2289, %v2169
        %v2294 = vmax.f32 %v2290, %v2170
        %v2295 = vmax.f32 %v2291, %v2171
        %v2296 = vmax.f32 %v2292, %v2172
        %v2297 = vmax.f32 %v2293, %v2173
        %v2298 = vmax.f32 %v2294, %v2174
        %v2299 = vmax.f32 %v2295, %v2175
        %v2300 = vmax.f32 %v2296, %v2176
        %v2301 = vmax.f32 %v2297, %v2177
        %v2302 = vmax.f32 %v2298, %v2178
        %v2303 = vmax.f32 %v2299, %v2179
        %v2304 = vmax.f32 %v2300, %v2180
        %v2305 = vmax.f32 %v2301, %v2181
        %v2306 = vmax.f32 %v2302, %v2182
        %v2307 = vmax.f32 %v2303, %v2183
        %v2308 = vmax.f32 %v2304, %v2184
        %v2309 = vmax.f32 %v2305, %v2185
        %v2310 = vmax.f32 %v2306, %v2186
        %v2311 = vmax.f32 %v2307, %v2187
        %v2312 = vmax.f32 %v2308, %v2188
        %v2313 = vmax.f32 %v2309, %v2189
        %v2314 = vmax.f32 %v2310, %v2190
        %v2315 = vmax.f32 %v2311, %v2191
        %v2316 = vmax.f32 %v2312, %v2192
        %v2317 = vmax.f32 %v2313, %v2193
        %v2318 = vmax.f32 %v2314, %v2194
        %v2319 = vmax.f32 %v2315, %v2195
        %v2320 = vmax.f32 %v2316, %v2196
        %v2321 = vmax.f32 %v2317, %v2197
        %v2322 = vmax.f32 %v2318, %v2198
        %v2323 = vmax.f32 %v2319, %v2199
        %v2324 = vmax.f32 %v2320, %v2200
        %v2325 = vmax.f32 %v2321, %v2201
        %v2326 = vmax.f32 %v2322, %v2202
        %v2327 = vmax.f32 %v2323, %v2203
        %v2328 = vmax.f32 %v2324, %v2204
        %v2329 = vmax.f32 %v2325, %v2205
        %v2330 = vmax.f32 %v2326, %v2206
        %v2331 = vmax.f32 %v2327, %v2207
        %v2332 = vmax.f32 %v2328, %v2208
        %v2333 = vmax.f32 %v2329, %v2209
        %v2334 = vmax.f32 %v2330, %v2210
        %v2335 = vmax.f32 %v2331, %v2211
        %v2336 = vmax.f32 %v2332, %v2212
        %v2337 = vmax.f32 %v2333, %v2213
        %v2338 = vmax.f32 %v2334, %v2214
        %v2339 = vmax.f32 %v2335, %v2215
        %v2340 = vmax.f32 %v2336, %v2216
        %v2341 = vmax.f32 %v2337, %v2217
        %v2342 = vmax.f32 %v2338, %v2218
        %v2343 = vmax.f32 %v2339, %v2219
        %v2344 = vmax.f32 %v2340, %v2220
        %v2345 = vmax.f32 %v2341, %v2221
        %v2346 = vmax.f32 %v2342, %v2222
        %v2347 = vmax.f32 %v2343, %v2223
        %v2348 = vmax.f32 %v2344, %v2224
        %v2349 = vmax.f32 %v2345, %v2225
        %v2350 = vmax.f32 %v2346, %v2226
        %v2351 = vmax.f32 %v2347, %v2227
        %v2352 = vmax.f32 %v2348, %v2228
        %v2353 = vmax.f32 %v2349, %v2229
        %v2354 = vmax.f32 %v2350, %v2230
        %v2355 = vmax.f32 %v2351, %v2231
        %v2356 = vmax.f32 %v2352, %v2232
        %v2357 = vmax.f32 %v2353, %v2233
        %v2358 = vmax.f32 %v2354, %v2234
        %v2359 = vmax.f32 %v2355, %v2235
        %v2360 = vmax.f32 %v2356, %v2236
        %v2361 = vmax.f32 %v2357, %v2237
        %v2362 = vmax.f32 %v2358, %v2238
        %v2363 = vmax.f32 %v2359, %v2239
        %v2364 = vmax.f32 %v2360, %v2240
        %v2365 = vmax.f32 %v2361, %v2241
        %v2366 = vmax.f32 %v2362, %v2242
        %v2367 = vmax.f32 %v2363, %v2243
        %v2368 = vmax.f32 %v2364, %v2244
        %v2369 = vmax.f32 %v2365, %v2245
        %v2370 = vmax.f32 %v2366, %v2246
        %v2371 = vmax.f32 %v2367, %v2247
        %v2372 = vmax.f32 %v2368, %v2248
        %v2373 = vmax.f32 %v2369, %v2249
        %v2374 = vmax.f32 %v2370, %v2250
        %v2375 = vmax.f32 %v2371, %v2251
        %v2376 = vmax.f32 %v2372, %v2252
        %v2377 = vmax.f32 %v2373, %v2253
        %v2378 = vmax.f32 %v2374, %v2254
        %v2379 = vmax.f32 %v2375, %v2255
        %v2380 = vmax.f32 %v2376, %v2256
        %v2381 = vmax.f32 %v2377, %v2257
        %v2382 = vmax.f32 %v2378, %v2258
        %v2383 = vmax.f32 %v2379, %v2259
        %v2384 = vmax.f32 %v2380, %v2260
        %v2385 = vmax.f32 %v2381, %v2261
        %v2386 = vmax.f32 %v2382, %v2262
        %v2387 = vmax.f32 %v2383, %v2263
        %v2388 = vmax.f32 %v2384, %v2264
        %v2389 = vmax.f32 %v2385, %v2265
        %v2390 = vmax.f32 %v2386, %v2266
        %v2391 = vmax.f32 %v2387, %v2267
        %v2392 = vmax.f32 %v2388, %v2268
        %v2393 = vmax.f32 %v2389, %v2269
        %v2394 = vmax.f32 %v2390, %v2270
        %v2395 = vmax.f32 %v2391, %v2271
        %v2396 = vmax.f32 %v2392, %v2272
        %v2397 = vmax.f32 %v2393, %v2273
        %v2398 = vmax.f32 %v2394, %v2274
        %v2399 = vmax.f32 %v2395, %v2275
        %v2400 = vmax.f32 %v2396, %v2276
        %v2401 = vmax.f32 %v2397, %v2277
        %v2402 = vmax.f32 %v2398, %v2278
        %v2403 = vmax.f32 %v2399, %v2279
        %v2404 = vmax.f32 %v2400, %v2280
        %v2405 = vmax.f32 %v2401, %v2281
        %v2406 = vmax.f32 %v2402, %v2282
        %v2407 = vmax.f32 %v2403, %v2283
        %v2408 = vmax.f32 %v2404, %v2284
        %v2409 = vmax.f32 %v2405, %v2406
        %v2410 = vmax.f32 %v2407, %v2408
        %v2411 = vmax.f32 %v2409, %v2410
        %v2412 = vrot.slane %v2411, 4
        %v2413 = vmax.f32 %v2411, %v2412
        %v2414 = vrot.slane %v2413, 2
        %v2415 = vmax.f32 %v2413, %v2414
        %v2416 = vrot.slane %v2415, 1
        %v2417 = vmax.f32 %v2415, %v2416
        %2418 = vst [vmem:[%s296] sm:$0xff] %v2417
        %s2419 = smul.u32 128, %s23
        %p2420 = scmp.lt.s32.totalorder %s22, 1
        %s2421 = scalar_select %p2420, %s22, 1
        %p2422 = scmp.lt.s32.totalorder %s2419, 127
        %s2423 = scalar_select %p2422, %s2419, 127
        %s2424 = smul.addr %s2421, 128
        %s2425 = sadd.s32 %s2423, %s2424
        %s2426 = smul.addr %s2425, 8
        %s2427 = scalar_lea.vmem %s4, %s2426
        %p2428 = scmp.lt.s32.totalorder %s22, 1
        %s2429 = scalar_select %p2428, %s22, 1
        %p2430 = scmp.lt.s32.totalorder %s23, 0
        %s2431 = scalar_select %p2430, %s23, 0
        %s2432 = sadd.s32 %s2431, %s2429
        %s2433 = smul.addr %s2432, 8
        %s2434 = scalar_lea.vmem %s5, %s2433
        // Predicated region
        $region41: #{quant_conv_forward.2} parent=35 // pred_check
          %p2435 = pneg %p141
        $region42: #{quant_conv_forward.2} parent=35 // pred_check_branch
          %2437 = sbr.rel (%p2435) target = $region44
        $region43: #{quant_conv_forward.2} parent=35 // pred_region
          %s2438 = smul.u32 128, %s23
        $region44: #{quant_conv_forward.2} parent=35 // pred_fallthru
          _
        // Predicated region
        $region45: #{quant_conv_forward.2} parent=35 // pred_check
          %p2439 = pneg %p169
        $region46: #{quant_conv_forward.2} parent=35 // pred_check_branch
          %2441 = sbr.rel (%p2439) target = $region48
        $region47: #{quant_conv_forward.2} parent=35 // pred_region
          _
        $region48: #{quant_conv_forward.2} parent=35 // pred_fallthru
          _
      $region36: #{quant_conv_forward.2} parent=5 // pred_fallthru
        _
      %p2442 = scmp.le.s32.totalorder 2, %s13
      // Predicated region
      $region49: #{quant_conv_forward.2} parent=5 // pred_check
        %p2443 = pneg %p2442
      $region50: #{quant_conv_forward.2} parent=5 // pred_check_branch
        %2445 = sbr.rel (%p2443) target = $region52
      $region51: #{quant_conv_forward.2} parent=5 // pred_region
        %s2446 = ssub.s32 %s13, 2
        // Predicated region
        $region53: #{quant_conv_forward.2} parent=51 // pred_check
          %p2447 = pneg %p147
        $region54: #{quant_conv_forward.2} parent=51 // pred_check_branch
          %2449 = sbr.rel (%p2447) target = $region56
        $region55: #{quant_conv_forward.2} parent=51 // pred_region
          %s2450 = smul.u32 128, %s25
          %p2451 = scmp.lt.s32.totalorder %s24, 1
          %s2452 = scalar_select %p2451, %s24, 1
          %p2453 = scmp.lt.s32.totalorder %s2450, 127
          %s2454 = scalar_select %p2453, %s2450, 127
          %s2455 = smul.addr %s2452, 128
          %s2456 = sadd.s32 %s2454, %s2455
          %s2457 = smul.addr %s2456, 8
          %s2458 = scalar_lea.vmem %s4, %s2457
        $region56: #{quant_conv_forward.2} parent=51 // pred_fallthru
          _
        // Predicated region
        $region57: #{quant_conv_forward.2} parent=51 // pred_check
          %p2459 = pneg %p175
        $region58: #{quant_conv_forward.2} parent=51 // pred_check_branch
          %2461 = sbr.rel (%p2459) target = $region60
        $region59: #{quant_conv_forward.2} parent=51 // pred_region
          %p2462 = scmp.lt.s32.totalorder %s24, 1
          %s2463 = scalar_select %p2462, %s24, 1
          %p2464 = scmp.lt.s32.totalorder %s25, 0
          %s2465 = scalar_select %p2464, %s25, 0
          %s2466 = sadd.s32 %s2465, %s2463
          %s2467 = smul.addr %s2466, 8
          %s2468 = scalar_lea.vmem %s5, %s2467
        $region60: #{quant_conv_forward.2} parent=51 // pred_fallthru
          _
      $region52: #{quant_conv_forward.2} parent=5 // pred_fallthru
        _
    $region6: #{quant_conv_forward.2} parent=1 // loop_footer
      %s17 = sadd.s32 1, %s13
    $region7: #{quant_conv_forward.2} parent=1 // loop_footer_branch
      %12 = sbr.rel target = $region3
    $region8: #{quant_conv_forward.2} parent=1 // loop_exit
      _
    %2469 = vsyncpa [#allocation3], 1
    %s2470 = scalar_lea.sflag [#allocation3], 1
    %2471 = vsyncpa %s2470, 1

</llo_original>
